<compile_context>
chip_gen: v7x
topology: tpu7x:2x2x1
jax: 0.10.0
libtpu: 0.0.40
codegen_flags: <defaults>
</compile_context>

<pallas_src>
import functools
import math

import jax
import jax.numpy as jnp
from jax.experimental import pallas as pl
from jax.experimental.pallas import tpu as pltpu

IN_H, IN_W = 16, 16                          # multiples of 8
EXPECTED_POOLED = (IN_H // 4, IN_W // 4)     # plays the role of (340, 256)
FC1_IN = 64 * EXPECTED_POOLED[0] * EXPECTED_POOLED[1]


# ---------------------------------------------------------------------------
# In-kernel helpers
# ---------------------------------------------------------------------------
def _maxpool2x2(y, tmp_ref, H, W):
    """2x2 / stride-2 max pool of y, rows ordered (h, w) row-major.

    y: (H*W, C) f32 value.  tmp_ref: VMEM scratch ((H//2)*W, C) f32.
    Returns ((H//2)*(W//2), C) with rows in pooled row-major order.
    """
    C = y.shape[-1]
    # pool over h: layout-preserving reshape (W is a multiple of 8) + max of the
    # two leading-axis slices -> pure VPU work, no cross-lane shuffles.
    v = y.reshape(H // 2, 2, W, C)
    mh = jnp.maximum(v[:, 0], v[:, 1])                      # (H//2, W, C)
    # pool over w: adjacent-row max via two stride-2 sublane loads from VMEM.
    tmp_ref[...] = mh.reshape((H // 2) * W, C)
    even = tmp_ref[pl.ds(0, (H // 2) * (W // 2), 2), :]
    odd = tmp_ref[pl.ds(1, (H // 2) * (W // 2), 2), :]
    return jnp.maximum(even, odd)                           # rows = Y*(W//2)+X


def _conv_stack_kernel(x_ref, w1_ref, b1_ref, w2_ref, b2_ref, feat_ref,
                       pool1_ref, pool2_ref, pad_ref, *, H, W):
    # x_ref   : (1, H*W, 27) bf16  im2col of one sample (conv1 taps)
    # w1_ref  : (27, 32) bf16,  b1_ref: (1, 32) f32
    # w2_ref  : (288, 64) bf16, b2_ref: (1, 64) f32
    # feat_ref: (1, (H//4)*(W//4), 64) bf16   pooled conv2 output, (h, w, c) order
    H2, W2 = H // 2, W // 2

    # ---- conv1 + bias + ReLU: one K=27 MXU matmul, f32 accumulate/epilogue ----
    y1 = jnp.dot(x_ref[0], w1_ref[...], preferred_element_type=jnp.float32)
    y1 = jnp.maximum(y1 + b1_ref[...], 0.0)                 # (H*W, 32) f32

    # ---- fused 2x2 max pool (stays in VMEM/vregs) ----
    z1 = _maxpool2x2(y1, pool1_ref, H, W)                   # (H2*W2, 32)

    # ---- conv2: in-kernel halo padding into a zeroed VMEM scratch.  The full
    #      zero-fill is ~13 KB per step (cheap) and keeps the border correct on
    #      every grid iteration regardless of how the "parallel" batch axis is
    #      split across cores. ----
    pad_ref[...] = jnp.zeros(pad_ref.shape, pad_ref.dtype)
    pad_ref[1:H2 + 1, 1:W2 + 1, :] = z1.reshape(H2, W2, z1.shape[-1])

    # ---- single K=288 im2col matmul: 9 taps concatenated on the lane axis,
    #      column order (kh, kw, cin) matching conv2_w.reshape(288, 64) ----
    taps = [pad_ref[kh:kh + H2, kw:kw + W2, :].reshape(H2 * W2, -1)
            for kh in range(3) for kw in range(3)]
    patches = jnp.concatenate(taps, axis=-1)                # (H2*W2, 288) f32
    y2 = jnp.dot(patches.astype(jnp.bfloat16), w2_ref[...],
                 preferred_element_type=jnp.float32)
    y2 = jnp.maximum(y2 + b2_ref[...], 0.0)                 # (H2*W2, 64) f32

    # ---- fused 2x2 max pool, flattened (h, w)-major with channels minor ----
    z2 = _maxpool2x2(y2, pool2_ref, H2, W2)                 # ((H//4)*(W//4), 64)
    feat_ref[0] = z2.astype(feat_ref.dtype)


def conv_stack(x_im2col, w1, b1, w2, b2, H, W):
    N = x_im2col.shape[0]
    Hp, Wp = H // 4, W // 4
    kernel = functools.partial(_conv_stack_kernel, H=H, W=W)
    return pl.pallas_call(
        kernel,
        out_shape=jax.ShapeDtypeStruct((N, Hp * Wp, 64), jnp.bfloat16),
        grid=(N,),
        in_specs=[
            pl.BlockSpec((1, H * W, 27), lambda n: (n, 0, 0)),
            pl.BlockSpec((27, 32), lambda n: (0, 0)),       # weights stay VMEM-
            pl.BlockSpec((1, 32), lambda n: (0, 0)),        # resident across the
            pl.BlockSpec((288, 64), lambda n: (0, 0)),      # batch grid (same
            pl.BlockSpec((1, 64), lambda n: (0, 0)),        # block index -> no
        ],                                                  # re-DMA)
        out_specs=pl.BlockSpec((1, Hp * Wp, 64), lambda n: (n, 0, 0)),
        scratch_shapes=[
            pltpu.VMEM(((H // 2) * W, 32), jnp.float32),            # pool1 scratch
            pltpu.VMEM(((H // 4) * (W // 2), 64), jnp.float32),     # pool2 scratch
            pltpu.VMEM((H // 2 + 2, W // 2 + 2, 32), jnp.float32),  # conv2 halo pad
        ],
        compiler_params=pltpu.CompilerParams(dimension_semantics=("parallel",)),
    )(x_im2col, w1, b1, w2, b2)


# ---------------------------------------------------------------------------
# fc1 + fc2 + fc3 fused into one pallas_call (single block, all weights in VMEM)
# ---------------------------------------------------------------------------
def _fc_stack_kernel(x_ref, w1_ref, b1_ref, w2_ref, b2_ref, w3_ref, b3_ref,
                     o_ref):
    h = jnp.dot(x_ref[...], w1_ref[...], preferred_element_type=jnp.float32)
    h = jnp.maximum(h + b1_ref[...], 0.0)
    h = jnp.dot(h.astype(jnp.bfloat16), w2_ref[...],
                preferred_element_type=jnp.float32)
    h = jnp.maximum(h + b2_ref[...], 0.0)
    h = jnp.dot(h.astype(jnp.bfloat16), w3_ref[...],
                preferred_element_type=jnp.float32)
    o_ref[...] = (h + b3_ref[...]).astype(o_ref.dtype)


def fc_stack(x, w1, b1, w2, b2, w3, b3):
    N = x.shape[0]
    return pl.pallas_call(
        _fc_stack_kernel,
        out_shape=jax.ShapeDtypeStruct((N, w3.shape[1]), jnp.float32),
    )(x, w1, b1, w2, b2, w3, b3)


# ---------------------------------------------------------------------------
# Parameter packing (one-time): bf16 matmul operands, conv weights flattened to
# im2col order, fc1 rows permuted from PyTorch's (c, h, w) flatten order to the
# kernel's (h, w, c) feature order.  Numerically identical to nn.Linear/Conv2d.
# ---------------------------------------------------------------------------
def prepare_params(p):
    Hp, Wp = EXPECTED_POOLED
    fc1_hwc = (p["fc1_w"].reshape(64, Hp, Wp, 512)
               .transpose(1, 2, 0, 3).reshape(FC1_IN, 512))
    return {
        "w1": p["conv1_w"].reshape(27, 32).astype(jnp.bfloat16),
        "b1": p["conv1_b"].reshape(1, 32),
        "w2": p["conv2_w"].reshape(288, 64).astype(jnp.bfloat16),
        "b2": p["conv2_b"].reshape(1, 64),
        "fw1": fc1_hwc.astype(jnp.bfloat16),
        "fb1": p["fc1_b"].reshape(1, 512),
        "fw2": p["fc2_w"].astype(jnp.bfloat16),
        "fb2": p["fc2_b"].reshape(1, 256),
        "fw3": p["fc3_w"].astype(jnp.bfloat16),
        "fb3": p["fc3_b"].reshape(1, 24),
    }


# ---------------------------------------------------------------------------
# Forward pass mirroring CNN.forward
# ---------------------------------------------------------------------------
def cnn_forward(x_nchw, kp):
    N, Cin, H, W = x_nchw.shape

    # conv1 im2col in the wrapper (one tiny XLA fusion over a few KB of input);
    # tap order is (kh, kw, cin), matching conv1_w.reshape(27, 32).
    xh = jnp.transpose(x_nchw, (0, 2, 3, 1))
    xp = jnp.pad(xh, ((0, 0), (1, 1), (1, 1), (0, 0)))
    taps = [xp[:, kh:kh + H, kw:kw + W, :]
            for kh in range(3) for kw in range(3)]
    x_im2col = jnp.concatenate(taps, axis=-1).reshape(N, H * W, 9 * Cin)
    x_im2col = x_im2col.astype(jnp.bfloat16)

    feat = conv_stack(x_im2col, kp["w1"], kp["b1"], kp["w2"], kp["b2"], H, W)

    if (H // 4, W // 4) != EXPECTED_POOLED:     # mirrors `if x.size()[2:] != (340, 256)`
        return None

    # feature rows are already (h, w)-major with channels minor; fc1 weights were
    # permuted to this order in prepare_params, so a flat reshape suffices.
    feat = feat.reshape(N, FC1_IN)
    return fc_stack(feat, kp["fw1"], kp["fb1"], kp["fw2"], kp["fb2"],
                    kp["fw3"], kp["fb3"])


# ---------------------------------------------------------------------------
# Deterministic synthetic parameters (PyTorch-style uniform(+-1/sqrt(fan_in)))
# ---------------------------------------------------------------------------
def init_params(key):
    ks = jax.random.split(key, 10)

    def u(k, shape, fan_in):
        bound = 1.0 / math.sqrt(fan_in)
        return jax.random.uniform(k, shape, jnp.float32, -bound, bound)

    return {
        "conv1_w": u(ks[0], (3, 3, 3, 32), 3 * 9),     # HWIO
        "conv1_b": u(ks[1], (32,), 3 * 9),
        "conv2_w": u(ks[2], (3, 3, 32, 64), 32 * 9),
        "conv2_b": u(ks[3], (64,), 32 * 9),
        "fc1_w":   u(ks[4], (FC1_IN, 512), FC1_IN),
        "fc1_b":   u(ks[5], (512,), FC1_IN),
        "fc2_w":   u(ks[6], (512, 256), 512),
        "fc2_b":   u(ks[7], (256,), 512),
        "fc3_w":   u(ks[8], (256, 24), 256),
        "fc3_b":   u(ks[9], (24,), 256),
    }


# ---------------------------------------------------------------------------
# Pure-JAX f32 reference (PyTorch semantics) for a correctness check
# ---------------------------------------------------------------------------
def cnn_reference(x_nchw, p):
    x = jnp.transpose(x_nchw, (0, 2, 3, 1))

    def conv(x, w, b):
        y = jax.lax.conv_general_dilated(
            x, w, (1, 1), "SAME", dimension_numbers=("NHWC", "HWIO", "NHWC"))
        return jax.nn.relu(y + b)

    def pool(x):
        N, H, W, C = x.shape
        return x.reshape(N, H // 2, 2, W // 2, 2, C).max(axis=(2, 4))

    x = pool(conv(x, p["conv1_w"], p["conv1_b"]))
    x = pool(conv(x, p["conv2_w"], p["conv2_b"]))
    x = jnp.transpose(x, (0, 3, 1, 2)).reshape(x.shape[0], -1)
    x = jax.nn.relu(x @ p["fc1_w"] + p["fc1_b"])
    x = jax.nn.relu(x @ p["fc2_w"] + p["fc2_b"])
    return x @ p["fc3_w"] + p["fc3_b"]


if __name__ == "__main__":
    key = jax.random.PRNGKey(0)
    kx, kparam = jax.random.split(key)
    x = jax.random.normal(kx, (2, 3, IN_H, IN_W), dtype=jnp.float32)  # NCHW
    params = init_params(kparam)
    packed = prepare_params(params)

    fwd = jax.jit(cnn_forward)
    out = fwd(x, packed)
    assert out is not None, "size check failed (unexpected pooled spatial dims)"
    out = jax.block_until_ready(out)
    assert out.shape == (2, 24)

    ref = jax.block_until_ready(cnn_reference(x, params))
    max_err = float(jnp.max(jnp.abs(out - ref)))
    assert bool(jnp.allclose(out, ref, rtol=5e-2, atol=5e-3)), (
        "mismatch vs f32 reference (bf16 matmul path): max abs err = %g" % max_err)

    print("KERNEL_OK")
</pallas_src>

<mosaic_0001>
module attributes {stable_mosaic.version = 11 : i64} {
  func.func @_conv_stack_kernel(%arg0: i32, %arg1: memref<1x256x27xbf16, #tpu.memory_space<vmem>>, %arg2: memref<27x32xbf16, #tpu.memory_space<vmem>>, %arg3: memref<1x32xf32, #tpu.memory_space<vmem>>, %arg4: memref<288x64xbf16, #tpu.memory_space<vmem>>, %arg5: memref<1x64xf32, #tpu.memory_space<vmem>>, %arg6: memref<1x16x64xbf16, #tpu.memory_space<vmem>>, %arg7: memref<128x32xf32, #tpu.memory_space<vmem>>, %arg8: memref<32x64xf32, #tpu.memory_space<vmem>>, %arg9: memref<10x10x32xf32, #tpu.memory_space<vmem>>) attributes {dimension_semantics = [#tpu.dimension_semantics<parallel>], iteration_bounds = array<i64: 2>, scalar_prefetch = 0 : i64, scratch_operands = 3 : i64, tpu.core_type = #tpu.core_type<tc>, window_params = [{transform_indices = @transform_0, window_bounds = array<i64: 1, 256, 27>}, {pipeline_mode = #tpu.pipeline_mode<synchronous>, transform_indices = @transform_1, window_bounds = array<i64: 27, 32>}, {pipeline_mode = #tpu.pipeline_mode<synchronous>, transform_indices = @transform_2, window_bounds = array<i64: 1, 32>}, {pipeline_mode = #tpu.pipeline_mode<synchronous>, transform_indices = @transform_3, window_bounds = array<i64: 288, 64>}, {pipeline_mode = #tpu.pipeline_mode<synchronous>, transform_indices = @transform_4, window_bounds = array<i64: 1, 64>}, {transform_indices = @transform_5, window_bounds = array<i64: 1, 16, 64>}]} {
    %c0 = arith.constant 0 : index
    %c0_0 = arith.constant 0 : index
    %c0_1 = arith.constant 0 : index
    %0 = vector.load %arg1[%c0, %c0_0, %c0_1] : memref<1x256x27xbf16, #tpu.memory_space<vmem>>, vector<1x256x27xbf16>
    %1 = vector.shape_cast %0 : vector<1x256x27xbf16> to vector<256x27xbf16>
    %c0_2 = arith.constant 0 : index
    %c0_3 = arith.constant 0 : index
    %2 = vector.load %arg2[%c0_2, %c0_3] : memref<27x32xbf16, #tpu.memory_space<vmem>>, vector<27x32xbf16>
    %cst = arith.constant dense<0.000000e+00> : vector<256x32xf32>
    %3 = tpu.matmul %1, %2, %cst {dimension_numbers = #tpu.dot_dimension_numbers<[1], [0], [0], [1], [0, 0, 1, 1], [], []>} : vector<256x27xbf16>, vector<27x32xbf16>, vector<256x32xf32> -> vector<256x32xf32>
    %c0_4 = arith.constant 0 : index
    %c0_5 = arith.constant 0 : index
    %4 = vector.load %arg3[%c0_4, %c0_5] : memref<1x32xf32, #tpu.memory_space<vmem>>, vector<1x32xf32>
    %5 = vector.broadcast %4 : vector<1x32xf32> to vector<256x32xf32>
    %6 = arith.addf %3, %5 : vector<256x32xf32>
    %cst_6 = arith.constant 0.000000e+00 : f32
    %7 = vector.broadcast %cst_6 : f32 to vector<256x32xf32>
    %8 = arith.maximumf %6, %7 : vector<256x32xf32>
    %9 = vector.shape_cast %8 : vector<256x32xf32> to vector<8x2x16x32xf32>
    %10 = vector.extract_strided_slice %9 {offsets = [0, 0, 0, 0], sizes = [8, 1, 16, 32], strides = [1, 1, 1, 1]} : vector<8x2x16x32xf32> to vector<8x1x16x32xf32>
    %11 = vector.shape_cast %10 : vector<8x1x16x32xf32> to vector<8x16x32xf32>
    %12 = vector.extract_strided_slice %9 {offsets = [0, 1, 0, 0], sizes = [8, 1, 16, 32], strides = [1, 1, 1, 1]} : vector<8x2x16x32xf32> to vector<8x1x16x32xf32>
    %13 = vector.shape_cast %12 : vector<8x1x16x32xf32> to vector<8x16x32xf32>
    %14 = arith.maximumf %11, %13 : vector<8x16x32xf32>
    %15 = vector.shape_cast %14 : vector<8x16x32xf32> to vector<128x32xf32>
    %c0_7 = arith.constant 0 : index
    %c0_8 = arith.constant 0 : index
    %16 = vector.load %arg7[%c0_7, %c0_8] : memref<128x32xf32, #tpu.memory_space<vmem>>, vector<128x32xf32>
    tpu.vector_store %arg7[%c0_7, %c0_8], %15 {strides = array<i32>} : memref<128x32xf32, #tpu.memory_space<vmem>>, vector<128x32xf32>,
    %c0_9 = arith.constant 0 : index
    %c0_10 = arith.constant 0 : index
    %17 = tpu.strided_load %arg7[%c0_9, %c0_10] {strides = array<i32: 2, 1>} : memref<128x32xf32, #tpu.memory_space<vmem>>, vector<64x32xf32>
    %c1 = arith.constant 1 : index
    %c0_11 = arith.constant 0 : index
    %18 = tpu.strided_load %arg7[%c1, %c0_11] {strides = array<i32: 2, 1>} : memref<128x32xf32, #tpu.memory_space<vmem>>, vector<64x32xf32>
    %19 = arith.maximumf %17, %18 : vector<64x32xf32>
    %cst_12 = arith.constant 0.000000e+00 : f32
    %20 = vector.broadcast %cst_12 : f32 to vector<10x10x32xf32>
    %c0_13 = arith.constant 0 : index
    %c0_14 = arith.constant 0 : index
    %c0_15 = arith.constant 0 : index
    %21 = vector.load %arg9[%c0_13, %c0_14, %c0_15] : memref<10x10x32xf32, #tpu.memory_space<vmem>>, vector<10x10x32xf32>
    tpu.vector_store %arg9[%c0_13, %c0_14, %c0_15], %20 {strides = array<i32>} : memref<10x10x32xf32, #tpu.memory_space<vmem>>, vector<10x10x32xf32>,
    %22 = vector.shape_cast %19 : vector<64x32xf32> to vector<8x8x32xf32>
    %c1_16 = arith.constant 1 : index
    %c1_17 = arith.constant 1 : index
    %c0_18 = arith.constant 0 : index
    %23 = vector.load %arg9[%c1_16, %c1_17, %c0_18] : memref<10x10x32xf32, #tpu.memory_space<vmem>>, vector<8x8x32xf32>
    tpu.vector_store %arg9[%c1_16, %c1_17, %c0_18], %22 {strides = array<i32>} : memref<10x10x32xf32, #tpu.memory_space<vmem>>, vector<8x8x32xf32>,
    %c0_19 = arith.constant 0 : index
    %c0_20 = arith.constant 0 : index
    %c0_21 = arith.constant 0 : index
    %24 = vector.load %arg9[%c0_19, %c0_20, %c0_21] : memref<10x10x32xf32, #tpu.memory_space<vmem>>, vector<8x8x32xf32>
    %25 = vector.shape_cast %24 : vector<8x8x32xf32> to vector<64x32xf32>
    %c0_22 = arith.constant 0 : index
    %c1_23 = arith.constant 1 : index
    %c0_24 = arith.constant 0 : index
    %26 = vector.load %arg9[%c0_22, %c1_23, %c0_24] : memref<10x10x32xf32, #tpu.memory_space<vmem>>, vector<8x8x32xf32>
    %27 = vector.shape_cast %26 : vector<8x8x32xf32> to vector<64x32xf32>
    %c0_25 = arith.constant 0 : index
    %c2 = arith.constant 2 : index
    %c0_26 = arith.constant 0 : index
    %28 = vector.load %arg9[%c0_25, %c2, %c0_26] : memref<10x10x32xf32, #tpu.memory_space<vmem>>, vector<8x8x32xf32>
    %29 = vector.shape_cast %28 : vector<8x8x32xf32> to vector<64x32xf32>
    %c1_27 = arith.constant 1 : index
    %c0_28 = arith.constant 0 : index
    %c0_29 = arith.constant 0 : index
    %30 = vector.load %arg9[%c1_27, %c0_28, %c0_29] : memref<10x10x32xf32, #tpu.memory_space<vmem>>, vector<8x8x32xf32>
    %31 = vector.shape_cast %30 : vector<8x8x32xf32> to vector<64x32xf32>
    %c1_30 = arith.constant 1 : index
    %c1_31 = arith.constant 1 : index
    %c0_32 = arith.constant 0 : index
    %32 = vector.load %arg9[%c1_30, %c1_31, %c0_32] : memref<10x10x32xf32, #tpu.memory_space<vmem>>, vector<8x8x32xf32>
    %33 = vector.shape_cast %32 : vector<8x8x32xf32> to vector<64x32xf32>
    %c1_33 = arith.constant 1 : index
    %c2_34 = arith.constant 2 : index
    %c0_35 = arith.constant 0 : index
    %34 = vector.load %arg9[%c1_33, %c2_34, %c0_35] : memref<10x10x32xf32, #tpu.memory_space<vmem>>, vector<8x8x32xf32>
    %35 = vector.shape_cast %34 : vector<8x8x32xf32> to vector<64x32xf32>
    %c2_36 = arith.constant 2 : index
    %c0_37 = arith.constant 0 : index
    %c0_38 = arith.constant 0 : index
    %36 = vector.load %arg9[%c2_36, %c0_37, %c0_38] : memref<10x10x32xf32, #tpu.memory_space<vmem>>, vector<8x8x32xf32>
    %37 = vector.shape_cast %36 : vector<8x8x32xf32> to vector<64x32xf32>
    %c2_39 = arith.constant 2 : index
    %c1_40 = arith.constant 1 : index
    %c0_41 = arith.constant 0 : index
    %38 = vector.load %arg9[%c2_39, %c1_40, %c0_41] : memref<10x10x32xf32, #tpu.memory_space<vmem>>, vector<8x8x32xf32>
    %39 = vector.shape_cast %38 : vector<8x8x32xf32> to vector<64x32xf32>
    %c2_42 = arith.constant 2 : index
    %c2_43 = arith.constant 2 : index
    %c0_44 = arith.constant 0 : index
    %40 = vector.load %arg9[%c2_42, %c2_43, %c0_44] : memref<10x10x32xf32, #tpu.memory_space<vmem>>, vector<8x8x32xf32>
    %41 = vector.shape_cast %40 : vector<8x8x32xf32> to vector<64x32xf32>
    %42 = tpu.concatenate %25, %27, %29, %31, %33, %35, %37, %39, %41 in 1 : vector<64x32xf32>, vector<64x32xf32>, vector<64x32xf32>, vector<64x32xf32>, vector<64x32xf32>, vector<64x32xf32>, vector<64x32xf32>, vector<64x32xf32>, vector<64x32xf32> -> vector<64x288xf32>
    %43 = arith.truncf %42 : vector<64x288xf32> to vector<64x288xbf16>
    %c0_45 = arith.constant 0 : index
    %c0_46 = arith.constant 0 : index
    %44 = vector.load %arg4[%c0_45, %c0_46] : memref<288x64xbf16, #tpu.memory_space<vmem>>, vector<288x64xbf16>
    %cst_47 = arith.constant dense<0.000000e+00> : vector<64x64xf32>
    %45 = tpu.matmul %43, %44, %cst_47 {dimension_numbers = #tpu.dot_dimension_numbers<[1], [0], [0], [1], [0, 0, 1, 1], [], []>} : vector<64x288xbf16>, vector<288x64xbf16>, vector<64x64xf32> -> vector<64x64xf32>
    %c0_48 = arith.constant 0 : index
    %c0_49 = arith.constant 0 : index
    %46 = vector.load %arg5[%c0_48, %c0_49] : memref<1x64xf32, #tpu.memory_space<vmem>>, vector<1x64xf32>
    %47 = vector.broadcast %46 : vector<1x64xf32> to vector<64x64xf32>
    %48 = arith.addf %45, %47 : vector<64x64xf32>
    %cst_50 = arith.constant 0.000000e+00 : f32
    %49 = vector.broadcast %cst_50 : f32 to vector<64x64xf32>
    %50 = arith.maximumf %48, %49 : vector<64x64xf32>
    %51 = vector.shape_cast %50 : vector<64x64xf32> to vector<4x2x8x64xf32>
    %52 = vector.extract_strided_slice %51 {offsets = [0, 0, 0, 0], sizes = [4, 1, 8, 64], strides = [1, 1, 1, 1]} : vector<4x2x8x64xf32> to vector<4x1x8x64xf32>
    %53 = vector.shape_cast %52 : vector<4x1x8x64xf32> to vector<4x8x64xf32>
    %54 = vector.extract_strided_slice %51 {offsets = [0, 1, 0, 0], sizes = [4, 1, 8, 64], strides = [1, 1, 1, 1]} : vector<4x2x8x64xf32> to vector<4x1x8x64xf32>
    %55 = vector.shape_cast %54 : vector<4x1x8x64xf32> to vector<4x8x64xf32>
    %56 = arith.maximumf %53, %55 : vector<4x8x64xf32>
    %57 = vector.shape_cast %56 : vector<4x8x64xf32> to vector<32x64xf32>
    %c0_51 = arith.constant 0 : index
    %c0_52 = arith.constant 0 : index
    %58 = vector.load %arg8[%c0_51, %c0_52] : memref<32x64xf32, #tpu.memory_space<vmem>>, vector<32x64xf32>
    tpu.vector_store %arg8[%c0_51, %c0_52], %57 {strides = array<i32>} : memref<32x64xf32, #tpu.memory_space<vmem>>, vector<32x64xf32>,
    %c0_53 = arith.constant 0 : index
    %c0_54 = arith.constant 0 : index
    %59 = tpu.strided_load %arg8[%c0_53, %c0_54] {strides = array<i32: 2, 1>} : memref<32x64xf32, #tpu.memory_space<vmem>>, vector<16x64xf32>
    %c1_55 = arith.constant 1 : index
    %c0_56 = arith.constant 0 : index
    %60 = tpu.strided_load %arg8[%c1_55, %c0_56] {strides = array<i32: 2, 1>} : memref<32x64xf32, #tpu.memory_space<vmem>>, vector<16x64xf32>
    %61 = arith.maximumf %59, %60 : vector<16x64xf32>
    %62 = arith.truncf %61 : vector<16x64xf32> to vector<16x64xbf16>
    %c0_57 = arith.constant 0 : index
    %c0_58 = arith.constant 0 : index
    %c0_59 = arith.constant 0 : index
    %63 = vector.load %arg6[%c0_57, %c0_58, %c0_59] : memref<1x16x64xbf16, #tpu.memory_space<vmem>>, vector<1x16x64xbf16>
    %64 = vector.shape_cast %63 : vector<1x16x64xbf16> to vector<16x64xbf16>
    %65 = vector.shape_cast %62 : vector<16x64xbf16> to vector<1x16x64xbf16>
    tpu.vector_store %arg6[%c0_57, %c0_58, %c0_59], %65 {strides = array<i32>} : memref<1x16x64xbf16, #tpu.memory_space<vmem>>, vector<1x16x64xbf16>,
    return
  }
  func.func @transform_0(%arg0: i32) -> (i32, i32, i32) {
    %c0_i32 = arith.constant 0 : i32
    %c0_i32_0 = arith.constant 0 : i32
    %c0_i32_1 = arith.constant 0 : i32
    return %arg0, %c0_i32, %c0_i32_0 : i32, i32, i32
  }
  func.func @transform_1(%arg0: i32) -> (i32, i32) {
    %c0_i32 = arith.constant 0 : i32
    %c0_i32_0 = arith.constant 0 : i32
    %c0_i32_1 = arith.constant 0 : i32
    return %c0_i32, %c0_i32_0 : i32, i32
  }
  func.func @transform_2(%arg0: i32) -> (i32, i32) {
    %c0_i32 = arith.constant 0 : i32
    %c0_i32_0 = arith.constant 0 : i32
    %c0_i32_1 = arith.constant 0 : i32
    return %c0_i32, %c0_i32_0 : i32, i32
  }
  func.func @transform_3(%arg0: i32) -> (i32, i32) {
    %c0_i32 = arith.constant 0 : i32
    %c0_i32_0 = arith.constant 0 : i32
    %c0_i32_1 = arith.constant 0 : i32
    return %c0_i32, %c0_i32_0 : i32, i32
  }
  func.func @transform_4(%arg0: i32) -> (i32, i32) {
    %c0_i32 = arith.constant 0 : i32
    %c0_i32_0 = arith.constant 0 : i32
    %c0_i32_1 = arith.constant 0 : i32
    return %c0_i32, %c0_i32_0 : i32, i32
  }
  func.func @transform_5(%arg0: i32) -> (i32, i32, i32) {
    %c0_i32 = arith.constant 0 : i32
    %c0_i32_0 = arith.constant 0 : i32
    %c0_i32_1 = arith.constant 0 : i32
    return %arg0, %c0_i32, %c0_i32_0 : i32, i32, i32
  }
}

module attributes {stable_mosaic.version = 11 : i64} {
  func.func @_fc_stack_kernel(%arg0: memref<2x1024xbf16, #tpu.memory_space<vmem>>, %arg1: memref<1024x512xbf16, #tpu.memory_space<vmem>>, %arg2: memref<1x512xf32, #tpu.memory_space<vmem>>, %arg3: memref<512x256xbf16, #tpu.memory_space<vmem>>, %arg4: memref<1x256xf32, #tpu.memory_space<vmem>>, %arg5: memref<256x24xbf16, #tpu.memory_space<vmem>>, %arg6: memref<1x24xf32, #tpu.memory_space<vmem>>, %arg7: memref<2x24xf32, #tpu.memory_space<vmem>>) attributes {dimension_semantics = [], scalar_prefetch = 0 : i64, scratch_operands = 0 : i64, tpu.core_type = #tpu.core_type<tc>} {
    %c0 = arith.constant 0 : index
    %c0_0 = arith.constant 0 : index
    %0 = vector.load %arg0[%c0, %c0_0] : memref<2x1024xbf16, #tpu.memory_space<vmem>>, vector<2x1024xbf16>
    %c0_1 = arith.constant 0 : index
    %c0_2 = arith.constant 0 : index
    %1 = vector.load %arg1[%c0_1, %c0_2] : memref<1024x512xbf16, #tpu.memory_space<vmem>>, vector<1024x512xbf16>
    %cst = arith.constant dense<0.000000e+00> : vector<2x512xf32>
    %2 = tpu.matmul %0, %1, %cst {dimension_numbers = #tpu.dot_dimension_numbers<[1], [0], [0], [1], [0, 0, 1, 1], [], []>} : vector<2x1024xbf16>, vector<1024x512xbf16>, vector<2x512xf32> -> vector<2x512xf32>
    %c0_3 = arith.constant 0 : index
    %c0_4 = arith.constant 0 : index
    %3 = vector.load %arg2[%c0_3, %c0_4] : memref<1x512xf32, #tpu.memory_space<vmem>>, vector<1x512xf32>
    %4 = vector.broadcast %3 : vector<1x512xf32> to vector<2x512xf32>
    %5 = arith.addf %2, %4 : vector<2x512xf32>
    %cst_5 = arith.constant 0.000000e+00 : f32
    %6 = vector.broadcast %cst_5 : f32 to vector<2x512xf32>
    %7 = arith.maximumf %5, %6 : vector<2x512xf32>
    %8 = arith.truncf %7 : vector<2x512xf32> to vector<2x512xbf16>
    %c0_6 = arith.constant 0 : index
    %c0_7 = arith.constant 0 : index
    %9 = vector.load %arg3[%c0_6, %c0_7] : memref<512x256xbf16, #tpu.memory_space<vmem>>, vector<512x256xbf16>
    %cst_8 = arith.constant dense<0.000000e+00> : vector<2x256xf32>
    %10 = tpu.matmul %8, %9, %cst_8 {dimension_numbers = #tpu.dot_dimension_numbers<[1], [0], [0], [1], [0, 0, 1, 1], [], []>} : vector<2x512xbf16>, vector<512x256xbf16>, vector<2x256xf32> -> vector<2x256xf32>
    %c0_9 = arith.constant 0 : index
    %c0_10 = arith.constant 0 : index
    %11 = vector.load %arg4[%c0_9, %c0_10] : memref<1x256xf32, #tpu.memory_space<vmem>>, vector<1x256xf32>
    %12 = vector.broadcast %11 : vector<1x256xf32> to vector<2x256xf32>
    %13 = arith.addf %10, %12 : vector<2x256xf32>
    %cst_11 = arith.constant 0.000000e+00 : f32
    %14 = vector.broadcast %cst_11 : f32 to vector<2x256xf32>
    %15 = arith.maximumf %13, %14 : vector<2x256xf32>
    %16 = arith.truncf %15 : vector<2x256xf32> to vector<2x256xbf16>
    %c0_12 = arith.constant 0 : index
    %c0_13 = arith.constant 0 : index
    %17 = vector.load %arg5[%c0_12, %c0_13] : memref<256x24xbf16, #tpu.memory_space<vmem>>, vector<256x24xbf16>
    %cst_14 = arith.constant dense<0.000000e+00> : vector<2x24xf32>
    %18 = tpu.matmul %16, %17, %cst_14 {dimension_numbers = #tpu.dot_dimension_numbers<[1], [0], [0], [1], [0, 0, 1, 1], [], []>} : vector<2x256xbf16>, vector<256x24xbf16>, vector<2x24xf32> -> vector<2x24xf32>
    %c0_15 = arith.constant 0 : index
    %c0_16 = arith.constant 0 : index
    %19 = vector.load %arg6[%c0_15, %c0_16] : memref<1x24xf32, #tpu.memory_space<vmem>>, vector<1x24xf32>
    %20 = vector.broadcast %19 : vector<1x24xf32> to vector<2x24xf32>
    %21 = arith.addf %18, %20 : vector<2x24xf32>
    %c0_17 = arith.constant 0 : index
    %c0_18 = arith.constant 0 : index
    %22 = vector.load %arg7[%c0_17, %c0_18] : memref<2x24xf32, #tpu.memory_space<vmem>>, vector<2x24xf32>
    tpu.vector_store %arg7[%c0_17, %c0_18], %21 {strides = array<i32>} : memref<2x24xf32, #tpu.memory_space<vmem>>, vector<2x24xf32>,
    return
  }
}

</mosaic_0001>

<llo_original>
// kernel: cnn_forward.2
$region0: #{cnn_forward.2}
  #allocation0 [shape = 'u32[]', space=smem, size = 0x4, offset = 0x4, fixed_abs, tag = 'smem constant byte address 0x4 - core index']
  #allocation1 [shape = 'u32[144,128]{1,0:T(1,128)}', space=vmem, size = 0x12000, scoped, tag = 'internal scratch']
  #allocation2 [shape = 'f32[128,32]{1,0:T(8,128)}', space=vmem, size = 0x10000, scoped, tag = 'scratch operand']
  #allocation3 [shape = 'f32[32,64]{1,0:T(8,128)}', space=vmem, size = 0x4000, scoped, tag = 'scratch operand']
  #allocation4 [shape = 'f32[10,10,32]{2,1,0:T(8,128)}', space=vmem, size = 0x14000, scoped, tag = 'scratch operand']
  %s0 = inlined_call_operand.vmem [shape: bf16[2,256,27], index: 0, kind: input, shape index: {}]
  %s1 = inlined_call_operand.hbm [shape: bf16[27,32], index: 1, kind: input, shape index: {}]
  %s2 = inlined_call_operand.hbm [shape: f32[1,32], index: 2, kind: input, shape index: {}]
  %s3 = inlined_call_operand.vmem [shape: bf16[288,64], index: 3, kind: input, shape index: {}]
  %s4 = inlined_call_operand.hbm [shape: f32[1,64], index: 4, kind: input, shape index: {}]
  %s5 = inlined_call_operand.vmem [shape: bf16[2,16,64], index: 5, kind: output, shape index: {}]
  %s6 = sld [smem:[#allocation0]]
  $region65: #{cnn_forward.2} parent=0
    _
  %s8 = ssub.s32 1, %s6
  %s9 = scalar_select 0, %s8, %s6
  $region1: #{cnn_forward.2} parent=0
    #allocation5 [shape = 'u8[8192]{0}', space=vmem, size = 0x2000, scoped, tag = 'input window, operand 1, single buffered']
    #allocation6 [shape = 's32[2]{0}', space=sflag, size = 0x8, scoped, tag = 'scoped memory for cnn_forward.2']
    #allocation7 [shape = 'u8[512]{0}', space=vmem, size = 0x400, scoped, tag = 'input window, operand 2, single buffered']
    #allocation8 [shape = 's32[1]{0}', space=sflag, size = 0x4, scoped, tag = 'scoped memory for cnn_forward.2']
    #allocation9 [shape = 'u8[512]{0}', space=vmem, size = 0x400, scoped, tag = 'input window, operand 4, single buffered']
    %10 = vsyncpa [#allocation6], 0
    %11 = vsyncpa [#allocation8], 0
    loop: start=0, step=1, limit=4
    $region2: #{cnn_forward.2} parent=1 // loop_pre_header
      _
    $region3: #{cnn_forward.2} parent=1 // loop_header
      %s13 = sphi 0, %s17
      %p14 = scmp.ge.s32.totalorder %s13, 4
      %s23 = sphi 0, %s25
      %s26 = sphi 0, %s23
      %s27 = sphi 0, %s26
      %s43 = sphi 0, %s27
      %s47 = sphi 0, %s47
      %s49 = sphi 0, %s47
      %s50 = sphi 0, %s49
      %s64 = sphi 0, %s50
      %s68 = sphi 0, %s68
      %s70 = sphi 0, %s68
      %s71 = sphi 0, %s70
      %s85 = sphi 0, %s71
      %s89 = sphi 0, %s89
      %s91 = sphi 0, %s89
      %s92 = sphi 0, %s91
      %s106 = sphi 0, %s92
      %s110 = sphi 0, %s110
      %s112 = sphi 0, %s110
      %s113 = sphi 0, %s112
      %s127 = sphi 0, %s113
      %s133 = sphi 0, %s135
      %s136 = sphi 0, %s133
      %s137 = sphi 0, %s136
      %s153 = sphi 0, %s137
    $region4: #{cnn_forward.2} parent=1 // loop_header_branch
      %16 = sbr.rel (%p14) target = $region8
    $region5: #{cnn_forward.2} parent=1 // loop_body
      %s18 = ssub.s32 %s13, 1
      %s19 = ssub.s32 %s13, 2
      %s20 = sadd.s32 %s13, 1
      %s21 = ssub.s32 %s13, %s20
      %p22 = scmp.eq.s32.totalorder %s21, 0
      %s24 = sadd.s32 %s23, 1
      %s25 = scalar_select %p22, %s23, %s24
      %p28 = pneg %p22
      %p29 = scmp.eq.s32.totalorder %s13, 1
      %p30 = por %p28, %p29
      %p31 = scmp.ne.s32.totalorder %s23, %s26
      %p32 = scmp.eq.s32.totalorder %s13, 0
      %p33 = por %p31, %p32
      %p34 = scmp.ne.s32.totalorder %s23, %s26
      %p35 = scmp.eq.s32.totalorder %s18, 1
      %p36 = por %p34, %p35
      %p37 = scmp.ne.s32.totalorder %s26, %s27
      %p38 = scmp.eq.s32.totalorder %s18, 0
      %p39 = por %p37, %p38
      %p40 = scmp.ne.s32.totalorder %s26, %s27
      %p41 = scmp.eq.s32.totalorder %s19, 1
      %p42 = por %p40, %p41
      %p44 = scmp.ne.s32.totalorder %s27, %s43
      %p45 = scmp.eq.s32.totalorder %s19, 0
      %p46 = por %p44, %p45
      %s48 = sadd.s32 %s47, 1
      %p51 = scmp.eq.s32.totalorder %s13, 1
      %p52 = scmp.ne.s32.totalorder %s47, %s49
      %p53 = scmp.eq.s32.totalorder %s13, 0
      %p54 = por %p52, %p53
      %p55 = scmp.ne.s32.totalorder %s47, %s49
      %p56 = scmp.eq.s32.totalorder %s18, 1
      %p57 = por %p55, %p56
      %p58 = scmp.ne.s32.totalorder %s49, %s50
      %p59 = scmp.eq.s32.totalorder %s18, 0
      %p60 = por %p58, %p59
      %p61 = scmp.ne.s32.totalorder %s49, %s50
      %p62 = scmp.eq.s32.totalorder %s19, 1
      %p63 = por %p61, %p62
      %p65 = scmp.ne.s32.totalorder %s50, %s64
      %p66 = scmp.eq.s32.totalorder %s19, 0
      %p67 = por %p65, %p66
      %s69 = sadd.s32 %s68, 1
      %p72 = scmp.eq.s32.totalorder %s13, 1
      %p73 = scmp.ne.s32.totalorder %s68, %s70
      %p74 = scmp.eq.s32.totalorder %s13, 0
      %p75 = por %p73, %p74
      %p76 = scmp.ne.s32.totalorder %s68, %s70
      %p77 = scmp.eq.s32.totalorder %s18, 1
      %p78 = por %p76, %p77
      %p79 = scmp.ne.s32.totalorder %s70, %s71
      %p80 = scmp.eq.s32.totalorder %s18, 0
      %p81 = por %p79, %p80
      %p82 = scmp.ne.s32.totalorder %s70, %s71
      %p83 = scmp.eq.s32.totalorder %s19, 1
      %p84 = por %p82, %p83
      %p86 = scmp.ne.s32.totalorder %s71, %s85
      %p87 = scmp.eq.s32.totalorder %s19, 0
      %p88 = por %p86, %p87
      %s90 = sadd.s32 %s89, 1
      %p93 = scmp.eq.s32.totalorder %s13, 1
      %p94 = scmp.ne.s32.totalorder %s89, %s91
      %p95 = scmp.eq.s32.totalorder %s13, 0
      %p96 = por %p94, %p95
      %p97 = scmp.ne.s32.totalorder %s89, %s91
      %p98 = scmp.eq.s32.totalorder %s18, 1
      %p99 = por %p97, %p98
      %p100 = scmp.ne.s32.totalorder %s91, %s92
      %p101 = scmp.eq.s32.totalorder %s18, 0
      %p102 = por %p100, %p101
      %p103 = scmp.ne.s32.totalorder %s91, %s92
      %p104 = scmp.eq.s32.totalorder %s19, 1
      %p105 = por %p103, %p104
      %p107 = scmp.ne.s32.totalorder %s92, %s106
      %p108 = scmp.eq.s32.totalorder %s19, 0
      %p109 = por %p107, %p108
      %s111 = sadd.s32 %s110, 1
      %p114 = scmp.eq.s32.totalorder %s13, 1
      %p115 = scmp.ne.s32.totalorder %s110, %s112
      %p116 = scmp.eq.s32.totalorder %s13, 0
      %p117 = por %p115, %p116
      %p118 = scmp.ne.s32.totalorder %s110, %s112
      %p119 = scmp.eq.s32.totalorder %s18, 1
      %p120 = por %p118, %p119
      %p121 = scmp.ne.s32.totalorder %s112, %s113
      %p122 = scmp.eq.s32.totalorder %s18, 0
      %p123 = por %p121, %p122
      %p124 = scmp.ne.s32.totalorder %s112, %s113
      %p125 = scmp.eq.s32.totalorder %s19, 1
      %p126 = por %p124, %p125
      %p128 = scmp.ne.s32.totalorder %s113, %s127
      %p129 = scmp.eq.s32.totalorder %s19, 0
      %p130 = por %p128, %p129
      %s131 = ssub.s32 %s13, %s20
      %p132 = scmp.eq.s32.totalorder %s131, 0
      %s134 = sadd.s32 %s133, 1
      %s135 = scalar_select %p132, %s133, %s134
      %p138 = pneg %p132
      %p139 = scmp.eq.s32.totalorder %s13, 1
      %p140 = por %p138, %p139
      %p141 = scmp.ne.s32.totalorder %s133, %s136
      %p142 = scmp.eq.s32.totalorder %s13, 0
      %p143 = por %p141, %p142
      %p144 = scmp.ne.s32.totalorder %s133, %s136
      %p145 = scmp.eq.s32.totalorder %s18, 1
      %p146 = por %p144, %p145
      %p147 = scmp.ne.s32.totalorder %s136, %s137
      %p148 = scmp.eq.s32.totalorder %s18, 0
      %p149 = por %p147, %p148
      %p150 = scmp.ne.s32.totalorder %s136, %s137
      %p151 = scmp.eq.s32.totalorder %s19, 1
      %p152 = por %p150, %p151
      %p154 = scmp.ne.s32.totalorder %s137, %s153
      %p155 = scmp.eq.s32.totalorder %s19, 0
      %p156 = por %p154, %p155
      %p157 = scmp.le.s32.totalorder 1, %s13
      %p158 = scmp.lt.s32.totalorder %s13, 3
      %p159 = pnand %p157, %p158
      %p160 = pneg %p159
      // Predicated region
      $region9: #{cnn_forward.2} parent=5 // pred_check
        _
      $region10: #{cnn_forward.2} parent=5 // pred_check_branch
        %162 = sbr.rel (%p159) target = $region12
      $region11: #{cnn_forward.2} parent=5 // pred_region
        %s163 = ssub.s32 %s13, 1
        // Predicated region
        $region13: #{cnn_forward.2} parent=11 // pred_check
          %p164 = pneg %p60
        $region14: #{cnn_forward.2} parent=11 // pred_check_branch
          %166 = sbr.rel (%p164) target = $region16
        $region15: #{cnn_forward.2} parent=11 // pred_region
          %s168 = ssub.s32 256, 256
          %169 = vsyncadd [#allocation6], %s168
          %s170 = sshll.u32 [#allocation5], 4
          %s171 = int_to_ptr.vmem [resolvable:$true] %s170
          %176 = dma.hbm_to_vmem [thread:$0]  %s1, 256, %s171, [#allocation6], 64, 64, 4
        $region16: #{cnn_forward.2} parent=11 // pred_fallthru
          _
        // Predicated region
        $region17: #{cnn_forward.2} parent=11 // pred_check
          %p177 = pneg %p81
        $region18: #{cnn_forward.2} parent=11 // pred_check_branch
          %179 = sbr.rel (%p177) target = $region20
        $region19: #{cnn_forward.2} parent=11 // pred_region
          %s181 = ssub.s32 16, 16
          %182 = vsyncadd [#allocation8], %s181
          %s184 = sshll.u32 [#allocation7], 4
          %s185 = int_to_ptr.vmem [resolvable:$true] %s184
          %187 = dma.hbm_to_vmem [thread:$0]  %s2, 16, %s185, [#allocation8]
        $region20: #{cnn_forward.2} parent=11 // pred_fallthru
          _
        // Predicated region
        $region21: #{cnn_forward.2} parent=11 // pred_check
          %p188 = pneg %p102
        $region22: #{cnn_forward.2} parent=11 // pred_check_branch
          %190 = sbr.rel (%p188) target = $region24
        $region23: #{cnn_forward.2} parent=11 // pred_region
          _
        $region24: #{cnn_forward.2} parent=11 // pred_fallthru
          _
        // Predicated region
        $region25: #{cnn_forward.2} parent=11 // pred_check
          %p191 = pneg %p123
        $region26: #{cnn_forward.2} parent=11 // pred_check_branch
          %193 = sbr.rel (%p191) target = $region28
        $region27: #{cnn_forward.2} parent=11 // pred_region
          %s195 = ssub.s32 16, 16
          %196 = vsyncadd [#allocation8], %s195
          %s198 = sshll.u32 [#allocation9], 4
          %s199 = int_to_ptr.vmem [resolvable:$true] %s198
          %201 = dma.hbm_to_vmem [thread:$0]  %s4, 16, %s199, [#allocation8]
        $region28: #{cnn_forward.2} parent=11 // pred_fallthru
          _
      $region12: #{cnn_forward.2} parent=5 // pred_fallthru
        _
      %p202 = scmp.lt.s32.totalorder %s13, 2
      // Predicated region
      $region29: #{cnn_forward.2} parent=5 // pred_check
        %p203 = pneg %p202
      $region30: #{cnn_forward.2} parent=5 // pred_check_branch
        %205 = sbr.rel (%p203) target = $region32
      $region31: #{cnn_forward.2} parent=5 // pred_region
        // Predicated region
        $region33: #{cnn_forward.2} parent=31 // pred_check
          %p206 = pneg %p33
        $region34: #{cnn_forward.2} parent=31 // pred_check_branch
          %208 = sbr.rel (%p206) target = $region36
        $region35: #{cnn_forward.2} parent=31 // pred_region
          %p209 = scmp.lt.s32.totalorder %s13, 1
          %s210 = scalar_select %p209, %s13, 1
          %s211 = smul.addr %s210, 32
          %s212 = smul.addr %s211, 4
          %s213 = scalar_lea.vmem %s0, %s212
        $region36: #{cnn_forward.2} parent=31 // pred_fallthru
          _
      $region32: #{cnn_forward.2} parent=5 // pred_fallthru
        _
      %p214 = scmp.le.s32.totalorder 1, %s13
      %p215 = scmp.lt.s32.totalorder %s13, 3
      %p216 = pnand %p214, %p215
      %p217 = pneg %p216
      // Predicated region
      $region37: #{cnn_forward.2} parent=5 // pred_check
        _
      $region38: #{cnn_forward.2} parent=5 // pred_check_branch
        %219 = sbr.rel (%p216) target = $region40
      $region39: #{cnn_forward.2} parent=5 // pred_region
        %s220 = ssub.s32 %s13, 1
        // Predicated region
        $region41: #{cnn_forward.2} parent=39 // pred_check
          %p221 = pneg %p60
        $region42: #{cnn_forward.2} parent=39 // pred_check_branch
          %223 = sbr.rel (%p221) target = $region44
        $region43: #{cnn_forward.2} parent=39 // pred_region
          %224 = dma.done [#allocation6], 256
        $region44: #{cnn_forward.2} parent=39 // pred_fallthru
          _
        // Predicated region
        $region45: #{cnn_forward.2} parent=39 // pred_check
          %p225 = pneg %p81
        $region46: #{cnn_forward.2} parent=39 // pred_check_branch
          %227 = sbr.rel (%p225) target = $region48
        $region47: #{cnn_forward.2} parent=39 // pred_region
          %228 = dma.done [#allocation8], 16
        $region48: #{cnn_forward.2} parent=39 // pred_fallthru
          _
        // Predicated region
        $region49: #{cnn_forward.2} parent=39 // pred_check
          %p229 = pneg %p123
        $region50: #{cnn_forward.2} parent=39 // pred_check_branch
          %231 = sbr.rel (%p229) target = $region52
        $region51: #{cnn_forward.2} parent=39 // pred_region
          %232 = dma.done [#allocation8], 16
        $region52: #{cnn_forward.2} parent=39 // pred_fallthru
          _
        %p233 = scmp.lt.s32.totalorder %s18, 1
        %s234 = scalar_select %p233, %s18, 1
        %s235 = smul.addr %s234, 32
        %s236 = smul.addr %s235, 4
        %s237 = scalar_lea.vmem %s0, %s236
        %p238 = pneg %p39
        %p239 = pneg %p36
        %p240 = pneg %p60
        %p241 = pneg %p57
        %p242 = pneg %p81
        %p243 = pneg %p78
        %p244 = pneg %p102
        %p245 = pneg %p99
        %p246 = pneg %p123
        %p247 = pneg %p120
        %p248 = pneg %p149
        %p249 = pneg %p146
        %p250 = scmp.lt.s32.totalorder %s18, 1
        %s251 = scalar_select %p250, %s18, 1
        %s252 = smul.addr %s251, 2
        %s253 = smul.addr %s252, 4
        %s254 = scalar_lea.vmem %s5, %s253
        %p255 = scmp.lt.s32.totalorder %s18, 1
        %s256 = scalar_select %p255, %s18, 1
        %s257 = smul.addr %s256, 32
        %s258 = smul.addr %s257, 4
        %s259 = scalar_lea.vmem %s0, %s258
        %p260 = scmp.lt.s32.totalorder %s18, 1
        %s261 = scalar_select %p260, %s18, 1
        %s262 = smul.addr %s261, 2
        %s263 = smul.addr %s262, 4
        %s264 = scalar_lea.vmem %s5, %s263
        %v266 = vld [vmem:[%s259] sm:$0xf]
        %v267 = vld [vmem:[%s259 + $0x4] sm:$0xf]
        %v268 = vld [vmem:[%s259 + $0x8] sm:$0xf]
        %v269 = vld [vmem:[%s259 + $0xc] sm:$0xf]
        %v270 = vld [vmem:[%s259 + $0x10] sm:$0xf]
        %v271 = vld [vmem:[%s259 + $0x14] sm:$0xf]
        %v272 = vld [vmem:[%s259 + $0x18] sm:$0xf]
        %v273 = vld [vmem:[%s259 + $0x1c] sm:$0xf]
        %v274 = vld [vmem:[%s259 + $0x20] sm:$0xf]
        %v275 = vld [vmem:[%s259 + $0x24] sm:$0xf]
        %v276 = vld [vmem:[%s259 + $0x28] sm:$0xf]
        %v277 = vld [vmem:[%s259 + $0x2c] sm:$0xf]
        %v278 = vld [vmem:[%s259 + $0x30] sm:$0xf]
        %v279 = vld [vmem:[%s259 + $0x34] sm:$0xf]
        %v280 = vld [vmem:[%s259 + $0x38] sm:$0xf]
        %v281 = vld [vmem:[%s259 + $0x3c] sm:$0xf]
        %v282 = vld [vmem:[%s259 + $0x40] sm:$0xf]
        %v283 = vld [vmem:[%s259 + $0x44] sm:$0xf]
        %v284 = vld [vmem:[%s259 + $0x48] sm:$0xf]
        %v285 = vld [vmem:[%s259 + $0x4c] sm:$0xf]
        %v286 = vld [vmem:[%s259 + $0x50] sm:$0xf]
        %v287 = vld [vmem:[%s259 + $0x54] sm:$0xf]
        %v288 = vld [vmem:[%s259 + $0x58] sm:$0xf]
        %v289 = vld [vmem:[%s259 + $0x5c] sm:$0xf]
        %v290 = vld [vmem:[%s259 + $0x60] sm:$0xf]
        %v291 = vld [vmem:[%s259 + $0x64] sm:$0xf]
        %v292 = vld [vmem:[%s259 + $0x68] sm:$0xf]
        %v293 = vld [vmem:[%s259 + $0x6c] sm:$0xf]
        %v294 = vld [vmem:[%s259 + $0x70] sm:$0xf]
        %v295 = vld [vmem:[%s259 + $0x74] sm:$0xf]
        %v296 = vld [vmem:[%s259 + $0x78] sm:$0xf]
        %v297 = vld [vmem:[%s259 + $0x7c] sm:$0xf]
        %v298 = vld [vmem:[#allocation5] sm:$0xf]
        %v299 = vld [vmem:[#allocation5 + $0x4] sm:$0xf]
        %v300 = vld [vmem:[#allocation5 + $0x8] sm:$0xf]
        %v301 = vld [vmem:[#allocation5 + $0xc] sm:$0x3]
        %v302 = vld [vmem:[#allocation7] sm:$0x1]
        %v304 = vlaneseq
        %v305 = vshrl.u32 %v304, 7
        %v306 = vsub.s32 0, %v305
        %v307 = vrot.slane %v302, %v306
        %v341 = vunpack.c.l.b16 %v266
        %v342 = vunpack.c.l.b16 %v267
        %v343 = vunpack.c.l.b16 %v268
        %v344 = vunpack.c.l.b16 %v269
        %v345 = vunpack.c.l.b16 %v270
        %v346 = vunpack.c.l.b16 %v271
        %v347 = vunpack.c.l.b16 %v272
        %v348 = vunpack.c.l.b16 %v273
        %v349 = vunpack.c.l.b16 %v274
        %v350 = vunpack.c.l.b16 %v275
        %v351 = vunpack.c.l.b16 %v276
        %v352 = vunpack.c.l.b16 %v277
        %v353 = vunpack.c.l.b16 %v278
        %v354 = vunpack.c.l.b16 %v279
        %v355 = vunpack.c.l.b16 %v280
        %v356 = vunpack.c.l.b16 %v281
        %v357 = vunpack.c.l.b16 %v282
        %v358 = vunpack.c.l.b16 %v283
        %v359 = vunpack.c.l.b16 %v284
        %v360 = vunpack.c.l.b16 %v285
        %v361 = vunpack.c.l.b16 %v286
        %v362 = vunpack.c.l.b16 %v287
        %v363 = vunpack.c.l.b16 %v288
        %v364 = vunpack.c.l.b16 %v289
        %v365 = vunpack.c.l.b16 %v290
        %v366 = vunpack.c.l.b16 %v291
        %v367 = vunpack.c.l.b16 %v292
        %v368 = vunpack.c.l.b16 %v293
        %v369 = vunpack.c.l.b16 %v294
        %v370 = vunpack.c.l.b16 %v295
        %v371 = vunpack.c.l.b16 %v296
        %v372 = vunpack.c.l.b16 %v297
        %v373 = vpack.c.b16 %v342, %v341
        %v374 = vpack.c.b16 %v344, %v343
        %v375 = vpack.c.b16 %v346, %v345
        %v376 = vpack.c.b16 %v348, %v347
        %v377 = vpack.c.b16 %v350, %v349
        %v378 = vpack.c.b16 %v352, %v351
        %v379 = vpack.c.b16 %v354, %v353
        %v380 = vpack.c.b16 %v356, %v355
        %v381 = vpack.c.b16 %v358, %v357
        %v382 = vpack.c.b16 %v360, %v359
        %v383 = vpack.c.b16 %v362, %v361
        %v384 = vpack.c.b16 %v364, %v363
        %v385 = vpack.c.b16 %v366, %v365
        %v386 = vpack.c.b16 %v368, %v367
        %v387 = vpack.c.b16 %v370, %v369
        %v388 = vpack.c.b16 %v372, %v371
        %v393 = vunpack.c.l.b16 %v298
        %v394 = vunpack.c.l.b16 %v299
        %v395 = vunpack.c.l.b16 %v300
        %v396 = vunpack.c.l.b16 %v301
        %v397 = vpack.c.b16 %v394, %v393
        %v398 = vpack.c.b16 %v396, %v395
        %vm400 = vcmask 220160
        %v402 = vsel %vm400, %v373, 0
        %v405 = vsel %vm400, %v374, 0
        %v408 = vsel %vm400, %v375, 0
        %v411 = vsel %vm400, %v376, 0
        %v414 = vsel %vm400, %v377, 0
        %v417 = vsel %vm400, %v378, 0
        %v420 = vsel %vm400, %v379, 0
        %v423 = vsel %vm400, %v380, 0
        %v426 = vsel %vm400, %v381, 0
        %v429 = vsel %vm400, %v382, 0
        %v432 = vsel %vm400, %v383, 0
        %v435 = vsel %vm400, %v384, 0
        %v438 = vsel %vm400, %v385, 0
        %v441 = vsel %vm400, %v386, 0
        %v444 = vsel %vm400, %v387, 0
        %v447 = vsel %vm400, %v388, 0
        %vm449 = vcmask 1044480
        %vm450 = vcmask 1045504
        %v451 = vsel %vm449, 4294967295, 65535
        %v452 = vsel %vm450, %v451, 0
        %v454 = vand.u32 %v398, %v452
        %456 = vmatprep.subr.bf16.mxu0 0
        %457 = vmatpush1.bf16.msra.mxu0 %v397
        %458 = vmatprep.subr.bf16.mxu0 0
        %459 = vmatpush1.bf16.msra.mxu0 %v454
        %460 = vmatprep.subr.bf16.mxu0 0
        %461 = vmatpush1.bf16.msra.mxu0 0
        %462 = vmatprep.subr.bf16.mxu0 0
        %463 = vmatpush1.bf16.msra.mxu0 0
        %464 = vmatprep.subr.bf16.mxu0 0
        %465 = vmatpush1.bf16.msra.mxu0 0
        %466 = vmatprep.subr.bf16.mxu0 0
        %467 = vmatpush1.bf16.msra.mxu0 0
        %468 = vmatprep.subr.bf16.mxu0 0
        %469 = vmatpush1.bf16.msra.mxu0 0
        %470 = vmatprep.subr.bf16.mxu0 0
        %471 = vmatpush1.bf16.msra.mxu0 0
        %472 = vmatprep.subr.bf16.mxu0 0
        %473 = vmatpush1.bf16.msra.mxu0 0
        %474 = vmatprep.subr.bf16.mxu0 0
        %475 = vmatpush1.bf16.msra.mxu0 0
        %476 = vmatprep.subr.bf16.mxu0 0
        %477 = vmatpush1.bf16.msra.mxu0 0
        %478 = vmatprep.subr.bf16.mxu0 0
        %479 = vmatpush1.bf16.msra.mxu0 0
        %480 = vmatprep.subr.bf16.mxu0 0
        %481 = vmatpush1.bf16.msra.mxu0 0
        %482 = vmatprep.subr.bf16.mxu0 0
        %483 = vmatpush1.bf16.msra.mxu0 0
        %484 = vmatprep.subr.bf16.mxu0 0
        %485 = vmatpush1.bf16.msra.mxu0 0
        %486 = vmatprep.subr.bf16.mxu0 0
        %487 = vmatpush1.bf16.msra.mxu0 0
        %488 = vmatprep.mubr.bf16.mxu0 0
        %489 = vmatmul.mubr.bf16.gmra.mrb[0].mxu0 %v402
        %v490 = vpop.f32.mrb[0].mxu0
        %v491 = vadd.f32 %v307, %v490
        %v492 = vpop.f32.mrb[0].mxu0
        %v493 = vpop.f32.mrb[0].mxu0
        %v494 = vadd.f32 %v307, %v493
        %v495 = vpop.f32.mrb[0].mxu0
        %496 = vmatprep.mubr.bf16.mxu0 0
        %497 = vmatmul.mubr.bf16.gmra.mrb[0].mxu0 %v405
        %v498 = vpop.f32.mrb[0].mxu0
        %v499 = vadd.f32 %v307, %v498
        %v500 = vpop.f32.mrb[0].mxu0
        %v501 = vpop.f32.mrb[0].mxu0
        %v502 = vadd.f32 %v307, %v501
        %v503 = vpop.f32.mrb[0].mxu0
        %504 = vmatprep.mubr.bf16.mxu0 0
        %505 = vmatmul.mubr.bf16.gmra.mrb[0].mxu0 %v408
        %v506 = vpop.f32.mrb[0].mxu0
        %v507 = vadd.f32 %v307, %v506
        %v508 = vpop.f32.mrb[0].mxu0
        %v509 = vpop.f32.mrb[0].mxu0
        %v510 = vadd.f32 %v307, %v509
        %v511 = vpop.f32.mrb[0].mxu0
        %512 = vmatprep.mubr.bf16.mxu0 0
        %513 = vmatmul.mubr.bf16.gmra.mrb[0].mxu0 %v411
        %v514 = vpop.f32.mrb[0].mxu0
        %v515 = vadd.f32 %v307, %v514
        %v516 = vpop.f32.mrb[0].mxu0
        %v517 = vpop.f32.mrb[0].mxu0
        %v518 = vadd.f32 %v307, %v517
        %v519 = vpop.f32.mrb[0].mxu0
        %520 = vmatprep.mubr.bf16.mxu0 0
        %521 = vmatmul.mubr.bf16.gmra.mrb[0].mxu0 %v414
        %v522 = vpop.f32.mrb[0].mxu0
        %v523 = vadd.f32 %v307, %v522
        %v524 = vpop.f32.mrb[0].mxu0
        %v525 = vpop.f32.mrb[0].mxu0
        %v526 = vadd.f32 %v307, %v525
        %v527 = vpop.f32.mrb[0].mxu0
        %528 = vmatprep.mubr.bf16.mxu0 0
        %529 = vmatmul.mubr.bf16.gmra.mrb[0].mxu0 %v417
        %v530 = vpop.f32.mrb[0].mxu0
        %v531 = vadd.f32 %v307, %v530
        %v532 = vpop.f32.mrb[0].mxu0
        %v533 = vpop.f32.mrb[0].mxu0
        %v534 = vadd.f32 %v307, %v533
        %v535 = vpop.f32.mrb[0].mxu0
        %536 = vmatprep.mubr.bf16.mxu0 0
        %537 = vmatmul.mubr.bf16.gmra.mrb[0].mxu0 %v420
        %v538 = vpop.f32.mrb[0].mxu0
        %v539 = vadd.f32 %v307, %v538
        %v540 = vpop.f32.mrb[0].mxu0
        %v541 = vpop.f32.mrb[0].mxu0
        %v542 = vadd.f32 %v307, %v541
        %v543 = vpop.f32.mrb[0].mxu0
        %544 = vmatprep.mubr.bf16.mxu0 0
        %545 = vmatmul.mubr.bf16.gmra.mrb[0].mxu0 %v423
        %v546 = vpop.f32.mrb[0].mxu0
        %v547 = vadd.f32 %v307, %v546
        %v548 = vpop.f32.mrb[0].mxu0
        %v549 = vpop.f32.mrb[0].mxu0
        %v550 = vadd.f32 %v307, %v549
        %v551 = vpop.f32.mrb[0].mxu0
        %552 = vmatprep.mubr.bf16.mxu0 0
        %553 = vmatmul.mubr.bf16.gmra.mrb[0].mxu0 %v426
        %v554 = vpop.f32.mrb[0].mxu0
        %v555 = vadd.f32 %v307, %v554
        %v556 = vpop.f32.mrb[0].mxu0
        %v557 = vpop.f32.mrb[0].mxu0
        %v558 = vadd.f32 %v307, %v557
        %v559 = vpop.f32.mrb[0].mxu0
        %560 = vmatprep.mubr.bf16.mxu0 0
        %561 = vmatmul.mubr.bf16.gmra.mrb[0].mxu0 %v429
        %v562 = vpop.f32.mrb[0].mxu0
        %v563 = vadd.f32 %v307, %v562
        %v564 = vpop.f32.mrb[0].mxu0
        %v565 = vpop.f32.mrb[0].mxu0
        %v566 = vadd.f32 %v307, %v565
        %v567 = vpop.f32.mrb[0].mxu0
        %568 = vmatprep.mubr.bf16.mxu0 0
        %569 = vmatmul.mubr.bf16.gmra.mrb[0].mxu0 %v432
        %v570 = vpop.f32.mrb[0].mxu0
        %v571 = vadd.f32 %v307, %v570
        %v572 = vpop.f32.mrb[0].mxu0
        %v573 = vpop.f32.mrb[0].mxu0
        %v574 = vadd.f32 %v307, %v573
        %v575 = vpop.f32.mrb[0].mxu0
        %576 = vmatprep.mubr.bf16.mxu0 0
        %577 = vmatmul.mubr.bf16.gmra.mrb[0].mxu0 %v435
        %v578 = vpop.f32.mrb[0].mxu0
        %v579 = vadd.f32 %v307, %v578
        %v580 = vpop.f32.mrb[0].mxu0
        %v581 = vpop.f32.mrb[0].mxu0
        %v582 = vadd.f32 %v307, %v581
        %v583 = vpop.f32.mrb[0].mxu0
        %584 = vmatprep.mubr.bf16.mxu0 0
        %585 = vmatmul.mubr.bf16.gmra.mrb[0].mxu0 %v438
        %v586 = vpop.f32.mrb[0].mxu0
        %v587 = vadd.f32 %v307, %v586
        %v588 = vpop.f32.mrb[0].mxu0
        %v589 = vpop.f32.mrb[0].mxu0
        %v590 = vadd.f32 %v307, %v589
        %v591 = vpop.f32.mrb[0].mxu0
        %592 = vmatprep.mubr.bf16.mxu0 0
        %593 = vmatmul.mubr.bf16.gmra.mrb[0].mxu0 %v441
        %v594 = vpop.f32.mrb[0].mxu0
        %v595 = vadd.f32 %v307, %v594
        %v596 = vpop.f32.mrb[0].mxu0
        %v597 = vpop.f32.mrb[0].mxu0
        %v598 = vadd.f32 %v307, %v597
        %v599 = vpop.f32.mrb[0].mxu0
        %600 = vmatprep.mubr.bf16.mxu0 0
        %601 = vmatmul.mubr.bf16.gmra.mrb[0].mxu0 %v444
        %v602 = vpop.f32.mrb[0].mxu0
        %v603 = vadd.f32 %v307, %v602
        %v604 = vpop.f32.mrb[0].mxu0
        %v605 = vpop.f32.mrb[0].mxu0
        %v606 = vadd.f32 %v307, %v605
        %v607 = vpop.f32.mrb[0].mxu0
        %608 = vmatprep.mubr.bf16.mxu0 0
        %609 = vmatmul.mubr.bf16.gmra.mrb[0].mxu0 %v447
        %v610 = vpop.f32.mrb[0].mxu0
        %v611 = vadd.f32 %v307, %v610
        %v612 = vpop.f32.mrb[0].mxu0
        %v613 = vpop.f32.mrb[0].mxu0
        %v614 = vadd.f32 %v307, %v613
        %v615 = vpop.f32.mrb[0].mxu0
        %616 = vdwg.mxu0
        %v617 = vmax.f32 %v491, 0.0
        %v618 = vmax.f32 %v494, 0.0
        %v619 = vmax.f32 %v499, 0.0
        %v620 = vmax.f32 %v502, 0.0
        %v621 = vmax.f32 %v507, 0.0
        %v622 = vmax.f32 %v510, 0.0
        %v623 = vmax.f32 %v515, 0.0
        %v624 = vmax.f32 %v518, 0.0
        %v625 = vmax.f32 %v523, 0.0
        %v626 = vmax.f32 %v526, 0.0
        %v627 = vmax.f32 %v531, 0.0
        %v628 = vmax.f32 %v534, 0.0
        %v629 = vmax.f32 %v539, 0.0
        %v630 = vmax.f32 %v542, 0.0
        %v631 = vmax.f32 %v547, 0.0
        %v632 = vmax.f32 %v550, 0.0
        %v633 = vmax.f32 %v555, 0.0
        %v634 = vmax.f32 %v558, 0.0
        %v635 = vmax.f32 %v563, 0.0
        %v636 = vmax.f32 %v566, 0.0
        %v637 = vmax.f32 %v571, 0.0
        %v638 = vmax.f32 %v574, 0.0
        %v639 = vmax.f32 %v579, 0.0
        %v640 = vmax.f32 %v582, 0.0
        %v641 = vmax.f32 %v587, 0.0
        %v642 = vmax.f32 %v590, 0.0
        %v643 = vmax.f32 %v595, 0.0
        %v644 = vmax.f32 %v598, 0.0
        %v645 = vmax.f32 %v603, 0.0
        %v646 = vmax.f32 %v606, 0.0
        %v647 = vmax.f32 %v611, 0.0
        %v648 = vmax.f32 %v614, 0.0
        %v649 = vmax.f32 %v617, %v619
        %v650 = vmax.f32 %v618, %v620
        %v651 = vmax.f32 %v621, %v623
        %v652 = vmax.f32 %v622, %v624
        %v653 = vmax.f32 %v625, %v627
        %v654 = vmax.f32 %v626, %v628
        %v655 = vmax.f32 %v629, %v631
        %v656 = vmax.f32 %v630, %v632
        %v657 = vmax.f32 %v633, %v635
        %v658 = vmax.f32 %v634, %v636
        %v659 = vmax.f32 %v637, %v639
        %v660 = vmax.f32 %v638, %v640
        %v661 = vmax.f32 %v641, %v643
        %v662 = vmax.f32 %v642, %v644
        %v663 = vmax.f32 %v645, %v647
        %v664 = vmax.f32 %v646, %v648
        %vm665 = vcmask 261120
        %666 = vst.msk [vmem:[#allocation2] sm:$0xff] %vm665, %v649
        %667 = vst.msk [vmem:[#allocation2 + $0x8] sm:$0xff] %vm665, %v650
        %668 = vst.msk [vmem:[#allocation2 + $0x10] sm:$0xff] %vm665, %v651
        %669 = vst.msk [vmem:[#allocation2 + $0x18] sm:$0xff] %vm665, %v652
        %670 = vst.msk [vmem:[#allocation2 + $0x20] sm:$0xff] %vm665, %v653
        %671 = vst.msk [vmem:[#allocation2 + $0x28] sm:$0xff] %vm665, %v654
        %672 = vst.msk [vmem:[#allocation2 + $0x30] sm:$0xff] %vm665, %v655
        %673 = vst.msk [vmem:[#allocation2 + $0x38] sm:$0xff] %vm665, %v656
        %674 = vst.msk [vmem:[#allocation2 + $0x40] sm:$0xff] %vm665, %v657
        %675 = vst.msk [vmem:[#allocation2 + $0x48] sm:$0xff] %vm665, %v658
        %676 = vst.msk [vmem:[#allocation2 + $0x50] sm:$0xff] %vm665, %v659
        %677 = vst.msk [vmem:[#allocation2 + $0x58] sm:$0xff] %vm665, %v660
        %678 = vst.msk [vmem:[#allocation2 + $0x60] sm:$0xff] %vm665, %v661
        %679 = vst.msk [vmem:[#allocation2 + $0x68] sm:$0xff] %vm665, %v662
        %680 = vst.msk [vmem:[#allocation2 + $0x70] sm:$0xff] %vm665, %v663
        %681 = vst.msk [vmem:[#allocation2 + $0x78] sm:$0xff] %vm665, %v664
        %v682 = vld [vmem:[#allocation2] ss:$2 sm:$0xff]
        %s683 = scalar_lea.vmem [#allocation2], 16
        %v684 = vld [vmem:[%s683] ss:$2 sm:$0xff]
        %s685 = scalar_lea.vmem [#allocation2], 32
        %v686 = vld [vmem:[%s685] ss:$2 sm:$0xff]
        %s687 = scalar_lea.vmem [#allocation2], 48
        %v688 = vld [vmem:[%s687] ss:$2 sm:$0xff]
        %s689 = scalar_lea.vmem [#allocation2], 64
        %v690 = vld [vmem:[%s689] ss:$2 sm:$0xff]
        %s691 = scalar_lea.vmem [#allocation2], 80
        %v692 = vld [vmem:[%s691] ss:$2 sm:$0xff]
        %s693 = scalar_lea.vmem [#allocation2], 96
        %v694 = vld [vmem:[%s693] ss:$2 sm:$0xff]
        %s695 = scalar_lea.vmem [#allocation2], 112
        %v696 = vld [vmem:[%s695] ss:$2 sm:$0xff]
        %s697 = scalar_lea.vmem [#allocation2], 1
        %v698 = vld [vmem:[%s697] ss:$2 sm:$0xff]
        %s699 = scalar_lea.vmem [#allocation2], 17
        %v700 = vld [vmem:[%s699] ss:$2 sm:$0xff]
        %s701 = scalar_lea.vmem [#allocation2], 33
        %v702 = vld [vmem:[%s701] ss:$2 sm:$0xff]
        %s703 = scalar_lea.vmem [#allocation2], 49
        %v704 = vld [vmem:[%s703] ss:$2 sm:$0xff]
        %s705 = scalar_lea.vmem [#allocation2], 65
        %v706 = vld [vmem:[%s705] ss:$2 sm:$0xff]
        %s707 = scalar_lea.vmem [#allocation2], 81
        %v708 = vld [vmem:[%s707] ss:$2 sm:$0xff]
        %s709 = scalar_lea.vmem [#allocation2], 97
        %v710 = vld [vmem:[%s709] ss:$2 sm:$0xff]
        %s711 = scalar_lea.vmem [#allocation2], 113
        %v712 = vld [vmem:[%s711] ss:$2 sm:$0xff]
        %v713 = vmax.f32 %v682, %v698
        %v714 = vmax.f32 %v684, %v700
        %v715 = vmax.f32 %v686, %v702
        %v716 = vmax.f32 %v688, %v704
        %v717 = vmax.f32 %v690, %v706
        %v718 = vmax.f32 %v692, %v708
        %v719 = vmax.f32 %v694, %v710
        %v720 = vmax.f32 %v696, %v712
        %721 = vst.msk [vmem:[#allocation4] sm:$0xff] %vm665, 0.0
        %vm722 = vcmask 254976
        %723 = vst.msk [vmem:[#allocation4 + $0x8] sm:$0x3] %vm722, 0.0
        %724 = vst.msk [vmem:[#allocation4 + $0x10] sm:$0xff] %vm665, 0.0
        %725 = vst.msk [vmem:[#allocation4 + $0x18] sm:$0x3] %vm722, 0.0
        %726 = vst.msk [vmem:[#allocation4 + $0x20] sm:$0xff] %vm665, 0.0
        %727 = vst.msk [vmem:[#allocation4 + $0x28] sm:$0x3] %vm722, 0.0
        %728 = vst.msk [vmem:[#allocation4 + $0x30] sm:$0xff] %vm665, 0.0
        %729 = vst.msk [vmem:[#allocation4 + $0x38] sm:$0x3] %vm722, 0.0
        %730 = vst.msk [vmem:[#allocation4 + $0x40] sm:$0xff] %vm665, 0.0
        %731 = vst.msk [vmem:[#allocation4 + $0x48] sm:$0x3] %vm722, 0.0
        %732 = vst.msk [vmem:[#allocation4 + $0x50] sm:$0xff] %vm665, 0.0
        %733 = vst.msk [vmem:[#allocation4 + $0x58] sm:$0x3] %vm722, 0.0
        %734 = vst.msk [vmem:[#allocation4 + $0x60] sm:$0xff] %vm665, 0.0
        %735 = vst.msk [vmem:[#allocation4 + $0x68] sm:$0x3] %vm722, 0.0
        %736 = vst.msk [vmem:[#allocation4 + $0x70] sm:$0xff] %vm665, 0.0
        %737 = vst.msk [vmem:[#allocation4 + $0x78] sm:$0x3] %vm722, 0.0
        %738 = vst.msk [vmem:[#allocation4 + $0x80] sm:$0xff] %vm665, 0.0
        %739 = vst.msk [vmem:[#allocation4 + $0x88] sm:$0x3] %vm722, 0.0
        %740 = vst.msk [vmem:[#allocation4 + $0x90] sm:$0xff] %vm665, 0.0
        %741 = vst.msk [vmem:[#allocation4 + $0x98] sm:$0x3] %vm722, 0.0
        %s742 = scalar_lea.vmem [#allocation4], 16
        %743 = vst.msk [vmem:[%s742 + $0x1] sm:$0xff] %vm665, %v713
        %744 = vst.msk [vmem:[%s742 + $0x11] sm:$0xff] %vm665, %v714
        %745 = vst.msk [vmem:[%s742 + $0x21] sm:$0xff] %vm665, %v715
        %746 = vst.msk [vmem:[%s742 + $0x31] sm:$0xff] %vm665, %v716
        %747 = vst.msk [vmem:[%s742 + $0x41] sm:$0xff] %vm665, %v717
        %748 = vst.msk [vmem:[%s742 + $0x51] sm:$0xff] %vm665, %v718
        %749 = vst.msk [vmem:[%s742 + $0x61] sm:$0xff] %vm665, %v719
        %750 = vst.msk [vmem:[%s742 + $0x71] sm:$0xff] %vm665, %v720
        %v751 = vld [vmem:[#allocation4] sm:$0xff]
        %v752 = vld [vmem:[#allocation4 + $0x10] sm:$0xff]
        %v753 = vld [vmem:[#allocation4 + $0x20] sm:$0xff]
        %v754 = vld [vmem:[#allocation4 + $0x30] sm:$0xff]
        %v755 = vld [vmem:[#allocation4 + $0x40] sm:$0xff]
        %v756 = vld [vmem:[#allocation4 + $0x50] sm:$0xff]
        %v757 = vld [vmem:[#allocation4 + $0x60] sm:$0xff]
        %v758 = vld [vmem:[#allocation4 + $0x70] sm:$0xff]
        %v759 = vld [vmem:[#allocation4 + $0x1] sm:$0xff]
        %v760 = vld [vmem:[#allocation4 + $0x11] sm:$0xff]
        %v761 = vld [vmem:[#allocation4 + $0x21] sm:$0xff]
        %v762 = vld [vmem:[#allocation4 + $0x31] sm:$0xff]
        %v763 = vld [vmem:[#allocation4 + $0x41] sm:$0xff]
        %v764 = vld [vmem:[#allocation4 + $0x51] sm:$0xff]
        %v765 = vld [vmem:[#allocation4 + $0x61] sm:$0xff]
        %v766 = vld [vmem:[#allocation4 + $0x71] sm:$0xff]
        %v767 = vld [vmem:[#allocation4 + $0x2] sm:$0xff]
        %v768 = vld [vmem:[#allocation4 + $0x12] sm:$0xff]
        %v769 = vld [vmem:[#allocation4 + $0x22] sm:$0xff]
        %v770 = vld [vmem:[#allocation4 + $0x32] sm:$0xff]
        %v771 = vld [vmem:[#allocation4 + $0x42] sm:$0xff]
        %v772 = vld [vmem:[#allocation4 + $0x52] sm:$0xff]
        %v773 = vld [vmem:[#allocation4 + $0x62] sm:$0xff]
        %v774 = vld [vmem:[#allocation4 + $0x72] sm:$0xff]
        %v775 = vld [vmem:[%s742] sm:$0xff]
        %v776 = vld [vmem:[%s742 + $0x10] sm:$0xff]
        %v777 = vld [vmem:[%s742 + $0x20] sm:$0xff]
        %v778 = vld [vmem:[%s742 + $0x30] sm:$0xff]
        %v779 = vld [vmem:[%s742 + $0x40] sm:$0xff]
        %v780 = vld [vmem:[%s742 + $0x50] sm:$0xff]
        %v781 = vld [vmem:[%s742 + $0x60] sm:$0xff]
        %v782 = vld [vmem:[%s742 + $0x70] sm:$0xff]
        %v783 = vld [vmem:[%s742 + $0x1] sm:$0xff]
        %v784 = vld [vmem:[%s742 + $0x11] sm:$0xff]
        %v785 = vld [vmem:[%s742 + $0x21] sm:$0xff]
        %v786 = vld [vmem:[%s742 + $0x31] sm:$0xff]
        %v787 = vld [vmem:[%s742 + $0x41] sm:$0xff]
        %v788 = vld [vmem:[%s742 + $0x51] sm:$0xff]
        %v789 = vld [vmem:[%s742 + $0x61] sm:$0xff]
        %v790 = vld [vmem:[%s742 + $0x71] sm:$0xff]
        %v791 = vld [vmem:[%s742 + $0x2] sm:$0xff]
        %v792 = vld [vmem:[%s742 + $0x12] sm:$0xff]
        %v793 = vld [vmem:[%s742 + $0x22] sm:$0xff]
        %v794 = vld [vmem:[%s742 + $0x32] sm:$0xff]
        %v795 = vld [vmem:[%s742 + $0x42] sm:$0xff]
        %v796 = vld [vmem:[%s742 + $0x52] sm:$0xff]
        %v797 = vld [vmem:[%s742 + $0x62] sm:$0xff]
        %v798 = vld [vmem:[%s742 + $0x72] sm:$0xff]
        %s799 = scalar_lea.vmem [#allocation4], 32
        %v800 = vld [vmem:[%s799] sm:$0xff]
        %v801 = vld [vmem:[%s799 + $0x10] sm:$0xff]
        %v802 = vld [vmem:[%s799 + $0x20] sm:$0xff]
        %v803 = vld [vmem:[%s799 + $0x30] sm:$0xff]
        %v804 = vld [vmem:[%s799 + $0x40] sm:$0xff]
        %v805 = vld [vmem:[%s799 + $0x50] sm:$0xff]
        %v806 = vld [vmem:[%s799 + $0x60] sm:$0xff]
        %v807 = vld [vmem:[%s799 + $0x70] sm:$0xff]
        %v808 = vld [vmem:[%s799 + $0x1] sm:$0xff]
        %v809 = vld [vmem:[%s799 + $0x11] sm:$0xff]
        %v810 = vld [vmem:[%s799 + $0x21] sm:$0xff]
        %v811 = vld [vmem:[%s799 + $0x31] sm:$0xff]
        %v812 = vld [vmem:[%s799 + $0x41] sm:$0xff]
        %v813 = vld [vmem:[%s799 + $0x51] sm:$0xff]
        %v814 = vld [vmem:[%s799 + $0x61] sm:$0xff]
        %v815 = vld [vmem:[%s799 + $0x71] sm:$0xff]
        %v816 = vld [vmem:[%s799 + $0x2] sm:$0xff]
        %v817 = vld [vmem:[%s799 + $0x12] sm:$0xff]
        %v818 = vld [vmem:[%s799 + $0x22] sm:$0xff]
        %v819 = vld [vmem:[%s799 + $0x32] sm:$0xff]
        %v820 = vld [vmem:[%s799 + $0x42] sm:$0xff]
        %v821 = vld [vmem:[%s799 + $0x52] sm:$0xff]
        %v822 = vld [vmem:[%s799 + $0x62] sm:$0xff]
        %v823 = vld [vmem:[%s799 + $0x72] sm:$0xff]
        %832 = vrot.lane.b32.xlu0 %v759, 32
        %v833 = vpop.permute.xlu0 %832
        %834 = vrot.lane.b32.xlu0 %v760, 32
        %v835 = vpop.permute.xlu0 %834
        %836 = vrot.lane.b32.xlu0 %v761, 32
        %v837 = vpop.permute.xlu0 %836
        %838 = vrot.lane.b32.xlu0 %v762, 32
        %v839 = vpop.permute.xlu0 %838
        %840 = vrot.lane.b32.xlu0 %v763, 32
        %v841 = vpop.permute.xlu0 %840
        %842 = vrot.lane.b32.xlu0 %v764, 32
        %v843 = vpop.permute.xlu0 %842
        %844 = vrot.lane.b32.xlu0 %v765, 32
        %v845 = vpop.permute.xlu0 %844
        %846 = vrot.lane.b32.xlu0 %v766, 32
        %v847 = vpop.permute.xlu0 %846
        %864 = vrot.lane.b32.xlu0 %v767, 64
        %v865 = vpop.permute.xlu0 %864
        %866 = vrot.lane.b32.xlu0 %v768, 64
        %v867 = vpop.permute.xlu0 %866
        %868 = vrot.lane.b32.xlu0 %v769, 64
        %v869 = vpop.permute.xlu0 %868
        %870 = vrot.lane.b32.xlu0 %v770, 64
        %v871 = vpop.permute.xlu0 %870
        %872 = vrot.lane.b32.xlu0 %v771, 64
        %v873 = vpop.permute.xlu0 %872
        %874 = vrot.lane.b32.xlu0 %v772, 64
        %v875 = vpop.permute.xlu0 %874
        %876 = vrot.lane.b32.xlu0 %v773, 64
        %v877 = vpop.permute.xlu0 %876
        %878 = vrot.lane.b32.xlu0 %v774, 64
        %v879 = vpop.permute.xlu0 %878
        %896 = vrot.lane.b32.xlu0 %v775, 96
        %v897 = vpop.permute.xlu0 %896
        %898 = vrot.lane.b32.xlu0 %v776, 96
        %v899 = vpop.permute.xlu0 %898
        %900 = vrot.lane.b32.xlu0 %v777, 96
        %v901 = vpop.permute.xlu0 %900
        %902 = vrot.lane.b32.xlu0 %v778, 96
        %v903 = vpop.permute.xlu0 %902
        %904 = vrot.lane.b32.xlu0 %v779, 96
        %v905 = vpop.permute.xlu0 %904
        %906 = vrot.lane.b32.xlu0 %v780, 96
        %v907 = vpop.permute.xlu0 %906
        %908 = vrot.lane.b32.xlu0 %v781, 96
        %v909 = vpop.permute.xlu0 %908
        %910 = vrot.lane.b32.xlu0 %v782, 96
        %v911 = vpop.permute.xlu0 %910
        %928 = vrot.lane.b32.xlu0 %v791, 32
        %v929 = vpop.permute.xlu0 %928
        %930 = vrot.lane.b32.xlu0 %v792, 32
        %v931 = vpop.permute.xlu0 %930
        %932 = vrot.lane.b32.xlu0 %v793, 32
        %v933 = vpop.permute.xlu0 %932
        %934 = vrot.lane.b32.xlu0 %v794, 32
        %v935 = vpop.permute.xlu0 %934
        %936 = vrot.lane.b32.xlu0 %v795, 32
        %v937 = vpop.permute.xlu0 %936
        %938 = vrot.lane.b32.xlu0 %v796, 32
        %v939 = vpop.permute.xlu0 %938
        %940 = vrot.lane.b32.xlu0 %v797, 32
        %v941 = vpop.permute.xlu0 %940
        %942 = vrot.lane.b32.xlu0 %v798, 32
        %v943 = vpop.permute.xlu0 %942
        %960 = vrot.lane.b32.xlu0 %v800, 64
        %v961 = vpop.permute.xlu0 %960
        %962 = vrot.lane.b32.xlu0 %v801, 64
        %v963 = vpop.permute.xlu0 %962
        %964 = vrot.lane.b32.xlu0 %v802, 64
        %v965 = vpop.permute.xlu0 %964
        %966 = vrot.lane.b32.xlu0 %v803, 64
        %v967 = vpop.permute.xlu0 %966
        %968 = vrot.lane.b32.xlu0 %v804, 64
        %v969 = vpop.permute.xlu0 %968
        %970 = vrot.lane.b32.xlu0 %v805, 64
        %v971 = vpop.permute.xlu0 %970
        %972 = vrot.lane.b32.xlu0 %v806, 64
        %v973 = vpop.permute.xlu0 %972
        %974 = vrot.lane.b32.xlu0 %v807, 64
        %v975 = vpop.permute.xlu0 %974
        %992 = vrot.lane.b32.xlu0 %v808, 96
        %v993 = vpop.permute.xlu0 %992
        %994 = vrot.lane.b32.xlu0 %v809, 96
        %v995 = vpop.permute.xlu0 %994
        %996 = vrot.lane.b32.xlu0 %v810, 96
        %v997 = vpop.permute.xlu0 %996
        %998 = vrot.lane.b32.xlu0 %v811, 96
        %v999 = vpop.permute.xlu0 %998
        %1000 = vrot.lane.b32.xlu0 %v812, 96
        %v1001 = vpop.permute.xlu0 %1000
        %1002 = vrot.lane.b32.xlu0 %v813, 96
        %v1003 = vpop.permute.xlu0 %1002
        %1004 = vrot.lane.b32.xlu0 %v814, 96
        %v1005 = vpop.permute.xlu0 %1004
        %1006 = vrot.lane.b32.xlu0 %v815, 96
        %v1007 = vpop.permute.xlu0 %1006
        %v1016 = vsel %vm665, %v751, %v833
        %v1017 = vsel %vm665, %v752, %v835
        %v1018 = vsel %vm665, %v753, %v837
        %v1019 = vsel %vm665, %v754, %v839
        %v1020 = vsel %vm665, %v755, %v841
        %v1021 = vsel %vm665, %v756, %v843
        %v1022 = vsel %vm665, %v757, %v845
        %v1023 = vsel %vm665, %v758, %v847
        %vm1024 = vcmask 523264
        %v1025 = vsel %vm1024, %v1016, %v865
        %v1026 = vsel %vm1024, %v1017, %v867
        %v1027 = vsel %vm1024, %v1018, %v869
        %v1028 = vsel %vm1024, %v1019, %v871
        %v1029 = vsel %vm1024, %v1020, %v873
        %v1030 = vsel %vm1024, %v1021, %v875
        %v1031 = vsel %vm1024, %v1022, %v877
        %v1032 = vsel %vm1024, %v1023, %v879
        %vm1033 = vcmask 785408
        %v1034 = vsel %vm1033, %v1025, %v897
        %v1035 = vsel %vm1033, %v1026, %v899
        %v1036 = vsel %vm1033, %v1027, %v901
        %v1037 = vsel %vm1033, %v1028, %v903
        %v1038 = vsel %vm1033, %v1029, %v905
        %v1039 = vsel %vm1033, %v1030, %v907
        %v1040 = vsel %vm1033, %v1031, %v909
        %v1041 = vsel %vm1033, %v1032, %v911
        %v1042 = vsel %vm665, %v783, %v929
        %v1043 = vsel %vm665, %v784, %v931
        %v1044 = vsel %vm665, %v785, %v933
        %v1045 = vsel %vm665, %v786, %v935
        %v1046 = vsel %vm665, %v787, %v937
        %v1047 = vsel %vm665, %v788, %v939
        %v1048 = vsel %vm665, %v789, %v941
        %v1049 = vsel %vm665, %v790, %v943
        %v1050 = vsel %vm1024, %v1042, %v961
        %v1051 = vsel %vm1024, %v1043, %v963
        %v1052 = vsel %vm1024, %v1044, %v965
        %v1053 = vsel %vm1024, %v1045, %v967
        %v1054 = vsel %vm1024, %v1046, %v969
        %v1055 = vsel %vm1024, %v1047, %v971
        %v1056 = vsel %vm1024, %v1048, %v973
        %v1057 = vsel %vm1024, %v1049, %v975
        %v1058 = vsel %vm1033, %v1050, %v993
        %v1059 = vsel %vm1033, %v1051, %v995
        %v1060 = vsel %vm1033, %v1052, %v997
        %v1061 = vsel %vm1033, %v1053, %v999
        %v1062 = vsel %vm1033, %v1054, %v1001
        %v1063 = vsel %vm1033, %v1055, %v1003
        %v1064 = vsel %vm1033, %v1056, %v1005
        %v1065 = vsel %vm1033, %v1057, %v1007
        %v1066 = vpack.c.bf16 %v1035, %v1034
        %v1067 = vpack.c.bf16 %v1059, %v1058
        %v1068 = vpack.c.bf16 %v817, %v816
        %v1069 = vpack.c.bf16 %v1037, %v1036
        %v1070 = vpack.c.bf16 %v1061, %v1060
        %v1071 = vpack.c.bf16 %v819, %v818
        %v1072 = vpack.c.bf16 %v1039, %v1038
        %v1073 = vpack.c.bf16 %v1063, %v1062
        %v1074 = vpack.c.bf16 %v821, %v820
        %v1075 = vpack.c.bf16 %v1041, %v1040
        %v1076 = vpack.c.bf16 %v1065, %v1064
        %v1077 = vpack.c.bf16 %v823, %v822
        %v1078 = vld [vmem:[%s3] sm:$0xf]
        %v1079 = vld [vmem:[%s3 + $0x4] sm:$0xf]
        %v1080 = vld [vmem:[%s3 + $0x8] sm:$0xf]
        %v1081 = vld [vmem:[%s3 + $0xc] sm:$0xf]
        %v1082 = vld [vmem:[%s3 + $0x10] sm:$0xf]
        %v1083 = vld [vmem:[%s3 + $0x14] sm:$0xf]
        %v1084 = vld [vmem:[%s3 + $0x18] sm:$0xf]
        %v1085 = vld [vmem:[%s3 + $0x1c] sm:$0xf]
        %v1086 = vld [vmem:[%s3 + $0x20] sm:$0xf]
        %v1087 = vld [vmem:[%s3 + $0x24] sm:$0xf]
        %v1088 = vld [vmem:[%s3 + $0x28] sm:$0xf]
        %v1089 = vld [vmem:[%s3 + $0x2c] sm:$0xf]
        %v1090 = vld [vmem:[%s3 + $0x30] sm:$0xf]
        %v1091 = vld [vmem:[%s3 + $0x34] sm:$0xf]
        %v1092 = vld [vmem:[%s3 + $0x38] sm:$0xf]
        %v1093 = vld [vmem:[%s3 + $0x3c] sm:$0xf]
        %v1094 = vld [vmem:[%s3 + $0x40] sm:$0xf]
        %v1095 = vld [vmem:[%s3 + $0x44] sm:$0xf]
        %v1096 = vld [vmem:[%s3 + $0x48] sm:$0xf]
        %v1097 = vld [vmem:[%s3 + $0x4c] sm:$0xf]
        %v1098 = vld [vmem:[%s3 + $0x50] sm:$0xf]
        %v1099 = vld [vmem:[%s3 + $0x54] sm:$0xf]
        %v1100 = vld [vmem:[%s3 + $0x58] sm:$0xf]
        %v1101 = vld [vmem:[%s3 + $0x5c] sm:$0xf]
        %v1102 = vld [vmem:[%s3 + $0x60] sm:$0xf]
        %v1103 = vld [vmem:[%s3 + $0x64] sm:$0xf]
        %v1104 = vld [vmem:[%s3 + $0x68] sm:$0xf]
        %v1105 = vld [vmem:[%s3 + $0x6c] sm:$0xf]
        %v1106 = vld [vmem:[%s3 + $0x70] sm:$0xf]
        %v1107 = vld [vmem:[%s3 + $0x74] sm:$0xf]
        %v1108 = vld [vmem:[%s3 + $0x78] sm:$0xf]
        %v1109 = vld [vmem:[%s3 + $0x7c] sm:$0xf]
        %v1110 = vld [vmem:[%s3 + $0x80] sm:$0xf]
        %v1111 = vld [vmem:[%s3 + $0x84] sm:$0xf]
        %v1112 = vld [vmem:[%s3 + $0x88] sm:$0xf]
        %v1113 = vld [vmem:[%s3 + $0x8c] sm:$0xf]
        %v1114 = vld [vmem:[#allocation9] sm:$0x1]
        %v1116 = vlaneseq
        %v1117 = vshrl.u32 %v1116, 7
        %v1118 = vsub.s32 0, %v1117
        %v1119 = vrot.slane %v1114, %v1118
        %v1157 = vunpack.c.l.b16 %v1078
        %v1158 = vunpack.c.l.b16 %v1079
        %v1159 = vunpack.c.l.b16 %v1080
        %v1160 = vunpack.c.l.b16 %v1081
        %v1161 = vunpack.c.l.b16 %v1082
        %v1162 = vunpack.c.l.b16 %v1083
        %v1163 = vunpack.c.l.b16 %v1084
        %v1164 = vunpack.c.l.b16 %v1085
        %v1165 = vunpack.c.l.b16 %v1086
        %v1166 = vunpack.c.l.b16 %v1087
        %v1167 = vunpack.c.l.b16 %v1088
        %v1168 = vunpack.c.l.b16 %v1089
        %v1169 = vunpack.c.l.b16 %v1090
        %v1170 = vunpack.c.l.b16 %v1091
        %v1171 = vunpack.c.l.b16 %v1092
        %v1172 = vunpack.c.l.b16 %v1093
        %v1173 = vunpack.c.l.b16 %v1094
        %v1174 = vunpack.c.l.b16 %v1095
        %v1175 = vunpack.c.l.b16 %v1096
        %v1176 = vunpack.c.l.b16 %v1097
        %v1177 = vunpack.c.l.b16 %v1098
        %v1178 = vunpack.c.l.b16 %v1099
        %v1179 = vunpack.c.l.b16 %v1100
        %v1180 = vunpack.c.l.b16 %v1101
        %v1181 = vunpack.c.l.b16 %v1102
        %v1182 = vunpack.c.l.b16 %v1103
        %v1183 = vunpack.c.l.b16 %v1104
        %v1184 = vunpack.c.l.b16 %v1105
        %v1185 = vunpack.c.l.b16 %v1106
        %v1186 = vunpack.c.l.b16 %v1107
        %v1187 = vunpack.c.l.b16 %v1108
        %v1188 = vunpack.c.l.b16 %v1109
        %v1189 = vunpack.c.l.b16 %v1110
        %v1190 = vunpack.c.l.b16 %v1111
        %v1191 = vunpack.c.l.b16 %v1112
        %v1192 = vunpack.c.l.b16 %v1113
        %v1193 = vpack.c.b16 %v1158, %v1157
        %v1194 = vpack.c.b16 %v1160, %v1159
        %v1195 = vpack.c.b16 %v1162, %v1161
        %v1196 = vpack.c.b16 %v1164, %v1163
        %v1197 = vpack.c.b16 %v1166, %v1165
        %v1198 = vpack.c.b16 %v1168, %v1167
        %v1199 = vpack.c.b16 %v1170, %v1169
        %v1200 = vpack.c.b16 %v1172, %v1171
        %v1201 = vpack.c.b16 %v1174, %v1173
        %v1202 = vpack.c.b16 %v1176, %v1175
        %v1203 = vpack.c.b16 %v1178, %v1177
        %v1204 = vpack.c.b16 %v1180, %v1179
        %v1205 = vpack.c.b16 %v1182, %v1181
        %v1206 = vpack.c.b16 %v1184, %v1183
        %v1207 = vpack.c.b16 %v1186, %v1185
        %v1208 = vpack.c.b16 %v1188, %v1187
        %v1209 = vpack.c.b16 %v1190, %v1189
        %v1210 = vpack.c.b16 %v1192, %v1191
        %v1230 = vsel %vm665, %v1068, 0
        %v1233 = vsel %vm665, %v1071, 0
        %v1236 = vsel %vm665, %v1074, 0
        %v1239 = vsel %vm665, %v1077, 0
        %1241 = vmatprep.subr.bf16.mxu0 0
        %1242 = vmatpush1.bf16.msra.mxu0 %v1193
        %1243 = vmatprep.subr.bf16.mxu0 0
        %1244 = vmatpush1.bf16.msra.mxu0 %v1194
        %1245 = vmatprep.subr.bf16.mxu0 0
        %1246 = vmatpush1.bf16.msra.mxu0 %v1195
        %1247 = vmatprep.subr.bf16.mxu0 0
        %1248 = vmatpush1.bf16.msra.mxu0 %v1196
        %1249 = vmatprep.subr.bf16.mxu0 0
        %1250 = vmatpush1.bf16.msra.mxu0 %v1197
        %1251 = vmatprep.subr.bf16.mxu0 0
        %1252 = vmatpush1.bf16.msra.mxu0 %v1198
        %1253 = vmatprep.subr.bf16.mxu0 0
        %1254 = vmatpush1.bf16.msra.mxu0 %v1199
        %1255 = vmatprep.subr.bf16.mxu0 0
        %1256 = vmatpush1.bf16.msra.mxu0 %v1200
        %1257 = vmatprep.subr.bf16.mxu0 0
        %1258 = vmatpush1.bf16.msra.mxu0 %v1201
        %1259 = vmatprep.subr.bf16.mxu0 0
        %1260 = vmatpush1.bf16.msra.mxu0 %v1202
        %1261 = vmatprep.subr.bf16.mxu0 0
        %1262 = vmatpush1.bf16.msra.mxu0 %v1203
        %1263 = vmatprep.subr.bf16.mxu0 0
        %1264 = vmatpush1.bf16.msra.mxu0 %v1204
        %1265 = vmatprep.subr.bf16.mxu0 0
        %1266 = vmatpush1.bf16.msra.mxu0 %v1205
        %1267 = vmatprep.subr.bf16.mxu0 0
        %1268 = vmatpush1.bf16.msra.mxu0 %v1206
        %1269 = vmatprep.subr.bf16.mxu0 0
        %1270 = vmatpush1.bf16.msra.mxu0 %v1207
        %1271 = vmatprep.subr.bf16.mxu0 0
        %1272 = vmatpush1.bf16.msra.mxu0 %v1208
        %1273 = vmatprep.mubr.bf16.mxu0 %v1067
        %1274 = vmatmul.mubr.bf16.gmra.mrb[0].mxu0 %v1066
        %v1275 = vpop.f32.mrb[0].mxu0
        %v1276 = vadd.f32 %v1119, %v1275
        %v1277 = vpop.f32.mrb[0].mxu0
        %v1278 = vpop.f32.mrb[0].mxu0
        %v1279 = vadd.f32 %v1119, %v1278
        %v1280 = vpop.f32.mrb[0].mxu0
        %1281 = vmatprep.mubr.bf16.mxu0 %v1070
        %1282 = vmatmul.mubr.bf16.gmra.mrb[0].mxu0 %v1069
        %v1283 = vpop.f32.mrb[0].mxu0
        %v1284 = vadd.f32 %v1119, %v1283
        %v1285 = vpop.f32.mrb[0].mxu0
        %v1286 = vpop.f32.mrb[0].mxu0
        %v1287 = vadd.f32 %v1119, %v1286
        %v1288 = vpop.f32.mrb[0].mxu0
        %1289 = vmatprep.mubr.bf16.mxu0 %v1073
        %1290 = vmatmul.mubr.bf16.gmra.mrb[0].mxu0 %v1072
        %v1291 = vpop.f32.mrb[0].mxu0
        %v1292 = vadd.f32 %v1119, %v1291
        %v1293 = vpop.f32.mrb[0].mxu0
        %v1294 = vpop.f32.mrb[0].mxu0
        %v1295 = vadd.f32 %v1119, %v1294
        %v1296 = vpop.f32.mrb[0].mxu0
        %1297 = vmatprep.mubr.bf16.mxu0 %v1076
        %1298 = vmatmul.mubr.bf16.gmra.mrb[0].mxu0 %v1075
        %v1299 = vpop.f32.mrb[0].mxu0
        %v1300 = vadd.f32 %v1119, %v1299
        %v1301 = vpop.f32.mrb[0].mxu0
        %v1302 = vpop.f32.mrb[0].mxu0
        %v1303 = vadd.f32 %v1119, %v1302
        %v1304 = vpop.f32.mrb[0].mxu0
        %1305 = vdwg.mxu0
        %1306 = vmatprep.subr.bf16.mxu0 0
        %1307 = vmatpush1.bf16.msra.mxu0 %v1209
        %1308 = vmatprep.subr.bf16.mxu0 0
        %1309 = vmatpush1.bf16.msra.mxu0 %v1210
        %1310 = vmatprep.subr.bf16.mxu0 0
        %1311 = vmatpush1.bf16.msra.mxu0 0
        %1312 = vmatprep.subr.bf16.mxu0 0
        %1313 = vmatpush1.bf16.msra.mxu0 0
        %1314 = vmatprep.subr.bf16.mxu0 0
        %1315 = vmatpush1.bf16.msra.mxu0 0
        %1316 = vmatprep.subr.bf16.mxu0 0
        %1317 = vmatpush1.bf16.msra.mxu0 0
        %1318 = vmatprep.subr.bf16.mxu0 0
        %1319 = vmatpush1.bf16.msra.mxu0 0
        %1320 = vmatprep.subr.bf16.mxu0 0
        %1321 = vmatpush1.bf16.msra.mxu0 0
        %1322 = vmatprep.subr.bf16.mxu0 0
        %1323 = vmatpush1.bf16.msra.mxu0 0
        %1324 = vmatprep.subr.bf16.mxu0 0
        %1325 = vmatpush1.bf16.msra.mxu0 0
        %1326 = vmatprep.subr.bf16.mxu0 0
        %1327 = vmatpush1.bf16.msra.mxu0 0
        %1328 = vmatprep.subr.bf16.mxu0 0
        %1329 = vmatpush1.bf16.msra.mxu0 0
        %1330 = vmatprep.subr.bf16.mxu0 0
        %1331 = vmatpush1.bf16.msra.mxu0 0
        %1332 = vmatprep.subr.bf16.mxu0 0
        %1333 = vmatpush1.bf16.msra.mxu0 0
        %1334 = vmatprep.subr.bf16.mxu0 0
        %1335 = vmatpush1.bf16.msra.mxu0 0
        %1336 = vmatprep.subr.bf16.mxu0 0
        %1337 = vmatpush1.bf16.msra.mxu0 0
        %1338 = vmatprep.mubr.bf16.mxu0 0
        %1339 = vmatmul.mubr.bf16.gmra.mrb[0].mxu0 %v1230
        %v1340 = vpop.f32.mrb[0].mxu0
        %v1341 = vadd.f32 %v1276, %v1340
        %v1342 = vpop.f32.mrb[0].mxu0
        %v1343 = vpop.f32.mrb[0].mxu0
        %v1344 = vadd.f32 %v1279, %v1343
        %v1345 = vpop.f32.mrb[0].mxu0
        %1346 = vmatprep.mubr.bf16.mxu0 0
        %1347 = vmatmul.mubr.bf16.gmra.mrb[0].mxu0 %v1233
        %v1348 = vpop.f32.mrb[0].mxu0
        %v1349 = vadd.f32 %v1284, %v1348
        %v1350 = vpop.f32.mrb[0].mxu0
        %v1351 = vpop.f32.mrb[0].mxu0
        %v1352 = vadd.f32 %v1287, %v1351
        %v1353 = vpop.f32.mrb[0].mxu0
        %1354 = vmatprep.mubr.bf16.mxu0 0
        %1355 = vmatmul.mubr.bf16.gmra.mrb[0].mxu0 %v1236
        %v1356 = vpop.f32.mrb[0].mxu0
        %v1357 = vadd.f32 %v1292, %v1356
        %v1358 = vpop.f32.mrb[0].mxu0
        %v1359 = vpop.f32.mrb[0].mxu0
        %v1360 = vadd.f32 %v1295, %v1359
        %v1361 = vpop.f32.mrb[0].mxu0
        %1362 = vmatprep.mubr.bf16.mxu0 0
        %1363 = vmatmul.mubr.bf16.gmra.mrb[0].mxu0 %v1239
        %v1364 = vpop.f32.mrb[0].mxu0
        %v1365 = vadd.f32 %v1300, %v1364
        %v1366 = vpop.f32.mrb[0].mxu0
        %v1367 = vpop.f32.mrb[0].mxu0
        %v1368 = vadd.f32 %v1303, %v1367
        %v1369 = vpop.f32.mrb[0].mxu0
        %1370 = vdwg.mxu0
        %v1371 = vmax.f32 %v1341, 0.0
        %v1372 = vmax.f32 %v1344, 0.0
        %v1373 = vmax.f32 %v1349, 0.0
        %v1374 = vmax.f32 %v1352, 0.0
        %v1375 = vmax.f32 %v1357, 0.0
        %v1376 = vmax.f32 %v1360, 0.0
        %v1377 = vmax.f32 %v1365, 0.0
        %v1378 = vmax.f32 %v1368, 0.0
        %v1379 = vmax.f32 %v1371, %v1372
        %v1380 = vmax.f32 %v1373, %v1374
        %v1381 = vmax.f32 %v1375, %v1376
        %v1382 = vmax.f32 %v1377, %v1378
        %1383 = vst.msk [vmem:[#allocation3] sm:$0xff] %vm1024, %v1379
        %1384 = vst.msk [vmem:[#allocation3 + $0x8] sm:$0xff] %vm1024, %v1380
        %1385 = vst.msk [vmem:[#allocation3 + $0x10] sm:$0xff] %vm1024, %v1381
        %1386 = vst.msk [vmem:[#allocation3 + $0x18] sm:$0xff] %vm1024, %v1382
        %v1387 = vld [vmem:[#allocation3] ss:$2 sm:$0xff]
        %s1388 = scalar_lea.vmem [#allocation3], 16
        %v1389 = vld [vmem:[%s1388] ss:$2 sm:$0xff]
        %s1390 = scalar_lea.vmem [#allocation3], 1
        %v1391 = vld [vmem:[%s1390] ss:$2 sm:$0xff]
        %s1392 = scalar_lea.vmem [#allocation3], 17
        %v1393 = vld [vmem:[%s1392] ss:$2 sm:$0xff]
        %v1394 = vmax.f32 %v1387, %v1391
        %v1395 = vmax.f32 %v1389, %v1393
        %v1396 = vpack.c.bf16 %v1395, %v1394
        %v1398 = vunpack.c.l.b16 %v1396
        %v1399 = vunpack.c.h.b16 %v1396
        %v1400 = vpack.c.b16 %v1398, %v1398
        %v1401 = vpack.c.b16 %v1399, %v1399
        %vm1404 = vcmask 519168
        %1405 = vst.msk [vmem:[%s264] sm:$0xf] %vm1404, %v1400
        %1406 = vst.msk [vmem:[%s264 + $0x4] sm:$0xf] %vm1404, %v1401
        %p1407 = scmp.lt.s32.totalorder %s18, 1
        %s1408 = scalar_select %p1407, %s18, 1
        %s1409 = smul.addr %s1408, 2
        %s1410 = smul.addr %s1409, 4
        %s1411 = scalar_lea.vmem %s5, %s1410
        // Predicated region
        $region53: #{cnn_forward.2} parent=39 // pred_check
          %p1412 = pneg %p146
        $region54: #{cnn_forward.2} parent=39 // pred_check_branch
          %1414 = sbr.rel (%p1412) target = $region56
        $region55: #{cnn_forward.2} parent=39 // pred_region
          _
        $region56: #{cnn_forward.2} parent=39 // pred_fallthru
          _
      $region40: #{cnn_forward.2} parent=5 // pred_fallthru
        _
      %p1415 = scmp.le.s32.totalorder 2, %s13
      // Predicated region
      $region57: #{cnn_forward.2} parent=5 // pred_check
        %p1416 = pneg %p1415
      $region58: #{cnn_forward.2} parent=5 // pred_check_branch
        %1418 = sbr.rel (%p1416) target = $region60
      $region59: #{cnn_forward.2} parent=5 // pred_region
        %s1419 = ssub.s32 %s13, 2
        // Predicated region
        $region61: #{cnn_forward.2} parent=59 // pred_check
          %p1420 = pneg %p152
        $region62: #{cnn_forward.2} parent=59 // pred_check_branch
          %1422 = sbr.rel (%p1420) target = $region64
        $region63: #{cnn_forward.2} parent=59 // pred_region
          %p1423 = scmp.lt.s32.totalorder %s19, 1
          %s1424 = scalar_select %p1423, %s19, 1
          %s1425 = smul.addr %s1424, 2
          %s1426 = smul.addr %s1425, 4
          %s1427 = scalar_lea.vmem %s5, %s1426
        $region64: #{cnn_forward.2} parent=59 // pred_fallthru
          _
      $region60: #{cnn_forward.2} parent=5 // pred_fallthru
        _
    $region6: #{cnn_forward.2} parent=1 // loop_footer
      %s17 = sadd.s32 1, %s13
    $region7: #{cnn_forward.2} parent=1 // loop_footer_branch
      %12 = sbr.rel target = $region3
    $region8: #{cnn_forward.2} parent=1 // loop_exit
      _
    %1428 = vsyncpa [#allocation6], 1
    %s1429 = scalar_lea.sflag [#allocation6], 1
    %1430 = vsyncpa %s1429, 1
    %1431 = vsyncpa [#allocation8], 1

// kernel: cnn_forward.3
$region0: #{cnn_forward.3}
  #allocation0 [shape = 'u32[]', space=smem, size = 0x4, offset = 0x4, fixed_abs, tag = 'smem constant byte address 0x4 - core index']
  #allocation1 [shape = 'u32[144,128]{1,0:T(1,128)}', space=vmem, size = 0x12000, scoped, tag = 'internal scratch']
  %s0 = inlined_call_operand.vmem [shape: bf16[2,1024], index: 0, kind: input, shape index: {}]
  %s1 = inlined_call_operand.vmem [shape: bf16[1024,512], index: 1, kind: input, shape index: {}]
  %s2 = inlined_call_operand.hbm [shape: f32[1,512], index: 2, kind: input, shape index: {}]
  %s3 = inlined_call_operand.vmem [shape: bf16[512,256], index: 3, kind: input, shape index: {}]
  %s4 = inlined_call_operand.vmem [shape: f32[1,256], index: 4, kind: input, shape index: {}]
  %s5 = inlined_call_operand.vmem [shape: bf16[256,24], index: 5, kind: input, shape index: {}]
  %s6 = inlined_call_operand.vmem [shape: f32[1,24], index: 6, kind: input, shape index: {}]
  %s7 = inlined_call_operand.hbm [shape: f32[2,24], index: 7, kind: output, shape index: {}]
  %s8 = sld [smem:[#allocation0]]
  $region42: #{cnn_forward.3} parent=0
    _
  %s10 = ssub.s32 1, %s8
  %s11 = scalar_select 0, %s10, %s8
  $region1: #{cnn_forward.3} parent=0
    #allocation2 [shape = 'u8[2048]{0}', space=vmem, size = 0x800, scoped, tag = 'input window, operand 2, single buffered']
    #allocation3 [shape = 's32[1]{0}', space=sflag, size = 0x4, scoped, tag = 'scoped memory for cnn_forward.3']
    #allocation4 [shape = 's32[1]{0}', space=sflag, size = 0x4, scoped, tag = 'scoped memory for cnn_forward.3']
    #allocation5 [shape = 'u8[1024]{0}', space=vmem, size = 0x400, scoped, tag = 'output window, operand 0, single buffered']
    %12 = vsyncpa [#allocation3], 0
    %13 = vsyncpa [#allocation4], 0
    // Predicated region
    $region2: #{cnn_forward.3} parent=1 // pred_check
      _
    $region3: #{cnn_forward.3} parent=1 // pred_check_branch
      %15 = sbr.rel (0) target = $region5
    $region4: #{cnn_forward.3} parent=1 // pred_region
      _
    $region5: #{cnn_forward.3} parent=1 // pred_fallthru
      _
    // Predicated region
    $region6: #{cnn_forward.3} parent=1 // pred_check
      _
    $region7: #{cnn_forward.3} parent=1 // pred_check_branch
      %17 = sbr.rel (0) target = $region9
    $region8: #{cnn_forward.3} parent=1 // pred_region
      _
    $region9: #{cnn_forward.3} parent=1 // pred_fallthru
      _
    // Predicated region
    $region10: #{cnn_forward.3} parent=1 // pred_check
      _
    $region11: #{cnn_forward.3} parent=1 // pred_check_branch
      %19 = sbr.rel (0) target = $region13
    $region12: #{cnn_forward.3} parent=1 // pred_region
      %s21 = ssub.s32 64, 64
      %22 = vsyncadd [#allocation3], %s21
      %s24 = sshll.u32 [#allocation2], 4
      %s25 = int_to_ptr.vmem [resolvable:$true] %s24
      %27 = dma.hbm_to_vmem [thread:$0]  %s2, 64, %s25, [#allocation3]
    $region13: #{cnn_forward.3} parent=1 // pred_fallthru
      _
    // Predicated region
    $region14: #{cnn_forward.3} parent=1 // pred_check
      _
    $region15: #{cnn_forward.3} parent=1 // pred_check_branch
      %29 = sbr.rel (0) target = $region17
    $region16: #{cnn_forward.3} parent=1 // pred_region
      _
    $region17: #{cnn_forward.3} parent=1 // pred_fallthru
      _
    // Predicated region
    $region18: #{cnn_forward.3} parent=1 // pred_check
      _
    $region19: #{cnn_forward.3} parent=1 // pred_check_branch
      %31 = sbr.rel (0) target = $region21
    $region20: #{cnn_forward.3} parent=1 // pred_region
      _
    $region21: #{cnn_forward.3} parent=1 // pred_fallthru
      _
    // Predicated region
    $region22: #{cnn_forward.3} parent=1 // pred_check
      _
    $region23: #{cnn_forward.3} parent=1 // pred_check_branch
      %33 = sbr.rel (0) target = $region25
    $region24: #{cnn_forward.3} parent=1 // pred_region
      _
    $region25: #{cnn_forward.3} parent=1 // pred_fallthru
      _
    // Predicated region
    $region26: #{cnn_forward.3} parent=1 // pred_check
      _
    $region27: #{cnn_forward.3} parent=1 // pred_check_branch
      %35 = sbr.rel (0) target = $region29
    $region28: #{cnn_forward.3} parent=1 // pred_region
      _
    $region29: #{cnn_forward.3} parent=1 // pred_fallthru
      _
    // Predicated region
    $region30: #{cnn_forward.3} parent=1 // pred_check
      _
    $region31: #{cnn_forward.3} parent=1 // pred_check_branch
      %37 = sbr.rel (0) target = $region33
    $region32: #{cnn_forward.3} parent=1 // pred_region
      %38 = dma.done [#allocation3], 64
    $region33: #{cnn_forward.3} parent=1 // pred_fallthru
      _
    %v40 = vld [vmem:[%s0] sm:$0xff]
    %v41 = vld [vmem:[%s1] sm:$0xff]
    %v42 = vld [vmem:[%s1 + $0x8] sm:$0xff]
    %v43 = vld [vmem:[%s1 + $0x10] sm:$0xff]
    %v44 = vld [vmem:[%s1 + $0x18] sm:$0xff]
    %v45 = vld [vmem:[%s1 + $0x20] sm:$0xff]
    %v46 = vld [vmem:[%s1 + $0x28] sm:$0xff]
    %v47 = vld [vmem:[%s1 + $0x30] sm:$0xff]
    %v48 = vld [vmem:[%s1 + $0x38] sm:$0xff]
    %v49 = vld [vmem:[%s1 + $0x40] sm:$0xff]
    %v50 = vld [vmem:[%s1 + $0x48] sm:$0xff]
    %v51 = vld [vmem:[%s1 + $0x50] sm:$0xff]
    %v52 = vld [vmem:[%s1 + $0x58] sm:$0xff]
    %v53 = vld [vmem:[%s1 + $0x60] sm:$0xff]
    %v54 = vld [vmem:[%s1 + $0x68] sm:$0xff]
    %v55 = vld [vmem:[%s1 + $0x70] sm:$0xff]
    %v56 = vld [vmem:[%s1 + $0x78] sm:$0xff]
    %v57 = vld [vmem:[%s1 + $0x80] sm:$0xff]
    %v58 = vld [vmem:[%s1 + $0x88] sm:$0xff]
    %v59 = vld [vmem:[%s1 + $0x90] sm:$0xff]
    %v60 = vld [vmem:[%s1 + $0x98] sm:$0xff]
    %v61 = vld [vmem:[%s1 + $0xa0] sm:$0xff]
    %v62 = vld [vmem:[%s1 + $0xa8] sm:$0xff]
    %v63 = vld [vmem:[%s1 + $0xb0] sm:$0xff]
    %v64 = vld [vmem:[%s1 + $0xb8] sm:$0xff]
    %v65 = vld [vmem:[%s1 + $0xc0] sm:$0xff]
    %v66 = vld [vmem:[%s1 + $0xc8] sm:$0xff]
    %v67 = vld [vmem:[%s1 + $0xd0] sm:$0xff]
    %v68 = vld [vmem:[%s1 + $0xd8] sm:$0xff]
    %v69 = vld [vmem:[%s1 + $0xe0] sm:$0xff]
    %v70 = vld [vmem:[%s1 + $0xe8] sm:$0xff]
    %v71 = vld [vmem:[%s1 + $0xf0] sm:$0xff]
    %v72 = vld [vmem:[%s1 + $0xf8] sm:$0xff]
    %v73 = vld [vmem:[%s1 + $0x100] sm:$0xff]
    %v74 = vld [vmem:[%s1 + $0x108] sm:$0xff]
    %v75 = vld [vmem:[%s1 + $0x110] sm:$0xff]
    %v76 = vld [vmem:[%s1 + $0x118] sm:$0xff]
    %v77 = vld [vmem:[%s1 + $0x120] sm:$0xff]
    %v78 = vld [vmem:[%s1 + $0x128] sm:$0xff]
    %v79 = vld [vmem:[%s1 + $0x130] sm:$0xff]
    %v80 = vld [vmem:[%s1 + $0x138] sm:$0xff]
    %v81 = vld [vmem:[%s1 + $0x140] sm:$0xff]
    %v82 = vld [vmem:[%s1 + $0x148] sm:$0xff]
    %v83 = vld [vmem:[%s1 + $0x150] sm:$0xff]
    %v84 = vld [vmem:[%s1 + $0x158] sm:$0xff]
    %v85 = vld [vmem:[%s1 + $0x160] sm:$0xff]
    %v86 = vld [vmem:[%s1 + $0x168] sm:$0xff]
    %v87 = vld [vmem:[%s1 + $0x170] sm:$0xff]
    %v88 = vld [vmem:[%s1 + $0x178] sm:$0xff]
    %v89 = vld [vmem:[%s1 + $0x180] sm:$0xff]
    %v90 = vld [vmem:[%s1 + $0x188] sm:$0xff]
    %v91 = vld [vmem:[%s1 + $0x190] sm:$0xff]
    %v92 = vld [vmem:[%s1 + $0x198] sm:$0xff]
    %v93 = vld [vmem:[%s1 + $0x1a0] sm:$0xff]
    %v94 = vld [vmem:[%s1 + $0x1a8] sm:$0xff]
    %v95 = vld [vmem:[%s1 + $0x1b0] sm:$0xff]
    %v96 = vld [vmem:[%s1 + $0x1b8] sm:$0xff]
    %v97 = vld [vmem:[%s1 + $0x1c0] sm:$0xff]
    %v98 = vld [vmem:[%s1 + $0x1c8] sm:$0xff]
    %v99 = vld [vmem:[%s1 + $0x1d0] sm:$0xff]
    %v100 = vld [vmem:[%s1 + $0x1d8] sm:$0xff]
    %v101 = vld [vmem:[%s1 + $0x1e0] sm:$0xff]
    %v102 = vld [vmem:[%s1 + $0x1e8] sm:$0xff]
    %v103 = vld [vmem:[%s1 + $0x1f0] sm:$0xff]
    %v104 = vld [vmem:[%s1 + $0x1f8] sm:$0xff]
    %v105 = vld [vmem:[%s1 + $0x200] sm:$0xff]
    %v106 = vld [vmem:[%s1 + $0x208] sm:$0xff]
    %v107 = vld [vmem:[%s1 + $0x210] sm:$0xff]
    %v108 = vld [vmem:[%s1 + $0x218] sm:$0xff]
    %v109 = vld [vmem:[%s1 + $0x220] sm:$0xff]
    %v110 = vld [vmem:[%s1 + $0x228] sm:$0xff]
    %v111 = vld [vmem:[%s1 + $0x230] sm:$0xff]
    %v112 = vld [vmem:[%s1 + $0x238] sm:$0xff]
    %v113 = vld [vmem:[%s1 + $0x240] sm:$0xff]
    %v114 = vld [vmem:[%s1 + $0x248] sm:$0xff]
    %v115 = vld [vmem:[%s1 + $0x250] sm:$0xff]
    %v116 = vld [vmem:[%s1 + $0x258] sm:$0xff]
    %v117 = vld [vmem:[%s1 + $0x260] sm:$0xff]
    %v118 = vld [vmem:[%s1 + $0x268] sm:$0xff]
    %v119 = vld [vmem:[%s1 + $0x270] sm:$0xff]
    %v120 = vld [vmem:[%s1 + $0x278] sm:$0xff]
    %v121 = vld [vmem:[%s1 + $0x280] sm:$0xff]
    %v122 = vld [vmem:[%s1 + $0x288] sm:$0xff]
    %v123 = vld [vmem:[%s1 + $0x290] sm:$0xff]
    %v124 = vld [vmem:[%s1 + $0x298] sm:$0xff]
    %v125 = vld [vmem:[%s1 + $0x2a0] sm:$0xff]
    %v126 = vld [vmem:[%s1 + $0x2a8] sm:$0xff]
    %v127 = vld [vmem:[%s1 + $0x2b0] sm:$0xff]
    %v128 = vld [vmem:[%s1 + $0x2b8] sm:$0xff]
    %v129 = vld [vmem:[%s1 + $0x2c0] sm:$0xff]
    %v130 = vld [vmem:[%s1 + $0x2c8] sm:$0xff]
    %v131 = vld [vmem:[%s1 + $0x2d0] sm:$0xff]
    %v132 = vld [vmem:[%s1 + $0x2d8] sm:$0xff]
    %v133 = vld [vmem:[%s1 + $0x2e0] sm:$0xff]
    %v134 = vld [vmem:[%s1 + $0x2e8] sm:$0xff]
    %v135 = vld [vmem:[%s1 + $0x2f0] sm:$0xff]
    %v136 = vld [vmem:[%s1 + $0x2f8] sm:$0xff]
    %v137 = vld [vmem:[%s1 + $0x300] sm:$0xff]
    %v138 = vld [vmem:[%s1 + $0x308] sm:$0xff]
    %v139 = vld [vmem:[%s1 + $0x310] sm:$0xff]
    %v140 = vld [vmem:[%s1 + $0x318] sm:$0xff]
    %v141 = vld [vmem:[%s1 + $0x320] sm:$0xff]
    %v142 = vld [vmem:[%s1 + $0x328] sm:$0xff]
    %v143 = vld [vmem:[%s1 + $0x330] sm:$0xff]
    %v144 = vld [vmem:[%s1 + $0x338] sm:$0xff]
    %v145 = vld [vmem:[%s1 + $0x340] sm:$0xff]
    %v146 = vld [vmem:[%s1 + $0x348] sm:$0xff]
    %v147 = vld [vmem:[%s1 + $0x350] sm:$0xff]
    %v148 = vld [vmem:[%s1 + $0x358] sm:$0xff]
    %v149 = vld [vmem:[%s1 + $0x360] sm:$0xff]
    %v150 = vld [vmem:[%s1 + $0x368] sm:$0xff]
    %v151 = vld [vmem:[%s1 + $0x370] sm:$0xff]
    %v152 = vld [vmem:[%s1 + $0x378] sm:$0xff]
    %v153 = vld [vmem:[%s1 + $0x380] sm:$0xff]
    %v154 = vld [vmem:[%s1 + $0x388] sm:$0xff]
    %v155 = vld [vmem:[%s1 + $0x390] sm:$0xff]
    %v156 = vld [vmem:[%s1 + $0x398] sm:$0xff]
    %v157 = vld [vmem:[%s1 + $0x3a0] sm:$0xff]
    %v158 = vld [vmem:[%s1 + $0x3a8] sm:$0xff]
    %v159 = vld [vmem:[%s1 + $0x3b0] sm:$0xff]
    %v160 = vld [vmem:[%s1 + $0x3b8] sm:$0xff]
    %v161 = vld [vmem:[%s1 + $0x3c0] sm:$0xff]
    %v162 = vld [vmem:[%s1 + $0x3c8] sm:$0xff]
    %v163 = vld [vmem:[%s1 + $0x3d0] sm:$0xff]
    %v164 = vld [vmem:[%s1 + $0x3d8] sm:$0xff]
    %v165 = vld [vmem:[%s1 + $0x3e0] sm:$0xff]
    %v166 = vld [vmem:[%s1 + $0x3e8] sm:$0xff]
    %v167 = vld [vmem:[%s1 + $0x3f0] sm:$0xff]
    %v168 = vld [vmem:[%s1 + $0x3f8] sm:$0xff]
    %v169 = vld [vmem:[%s1 + $0x400] sm:$0xff]
    %v170 = vld [vmem:[%s1 + $0x408] sm:$0xff]
    %v171 = vld [vmem:[%s1 + $0x410] sm:$0xff]
    %v172 = vld [vmem:[%s1 + $0x418] sm:$0xff]
    %v173 = vld [vmem:[%s1 + $0x420] sm:$0xff]
    %v174 = vld [vmem:[%s1 + $0x428] sm:$0xff]
    %v175 = vld [vmem:[%s1 + $0x430] sm:$0xff]
    %v176 = vld [vmem:[%s1 + $0x438] sm:$0xff]
    %v177 = vld [vmem:[%s1 + $0x440] sm:$0xff]
    %v178 = vld [vmem:[%s1 + $0x448] sm:$0xff]
    %v179 = vld [vmem:[%s1 + $0x450] sm:$0xff]
    %v180 = vld [vmem:[%s1 + $0x458] sm:$0xff]
    %v181 = vld [vmem:[%s1 + $0x460] sm:$0xff]
    %v182 = vld [vmem:[%s1 + $0x468] sm:$0xff]
    %v183 = vld [vmem:[%s1 + $0x470] sm:$0xff]
    %v184 = vld [vmem:[%s1 + $0x478] sm:$0xff]
    %v185 = vld [vmem:[%s1 + $0x480] sm:$0xff]
    %v186 = vld [vmem:[%s1 + $0x488] sm:$0xff]
    %v187 = vld [vmem:[%s1 + $0x490] sm:$0xff]
    %v188 = vld [vmem:[%s1 + $0x498] sm:$0xff]
    %v189 = vld [vmem:[%s1 + $0x4a0] sm:$0xff]
    %v190 = vld [vmem:[%s1 + $0x4a8] sm:$0xff]
    %v191 = vld [vmem:[%s1 + $0x4b0] sm:$0xff]
    %v192 = vld [vmem:[%s1 + $0x4b8] sm:$0xff]
    %v193 = vld [vmem:[%s1 + $0x4c0] sm:$0xff]
    %v194 = vld [vmem:[%s1 + $0x4c8] sm:$0xff]
    %v195 = vld [vmem:[%s1 + $0x4d0] sm:$0xff]
    %v196 = vld [vmem:[%s1 + $0x4d8] sm:$0xff]
    %v197 = vld [vmem:[%s1 + $0x4e0] sm:$0xff]
    %v198 = vld [vmem:[%s1 + $0x4e8] sm:$0xff]
    %v199 = vld [vmem:[%s1 + $0x4f0] sm:$0xff]
    %v200 = vld [vmem:[%s1 + $0x4f8] sm:$0xff]
    %v201 = vld [vmem:[%s1 + $0x500] sm:$0xff]
    %v202 = vld [vmem:[%s1 + $0x508] sm:$0xff]
    %v203 = vld [vmem:[%s1 + $0x510] sm:$0xff]
    %v204 = vld [vmem:[%s1 + $0x518] sm:$0xff]
    %v205 = vld [vmem:[%s1 + $0x520] sm:$0xff]
    %v206 = vld [vmem:[%s1 + $0x528] sm:$0xff]
    %v207 = vld [vmem:[%s1 + $0x530] sm:$0xff]
    %v208 = vld [vmem:[%s1 + $0x538] sm:$0xff]
    %v209 = vld [vmem:[%s1 + $0x540] sm:$0xff]
    %v210 = vld [vmem:[%s1 + $0x548] sm:$0xff]
    %v211 = vld [vmem:[%s1 + $0x550] sm:$0xff]
    %v212 = vld [vmem:[%s1 + $0x558] sm:$0xff]
    %v213 = vld [vmem:[%s1 + $0x560] sm:$0xff]
    %v214 = vld [vmem:[%s1 + $0x568] sm:$0xff]
    %v215 = vld [vmem:[%s1 + $0x570] sm:$0xff]
    %v216 = vld [vmem:[%s1 + $0x578] sm:$0xff]
    %v217 = vld [vmem:[%s1 + $0x580] sm:$0xff]
    %v218 = vld [vmem:[%s1 + $0x588] sm:$0xff]
    %v219 = vld [vmem:[%s1 + $0x590] sm:$0xff]
    %v220 = vld [vmem:[%s1 + $0x598] sm:$0xff]
    %v221 = vld [vmem:[%s1 + $0x5a0] sm:$0xff]
    %v222 = vld [vmem:[%s1 + $0x5a8] sm:$0xff]
    %v223 = vld [vmem:[%s1 + $0x5b0] sm:$0xff]
    %v224 = vld [vmem:[%s1 + $0x5b8] sm:$0xff]
    %v225 = vld [vmem:[%s1 + $0x5c0] sm:$0xff]
    %v226 = vld [vmem:[%s1 + $0x5c8] sm:$0xff]
    %v227 = vld [vmem:[%s1 + $0x5d0] sm:$0xff]
    %v228 = vld [vmem:[%s1 + $0x5d8] sm:$0xff]
    %v229 = vld [vmem:[%s1 + $0x5e0] sm:$0xff]
    %v230 = vld [vmem:[%s1 + $0x5e8] sm:$0xff]
    %v231 = vld [vmem:[%s1 + $0x5f0] sm:$0xff]
    %v232 = vld [vmem:[%s1 + $0x5f8] sm:$0xff]
    %v233 = vld [vmem:[%s1 + $0x600] sm:$0xff]
    %v234 = vld [vmem:[%s1 + $0x608] sm:$0xff]
    %v235 = vld [vmem:[%s1 + $0x610] sm:$0xff]
    %v236 = vld [vmem:[%s1 + $0x618] sm:$0xff]
    %v237 = vld [vmem:[%s1 + $0x620] sm:$0xff]
    %v238 = vld [vmem:[%s1 + $0x628] sm:$0xff]
    %v239 = vld [vmem:[%s1 + $0x630] sm:$0xff]
    %v240 = vld [vmem:[%s1 + $0x638] sm:$0xff]
    %v241 = vld [vmem:[%s1 + $0x640] sm:$0xff]
    %v242 = vld [vmem:[%s1 + $0x648] sm:$0xff]
    %v243 = vld [vmem:[%s1 + $0x650] sm:$0xff]
    %v244 = vld [vmem:[%s1 + $0x658] sm:$0xff]
    %v245 = vld [vmem:[%s1 + $0x660] sm:$0xff]
    %v246 = vld [vmem:[%s1 + $0x668] sm:$0xff]
    %v247 = vld [vmem:[%s1 + $0x670] sm:$0xff]
    %v248 = vld [vmem:[%s1 + $0x678] sm:$0xff]
    %v249 = vld [vmem:[%s1 + $0x680] sm:$0xff]
    %v250 = vld [vmem:[%s1 + $0x688] sm:$0xff]
    %v251 = vld [vmem:[%s1 + $0x690] sm:$0xff]
    %v252 = vld [vmem:[%s1 + $0x698] sm:$0xff]
    %v253 = vld [vmem:[%s1 + $0x6a0] sm:$0xff]
    %v254 = vld [vmem:[%s1 + $0x6a8] sm:$0xff]
    %v255 = vld [vmem:[%s1 + $0x6b0] sm:$0xff]
    %v256 = vld [vmem:[%s1 + $0x6b8] sm:$0xff]
    %v257 = vld [vmem:[%s1 + $0x6c0] sm:$0xff]
    %v258 = vld [vmem:[%s1 + $0x6c8] sm:$0xff]
    %v259 = vld [vmem:[%s1 + $0x6d0] sm:$0xff]
    %v260 = vld [vmem:[%s1 + $0x6d8] sm:$0xff]
    %v261 = vld [vmem:[%s1 + $0x6e0] sm:$0xff]
    %v262 = vld [vmem:[%s1 + $0x6e8] sm:$0xff]
    %v263 = vld [vmem:[%s1 + $0x6f0] sm:$0xff]
    %v264 = vld [vmem:[%s1 + $0x6f8] sm:$0xff]
    %v265 = vld [vmem:[%s1 + $0x700] sm:$0xff]
    %v266 = vld [vmem:[%s1 + $0x708] sm:$0xff]
    %v267 = vld [vmem:[%s1 + $0x710] sm:$0xff]
    %v268 = vld [vmem:[%s1 + $0x718] sm:$0xff]
    %v269 = vld [vmem:[%s1 + $0x720] sm:$0xff]
    %v270 = vld [vmem:[%s1 + $0x728] sm:$0xff]
    %v271 = vld [vmem:[%s1 + $0x730] sm:$0xff]
    %v272 = vld [vmem:[%s1 + $0x738] sm:$0xff]
    %v273 = vld [vmem:[%s1 + $0x740] sm:$0xff]
    %v274 = vld [vmem:[%s1 + $0x748] sm:$0xff]
    %v275 = vld [vmem:[%s1 + $0x750] sm:$0xff]
    %v276 = vld [vmem:[%s1 + $0x758] sm:$0xff]
    %v277 = vld [vmem:[%s1 + $0x760] sm:$0xff]
    %v278 = vld [vmem:[%s1 + $0x768] sm:$0xff]
    %v279 = vld [vmem:[%s1 + $0x770] sm:$0xff]
    %v280 = vld [vmem:[%s1 + $0x778] sm:$0xff]
    %v281 = vld [vmem:[%s1 + $0x780] sm:$0xff]
    %v282 = vld [vmem:[%s1 + $0x788] sm:$0xff]
    %v283 = vld [vmem:[%s1 + $0x790] sm:$0xff]
    %v284 = vld [vmem:[%s1 + $0x798] sm:$0xff]
    %v285 = vld [vmem:[%s1 + $0x7a0] sm:$0xff]
    %v286 = vld [vmem:[%s1 + $0x7a8] sm:$0xff]
    %v287 = vld [vmem:[%s1 + $0x7b0] sm:$0xff]
    %v288 = vld [vmem:[%s1 + $0x7b8] sm:$0xff]
    %v289 = vld [vmem:[%s1 + $0x7c0] sm:$0xff]
    %v290 = vld [vmem:[%s1 + $0x7c8] sm:$0xff]
    %v291 = vld [vmem:[%s1 + $0x7d0] sm:$0xff]
    %v292 = vld [vmem:[%s1 + $0x7d8] sm:$0xff]
    %v293 = vld [vmem:[%s1 + $0x7e0] sm:$0xff]
    %v294 = vld [vmem:[%s1 + $0x7e8] sm:$0xff]
    %v295 = vld [vmem:[%s1 + $0x7f0] sm:$0xff]
    %v296 = vld [vmem:[%s1 + $0x7f8] sm:$0xff]
    %v297 = vld [vmem:[#allocation2] sm:$0xf]
    %v299 = vlaneseq
    %v300 = vshrl.u32 %v299, 7
    %v301 = vsub.s32 0, %v300
    %v302 = vrot.slane %v297, %v301
    %v303 = vlaneseq
    %v304 = vshrl.u32 %v303, 7
    %v305 = vsub.s32 1, %v304
    %v306 = vrot.slane %v297, %v305
    %v307 = vlaneseq
    %v308 = vshrl.u32 %v307, 7
    %v309 = vsub.s32 2, %v308
    %v310 = vrot.slane %v297, %v309
    %v311 = vlaneseq
    %v312 = vshrl.u32 %v311, 7
    %v313 = vsub.s32 3, %v312
    %v314 = vrot.slane %v297, %v313
    %v320 = vcombine.high %v40, %v40
    %v322 = vunpack.c.l.s4 1966171168
    %v323 = vunpack.c.0.s8 %v322
    %v324 = vlaneseq
    %v325 = vshrl.u32 %v324, 7
    %v326 = vsub.s32 %v323, %v325
    %v327 = vrot.slane %v40, %v326
    %v329 = vunpack.c.l.s4 1966171168
    %v330 = vunpack.c.0.s8 %v329
    %v331 = vlaneseq
    %v332 = vshrl.u32 %v331, 7
    %v333 = vsub.s32 %v330, %v332
    %v334 = vrot.slane %v320, %v333
    %v335 = vcombine.high %v327, %v327
    %v336 = vcombine.high %v334, %v334
    %v338 = vunpack.c.l.s4 1966171168
    %v339 = vunpack.c.0.s8 %v338
    %v340 = vlaneseq
    %v341 = vshrl.u32 %v340, 7
    %v342 = vsub.s32 %v339, %v341
    %v343 = vrot.slane %v327, %v342
    %v345 = vunpack.c.l.s4 1966171168
    %v346 = vunpack.c.0.s8 %v345
    %v347 = vlaneseq
    %v348 = vshrl.u32 %v347, 7
    %v349 = vsub.s32 %v346, %v348
    %v350 = vrot.slane %v334, %v349
    %v352 = vunpack.c.l.s4 1966171168
    %v353 = vunpack.c.0.s8 %v352
    %v354 = vlaneseq
    %v355 = vshrl.u32 %v354, 7
    %v356 = vsub.s32 %v353, %v355
    %v357 = vrot.slane %v335, %v356
    %v359 = vunpack.c.l.s4 1966171168
    %v360 = vunpack.c.0.s8 %v359
    %v361 = vlaneseq
    %v362 = vshrl.u32 %v361, 7
    %v363 = vsub.s32 %v360, %v362
    %v364 = vrot.slane %v336, %v363
    %v365 = vcombine.high %v343, %v343
    %v366 = vcombine.high %v350, %v350
    %v367 = vcombine.high %v357, %v357
    %v368 = vcombine.high %v364, %v364
    %v633 = vunpack.c.l.b16 %v41
    %v634 = vunpack.c.h.b16 %v41
    %v635 = vunpack.c.l.b16 %v42
    %v636 = vunpack.c.h.b16 %v42
    %v637 = vunpack.c.l.b16 %v43
    %v638 = vunpack.c.h.b16 %v43
    %v639 = vunpack.c.l.b16 %v44
    %v640 = vunpack.c.h.b16 %v44
    %v641 = vunpack.c.l.b16 %v45
    %v642 = vunpack.c.h.b16 %v45
    %v643 = vunpack.c.l.b16 %v46
    %v644 = vunpack.c.h.b16 %v46
    %v645 = vunpack.c.l.b16 %v47
    %v646 = vunpack.c.h.b16 %v47
    %v647 = vunpack.c.l.b16 %v48
    %v648 = vunpack.c.h.b16 %v48
    %v649 = vunpack.c.l.b16 %v49
    %v650 = vunpack.c.h.b16 %v49
    %v651 = vunpack.c.l.b16 %v50
    %v652 = vunpack.c.h.b16 %v50
    %v653 = vunpack.c.l.b16 %v51
    %v654 = vunpack.c.h.b16 %v51
    %v655 = vunpack.c.l.b16 %v52
    %v656 = vunpack.c.h.b16 %v52
    %v657 = vunpack.c.l.b16 %v53
    %v658 = vunpack.c.h.b16 %v53
    %v659 = vunpack.c.l.b16 %v54
    %v660 = vunpack.c.h.b16 %v54
    %v661 = vunpack.c.l.b16 %v55
    %v662 = vunpack.c.h.b16 %v55
    %v663 = vunpack.c.l.b16 %v56
    %v664 = vunpack.c.h.b16 %v56
    %v665 = vunpack.c.l.b16 %v57
    %v666 = vunpack.c.h.b16 %v57
    %v667 = vunpack.c.l.b16 %v58
    %v668 = vunpack.c.h.b16 %v58
    %v669 = vunpack.c.l.b16 %v59
    %v670 = vunpack.c.h.b16 %v59
    %v671 = vunpack.c.l.b16 %v60
    %v672 = vunpack.c.h.b16 %v60
    %v673 = vunpack.c.l.b16 %v61
    %v674 = vunpack.c.h.b16 %v61
    %v675 = vunpack.c.l.b16 %v62
    %v676 = vunpack.c.h.b16 %v62
    %v677 = vunpack.c.l.b16 %v63
    %v678 = vunpack.c.h.b16 %v63
    %v679 = vunpack.c.l.b16 %v64
    %v680 = vunpack.c.h.b16 %v64
    %v681 = vunpack.c.l.b16 %v65
    %v682 = vunpack.c.h.b16 %v65
    %v683 = vunpack.c.l.b16 %v66
    %v684 = vunpack.c.h.b16 %v66
    %v685 = vunpack.c.l.b16 %v67
    %v686 = vunpack.c.h.b16 %v67
    %v687 = vunpack.c.l.b16 %v68
    %v688 = vunpack.c.h.b16 %v68
    %v689 = vunpack.c.l.b16 %v69
    %v690 = vunpack.c.h.b16 %v69
    %v691 = vunpack.c.l.b16 %v70
    %v692 = vunpack.c.h.b16 %v70
    %v693 = vunpack.c.l.b16 %v71
    %v694 = vunpack.c.h.b16 %v71
    %v695 = vunpack.c.l.b16 %v72
    %v696 = vunpack.c.h.b16 %v72
    %v697 = vunpack.c.l.b16 %v73
    %v698 = vunpack.c.h.b16 %v73
    %v699 = vunpack.c.l.b16 %v74
    %v700 = vunpack.c.h.b16 %v74
    %v701 = vunpack.c.l.b16 %v75
    %v702 = vunpack.c.h.b16 %v75
    %v703 = vunpack.c.l.b16 %v76
    %v704 = vunpack.c.h.b16 %v76
    %v705 = vunpack.c.l.b16 %v77
    %v706 = vunpack.c.h.b16 %v77
    %v707 = vunpack.c.l.b16 %v78
    %v708 = vunpack.c.h.b16 %v78
    %v709 = vunpack.c.l.b16 %v79
    %v710 = vunpack.c.h.b16 %v79
    %v711 = vunpack.c.l.b16 %v80
    %v712 = vunpack.c.h.b16 %v80
    %v713 = vunpack.c.l.b16 %v81
    %v714 = vunpack.c.h.b16 %v81
    %v715 = vunpack.c.l.b16 %v82
    %v716 = vunpack.c.h.b16 %v82
    %v717 = vunpack.c.l.b16 %v83
    %v718 = vunpack.c.h.b16 %v83
    %v719 = vunpack.c.l.b16 %v84
    %v720 = vunpack.c.h.b16 %v84
    %v721 = vunpack.c.l.b16 %v85
    %v722 = vunpack.c.h.b16 %v85
    %v723 = vunpack.c.l.b16 %v86
    %v724 = vunpack.c.h.b16 %v86
    %v725 = vunpack.c.l.b16 %v87
    %v726 = vunpack.c.h.b16 %v87
    %v727 = vunpack.c.l.b16 %v88
    %v728 = vunpack.c.h.b16 %v88
    %v729 = vunpack.c.l.b16 %v89
    %v730 = vunpack.c.h.b16 %v89
    %v731 = vunpack.c.l.b16 %v90
    %v732 = vunpack.c.h.b16 %v90
    %v733 = vunpack.c.l.b16 %v91
    %v734 = vunpack.c.h.b16 %v91
    %v735 = vunpack.c.l.b16 %v92
    %v736 = vunpack.c.h.b16 %v92
    %v737 = vunpack.c.l.b16 %v93
    %v738 = vunpack.c.h.b16 %v93
    %v739 = vunpack.c.l.b16 %v94
    %v740 = vunpack.c.h.b16 %v94
    %v741 = vunpack.c.l.b16 %v95
    %v742 = vunpack.c.h.b16 %v95
    %v743 = vunpack.c.l.b16 %v96
    %v744 = vunpack.c.h.b16 %v96
    %v745 = vunpack.c.l.b16 %v97
    %v746 = vunpack.c.h.b16 %v97
    %v747 = vunpack.c.l.b16 %v98
    %v748 = vunpack.c.h.b16 %v98
    %v749 = vunpack.c.l.b16 %v99
    %v750 = vunpack.c.h.b16 %v99
    %v751 = vunpack.c.l.b16 %v100
    %v752 = vunpack.c.h.b16 %v100
    %v753 = vunpack.c.l.b16 %v101
    %v754 = vunpack.c.h.b16 %v101
    %v755 = vunpack.c.l.b16 %v102
    %v756 = vunpack.c.h.b16 %v102
    %v757 = vunpack.c.l.b16 %v103
    %v758 = vunpack.c.h.b16 %v103
    %v759 = vunpack.c.l.b16 %v104
    %v760 = vunpack.c.h.b16 %v104
    %v761 = vunpack.c.l.b16 %v105
    %v762 = vunpack.c.h.b16 %v105
    %v763 = vunpack.c.l.b16 %v106
    %v764 = vunpack.c.h.b16 %v106
    %v765 = vunpack.c.l.b16 %v107
    %v766 = vunpack.c.h.b16 %v107
    %v767 = vunpack.c.l.b16 %v108
    %v768 = vunpack.c.h.b16 %v108
    %v769 = vunpack.c.l.b16 %v109
    %v770 = vunpack.c.h.b16 %v109
    %v771 = vunpack.c.l.b16 %v110
    %v772 = vunpack.c.h.b16 %v110
    %v773 = vunpack.c.l.b16 %v111
    %v774 = vunpack.c.h.b16 %v111
    %v775 = vunpack.c.l.b16 %v112
    %v776 = vunpack.c.h.b16 %v112
    %v777 = vunpack.c.l.b16 %v113
    %v778 = vunpack.c.h.b16 %v113
    %v779 = vunpack.c.l.b16 %v114
    %v780 = vunpack.c.h.b16 %v114
    %v781 = vunpack.c.l.b16 %v115
    %v782 = vunpack.c.h.b16 %v115
    %v783 = vunpack.c.l.b16 %v116
    %v784 = vunpack.c.h.b16 %v116
    %v785 = vunpack.c.l.b16 %v117
    %v786 = vunpack.c.h.b16 %v117
    %v787 = vunpack.c.l.b16 %v118
    %v788 = vunpack.c.h.b16 %v118
    %v789 = vunpack.c.l.b16 %v119
    %v790 = vunpack.c.h.b16 %v119
    %v791 = vunpack.c.l.b16 %v120
    %v792 = vunpack.c.h.b16 %v120
    %v793 = vunpack.c.l.b16 %v121
    %v794 = vunpack.c.h.b16 %v121
    %v795 = vunpack.c.l.b16 %v122
    %v796 = vunpack.c.h.b16 %v122
    %v797 = vunpack.c.l.b16 %v123
    %v798 = vunpack.c.h.b16 %v123
    %v799 = vunpack.c.l.b16 %v124
    %v800 = vunpack.c.h.b16 %v124
    %v801 = vunpack.c.l.b16 %v125
    %v802 = vunpack.c.h.b16 %v125
    %v803 = vunpack.c.l.b16 %v126
    %v804 = vunpack.c.h.b16 %v126
    %v805 = vunpack.c.l.b16 %v127
    %v806 = vunpack.c.h.b16 %v127
    %v807 = vunpack.c.l.b16 %v128
    %v808 = vunpack.c.h.b16 %v128
    %v809 = vunpack.c.l.b16 %v129
    %v810 = vunpack.c.h.b16 %v129
    %v811 = vunpack.c.l.b16 %v130
    %v812 = vunpack.c.h.b16 %v130
    %v813 = vunpack.c.l.b16 %v131
    %v814 = vunpack.c.h.b16 %v131
    %v815 = vunpack.c.l.b16 %v132
    %v816 = vunpack.c.h.b16 %v132
    %v817 = vunpack.c.l.b16 %v133
    %v818 = vunpack.c.h.b16 %v133
    %v819 = vunpack.c.l.b16 %v134
    %v820 = vunpack.c.h.b16 %v134
    %v821 = vunpack.c.l.b16 %v135
    %v822 = vunpack.c.h.b16 %v135
    %v823 = vunpack.c.l.b16 %v136
    %v824 = vunpack.c.h.b16 %v136
    %v825 = vunpack.c.l.b16 %v137
    %v826 = vunpack.c.h.b16 %v137
    %v827 = vunpack.c.l.b16 %v138
    %v828 = vunpack.c.h.b16 %v138
    %v829 = vunpack.c.l.b16 %v139
    %v830 = vunpack.c.h.b16 %v139
    %v831 = vunpack.c.l.b16 %v140
    %v832 = vunpack.c.h.b16 %v140
    %v833 = vunpack.c.l.b16 %v141
    %v834 = vunpack.c.h.b16 %v141
    %v835 = vunpack.c.l.b16 %v142
    %v836 = vunpack.c.h.b16 %v142
    %v837 = vunpack.c.l.b16 %v143
    %v838 = vunpack.c.h.b16 %v143
    %v839 = vunpack.c.l.b16 %v144
    %v840 = vunpack.c.h.b16 %v144
    %v841 = vunpack.c.l.b16 %v145
    %v842 = vunpack.c.h.b16 %v145
    %v843 = vunpack.c.l.b16 %v146
    %v844 = vunpack.c.h.b16 %v146
    %v845 = vunpack.c.l.b16 %v147
    %v846 = vunpack.c.h.b16 %v147
    %v847 = vunpack.c.l.b16 %v148
    %v848 = vunpack.c.h.b16 %v148
    %v849 = vunpack.c.l.b16 %v149
    %v850 = vunpack.c.h.b16 %v149
    %v851 = vunpack.c.l.b16 %v150
    %v852 = vunpack.c.h.b16 %v150
    %v853 = vunpack.c.l.b16 %v151
    %v854 = vunpack.c.h.b16 %v151
    %v855 = vunpack.c.l.b16 %v152
    %v856 = vunpack.c.h.b16 %v152
    %v857 = vunpack.c.l.b16 %v153
    %v858 = vunpack.c.h.b16 %v153
    %v859 = vunpack.c.l.b16 %v154
    %v860 = vunpack.c.h.b16 %v154
    %v861 = vunpack.c.l.b16 %v155
    %v862 = vunpack.c.h.b16 %v155
    %v863 = vunpack.c.l.b16 %v156
    %v864 = vunpack.c.h.b16 %v156
    %v865 = vunpack.c.l.b16 %v157
    %v866 = vunpack.c.h.b16 %v157
    %v867 = vunpack.c.l.b16 %v158
    %v868 = vunpack.c.h.b16 %v158
    %v869 = vunpack.c.l.b16 %v159
    %v870 = vunpack.c.h.b16 %v159
    %v871 = vunpack.c.l.b16 %v160
    %v872 = vunpack.c.h.b16 %v160
    %v873 = vunpack.c.l.b16 %v161
    %v874 = vunpack.c.h.b16 %v161
    %v875 = vunpack.c.l.b16 %v162
    %v876 = vunpack.c.h.b16 %v162
    %v877 = vunpack.c.l.b16 %v163
    %v878 = vunpack.c.h.b16 %v163
    %v879 = vunpack.c.l.b16 %v164
    %v880 = vunpack.c.h.b16 %v164
    %v881 = vunpack.c.l.b16 %v165
    %v882 = vunpack.c.h.b16 %v165
    %v883 = vunpack.c.l.b16 %v166
    %v884 = vunpack.c.h.b16 %v166
    %v885 = vunpack.c.l.b16 %v167
    %v886 = vunpack.c.h.b16 %v167
    %v887 = vunpack.c.l.b16 %v168
    %v888 = vunpack.c.h.b16 %v168
    %v889 = vunpack.c.l.b16 %v169
    %v890 = vunpack.c.h.b16 %v169
    %v891 = vunpack.c.l.b16 %v170
    %v892 = vunpack.c.h.b16 %v170
    %v893 = vunpack.c.l.b16 %v171
    %v894 = vunpack.c.h.b16 %v171
    %v895 = vunpack.c.l.b16 %v172
    %v896 = vunpack.c.h.b16 %v172
    %v897 = vunpack.c.l.b16 %v173
    %v898 = vunpack.c.h.b16 %v173
    %v899 = vunpack.c.l.b16 %v174
    %v900 = vunpack.c.h.b16 %v174
    %v901 = vunpack.c.l.b16 %v175
    %v902 = vunpack.c.h.b16 %v175
    %v903 = vunpack.c.l.b16 %v176
    %v904 = vunpack.c.h.b16 %v176
    %v905 = vunpack.c.l.b16 %v177
    %v906 = vunpack.c.h.b16 %v177
    %v907 = vunpack.c.l.b16 %v178
    %v908 = vunpack.c.h.b16 %v178
    %v909 = vunpack.c.l.b16 %v179
    %v910 = vunpack.c.h.b16 %v179
    %v911 = vunpack.c.l.b16 %v180
    %v912 = vunpack.c.h.b16 %v180
    %v913 = vunpack.c.l.b16 %v181
    %v914 = vunpack.c.h.b16 %v181
    %v915 = vunpack.c.l.b16 %v182
    %v916 = vunpack.c.h.b16 %v182
    %v917 = vunpack.c.l.b16 %v183
    %v918 = vunpack.c.h.b16 %v183
    %v919 = vunpack.c.l.b16 %v184
    %v920 = vunpack.c.h.b16 %v184
    %v921 = vunpack.c.l.b16 %v185
    %v922 = vunpack.c.h.b16 %v185
    %v923 = vunpack.c.l.b16 %v186
    %v924 = vunpack.c.h.b16 %v186
    %v925 = vunpack.c.l.b16 %v187
    %v926 = vunpack.c.h.b16 %v187
    %v927 = vunpack.c.l.b16 %v188
    %v928 = vunpack.c.h.b16 %v188
    %v929 = vunpack.c.l.b16 %v189
    %v930 = vunpack.c.h.b16 %v189
    %v931 = vunpack.c.l.b16 %v190
    %v932 = vunpack.c.h.b16 %v190
    %v933 = vunpack.c.l.b16 %v191
    %v934 = vunpack.c.h.b16 %v191
    %v935 = vunpack.c.l.b16 %v192
    %v936 = vunpack.c.h.b16 %v192
    %v937 = vunpack.c.l.b16 %v193
    %v938 = vunpack.c.h.b16 %v193
    %v939 = vunpack.c.l.b16 %v194
    %v940 = vunpack.c.h.b16 %v194
    %v941 = vunpack.c.l.b16 %v195
    %v942 = vunpack.c.h.b16 %v195
    %v943 = vunpack.c.l.b16 %v196
    %v944 = vunpack.c.h.b16 %v196
    %v945 = vunpack.c.l.b16 %v197
    %v946 = vunpack.c.h.b16 %v197
    %v947 = vunpack.c.l.b16 %v198
    %v948 = vunpack.c.h.b16 %v198
    %v949 = vunpack.c.l.b16 %v199
    %v950 = vunpack.c.h.b16 %v199
    %v951 = vunpack.c.l.b16 %v200
    %v952 = vunpack.c.h.b16 %v200
    %v953 = vunpack.c.l.b16 %v201
    %v954 = vunpack.c.h.b16 %v201
    %v955 = vunpack.c.l.b16 %v202
    %v956 = vunpack.c.h.b16 %v202
    %v957 = vunpack.c.l.b16 %v203
    %v958 = vunpack.c.h.b16 %v203
    %v959 = vunpack.c.l.b16 %v204
    %v960 = vunpack.c.h.b16 %v204
    %v961 = vunpack.c.l.b16 %v205
    %v962 = vunpack.c.h.b16 %v205
    %v963 = vunpack.c.l.b16 %v206
    %v964 = vunpack.c.h.b16 %v206
    %v965 = vunpack.c.l.b16 %v207
    %v966 = vunpack.c.h.b16 %v207
    %v967 = vunpack.c.l.b16 %v208
    %v968 = vunpack.c.h.b16 %v208
    %v969 = vunpack.c.l.b16 %v209
    %v970 = vunpack.c.h.b16 %v209
    %v971 = vunpack.c.l.b16 %v210
    %v972 = vunpack.c.h.b16 %v210
    %v973 = vunpack.c.l.b16 %v211
    %v974 = vunpack.c.h.b16 %v211
    %v975 = vunpack.c.l.b16 %v212
    %v976 = vunpack.c.h.b16 %v212
    %v977 = vunpack.c.l.b16 %v213
    %v978 = vunpack.c.h.b16 %v213
    %v979 = vunpack.c.l.b16 %v214
    %v980 = vunpack.c.h.b16 %v214
    %v981 = vunpack.c.l.b16 %v215
    %v982 = vunpack.c.h.b16 %v215
    %v983 = vunpack.c.l.b16 %v216
    %v984 = vunpack.c.h.b16 %v216
    %v985 = vunpack.c.l.b16 %v217
    %v986 = vunpack.c.h.b16 %v217
    %v987 = vunpack.c.l.b16 %v218
    %v988 = vunpack.c.h.b16 %v218
    %v989 = vunpack.c.l.b16 %v219
    %v990 = vunpack.c.h.b16 %v219
    %v991 = vunpack.c.l.b16 %v220
    %v992 = vunpack.c.h.b16 %v220
    %v993 = vunpack.c.l.b16 %v221
    %v994 = vunpack.c.h.b16 %v221
    %v995 = vunpack.c.l.b16 %v222
    %v996 = vunpack.c.h.b16 %v222
    %v997 = vunpack.c.l.b16 %v223
    %v998 = vunpack.c.h.b16 %v223
    %v999 = vunpack.c.l.b16 %v224
    %v1000 = vunpack.c.h.b16 %v224
    %v1001 = vunpack.c.l.b16 %v225
    %v1002 = vunpack.c.h.b16 %v225
    %v1003 = vunpack.c.l.b16 %v226
    %v1004 = vunpack.c.h.b16 %v226
    %v1005 = vunpack.c.l.b16 %v227
    %v1006 = vunpack.c.h.b16 %v227
    %v1007 = vunpack.c.l.b16 %v228
    %v1008 = vunpack.c.h.b16 %v228
    %v1009 = vunpack.c.l.b16 %v229
    %v1010 = vunpack.c.h.b16 %v229
    %v1011 = vunpack.c.l.b16 %v230
    %v1012 = vunpack.c.h.b16 %v230
    %v1013 = vunpack.c.l.b16 %v231
    %v1014 = vunpack.c.h.b16 %v231
    %v1015 = vunpack.c.l.b16 %v232
    %v1016 = vunpack.c.h.b16 %v232
    %v1017 = vunpack.c.l.b16 %v233
    %v1018 = vunpack.c.h.b16 %v233
    %v1019 = vunpack.c.l.b16 %v234
    %v1020 = vunpack.c.h.b16 %v234
    %v1021 = vunpack.c.l.b16 %v235
    %v1022 = vunpack.c.h.b16 %v235
    %v1023 = vunpack.c.l.b16 %v236
    %v1024 = vunpack.c.h.b16 %v236
    %v1025 = vunpack.c.l.b16 %v237
    %v1026 = vunpack.c.h.b16 %v237
    %v1027 = vunpack.c.l.b16 %v238
    %v1028 = vunpack.c.h.b16 %v238
    %v1029 = vunpack.c.l.b16 %v239
    %v1030 = vunpack.c.h.b16 %v239
    %v1031 = vunpack.c.l.b16 %v240
    %v1032 = vunpack.c.h.b16 %v240
    %v1033 = vunpack.c.l.b16 %v241
    %v1034 = vunpack.c.h.b16 %v241
    %v1035 = vunpack.c.l.b16 %v242
    %v1036 = vunpack.c.h.b16 %v242
    %v1037 = vunpack.c.l.b16 %v243
    %v1038 = vunpack.c.h.b16 %v243
    %v1039 = vunpack.c.l.b16 %v244
    %v1040 = vunpack.c.h.b16 %v244
    %v1041 = vunpack.c.l.b16 %v245
    %v1042 = vunpack.c.h.b16 %v245
    %v1043 = vunpack.c.l.b16 %v246
    %v1044 = vunpack.c.h.b16 %v246
    %v1045 = vunpack.c.l.b16 %v247
    %v1046 = vunpack.c.h.b16 %v247
    %v1047 = vunpack.c.l.b16 %v248
    %v1048 = vunpack.c.h.b16 %v248
    %v1049 = vunpack.c.l.b16 %v249
    %v1050 = vunpack.c.h.b16 %v249
    %v1051 = vunpack.c.l.b16 %v250
    %v1052 = vunpack.c.h.b16 %v250
    %v1053 = vunpack.c.l.b16 %v251
    %v1054 = vunpack.c.h.b16 %v251
    %v1055 = vunpack.c.l.b16 %v252
    %v1056 = vunpack.c.h.b16 %v252
    %v1057 = vunpack.c.l.b16 %v253
    %v1058 = vunpack.c.h.b16 %v253
    %v1059 = vunpack.c.l.b16 %v254
    %v1060 = vunpack.c.h.b16 %v254
    %v1061 = vunpack.c.l.b16 %v255
    %v1062 = vunpack.c.h.b16 %v255
    %v1063 = vunpack.c.l.b16 %v256
    %v1064 = vunpack.c.h.b16 %v256
    %v1065 = vunpack.c.l.b16 %v257
    %v1066 = vunpack.c.h.b16 %v257
    %v1067 = vunpack.c.l.b16 %v258
    %v1068 = vunpack.c.h.b16 %v258
    %v1069 = vunpack.c.l.b16 %v259
    %v1070 = vunpack.c.h.b16 %v259
    %v1071 = vunpack.c.l.b16 %v260
    %v1072 = vunpack.c.h.b16 %v260
    %v1073 = vunpack.c.l.b16 %v261
    %v1074 = vunpack.c.h.b16 %v261
    %v1075 = vunpack.c.l.b16 %v262
    %v1076 = vunpack.c.h.b16 %v262
    %v1077 = vunpack.c.l.b16 %v263
    %v1078 = vunpack.c.h.b16 %v263
    %v1079 = vunpack.c.l.b16 %v264
    %v1080 = vunpack.c.h.b16 %v264
    %v1081 = vunpack.c.l.b16 %v265
    %v1082 = vunpack.c.h.b16 %v265
    %v1083 = vunpack.c.l.b16 %v266
    %v1084 = vunpack.c.h.b16 %v266
    %v1085 = vunpack.c.l.b16 %v267
    %v1086 = vunpack.c.h.b16 %v267
    %v1087 = vunpack.c.l.b16 %v268
    %v1088 = vunpack.c.h.b16 %v268
    %v1089 = vunpack.c.l.b16 %v269
    %v1090 = vunpack.c.h.b16 %v269
    %v1091 = vunpack.c.l.b16 %v270
    %v1092 = vunpack.c.h.b16 %v270
    %v1093 = vunpack.c.l.b16 %v271
    %v1094 = vunpack.c.h.b16 %v271
    %v1095 = vunpack.c.l.b16 %v272
    %v1096 = vunpack.c.h.b16 %v272
    %v1097 = vunpack.c.l.b16 %v273
    %v1098 = vunpack.c.h.b16 %v273
    %v1099 = vunpack.c.l.b16 %v274
    %v1100 = vunpack.c.h.b16 %v274
    %v1101 = vunpack.c.l.b16 %v275
    %v1102 = vunpack.c.h.b16 %v275
    %v1103 = vunpack.c.l.b16 %v276
    %v1104 = vunpack.c.h.b16 %v276
    %v1105 = vunpack.c.l.b16 %v277
    %v1106 = vunpack.c.h.b16 %v277
    %v1107 = vunpack.c.l.b16 %v278
    %v1108 = vunpack.c.h.b16 %v278
    %v1109 = vunpack.c.l.b16 %v279
    %v1110 = vunpack.c.h.b16 %v279
    %v1111 = vunpack.c.l.b16 %v280
    %v1112 = vunpack.c.h.b16 %v280
    %v1113 = vunpack.c.l.b16 %v281
    %v1114 = vunpack.c.h.b16 %v281
    %v1115 = vunpack.c.l.b16 %v282
    %v1116 = vunpack.c.h.b16 %v282
    %v1117 = vunpack.c.l.b16 %v283
    %v1118 = vunpack.c.h.b16 %v283
    %v1119 = vunpack.c.l.b16 %v284
    %v1120 = vunpack.c.h.b16 %v284
    %v1121 = vunpack.c.l.b16 %v285
    %v1122 = vunpack.c.h.b16 %v285
    %v1123 = vunpack.c.l.b16 %v286
    %v1124 = vunpack.c.h.b16 %v286
    %v1125 = vunpack.c.l.b16 %v287
    %v1126 = vunpack.c.h.b16 %v287
    %v1127 = vunpack.c.l.b16 %v288
    %v1128 = vunpack.c.h.b16 %v288
    %v1129 = vunpack.c.l.b16 %v289
    %v1130 = vunpack.c.h.b16 %v289
    %v1131 = vunpack.c.l.b16 %v290
    %v1132 = vunpack.c.h.b16 %v290
    %v1133 = vunpack.c.l.b16 %v291
    %v1134 = vunpack.c.h.b16 %v291
    %v1135 = vunpack.c.l.b16 %v292
    %v1136 = vunpack.c.h.b16 %v292
    %v1137 = vunpack.c.l.b16 %v293
    %v1138 = vunpack.c.h.b16 %v293
    %v1139 = vunpack.c.l.b16 %v294
    %v1140 = vunpack.c.h.b16 %v294
    %v1141 = vunpack.c.l.b16 %v295
    %v1142 = vunpack.c.h.b16 %v295
    %v1143 = vunpack.c.l.b16 %v296
    %v1144 = vunpack.c.h.b16 %v296
    %v1145 = vpack.c.b16 %v637, %v633
    %v1146 = vpack.c.b16 %v638, %v634
    %v1147 = vpack.c.b16 %v639, %v635
    %v1148 = vpack.c.b16 %v640, %v636
    %v1149 = vpack.c.b16 %v645, %v641
    %v1150 = vpack.c.b16 %v646, %v642
    %v1151 = vpack.c.b16 %v647, %v643
    %v1152 = vpack.c.b16 %v648, %v644
    %v1153 = vpack.c.b16 %v653, %v649
    %v1154 = vpack.c.b16 %v654, %v650
    %v1155 = vpack.c.b16 %v655, %v651
    %v1156 = vpack.c.b16 %v656, %v652
    %v1157 = vpack.c.b16 %v661, %v657
    %v1158 = vpack.c.b16 %v662, %v658
    %v1159 = vpack.c.b16 %v663, %v659
    %v1160 = vpack.c.b16 %v664, %v660
    %v1161 = vpack.c.b16 %v669, %v665
    %v1162 = vpack.c.b16 %v670, %v666
    %v1163 = vpack.c.b16 %v671, %v667
    %v1164 = vpack.c.b16 %v672, %v668
    %v1165 = vpack.c.b16 %v677, %v673
    %v1166 = vpack.c.b16 %v678, %v674
    %v1167 = vpack.c.b16 %v679, %v675
    %v1168 = vpack.c.b16 %v680, %v676
    %v1169 = vpack.c.b16 %v685, %v681
    %v1170 = vpack.c.b16 %v686, %v682
    %v1171 = vpack.c.b16 %v687, %v683
    %v1172 = vpack.c.b16 %v688, %v684
    %v1173 = vpack.c.b16 %v693, %v689
    %v1174 = vpack.c.b16 %v694, %v690
    %v1175 = vpack.c.b16 %v695, %v691
    %v1176 = vpack.c.b16 %v696, %v692
    %v1177 = vpack.c.b16 %v701, %v697
    %v1178 = vpack.c.b16 %v702, %v698
    %v1179 = vpack.c.b16 %v703, %v699
    %v1180 = vpack.c.b16 %v704, %v700
    %v1181 = vpack.c.b16 %v709, %v705
    %v1182 = vpack.c.b16 %v710, %v706
    %v1183 = vpack.c.b16 %v711, %v707
    %v1184 = vpack.c.b16 %v712, %v708
    %v1185 = vpack.c.b16 %v717, %v713
    %v1186 = vpack.c.b16 %v718, %v714
    %v1187 = vpack.c.b16 %v719, %v715
    %v1188 = vpack.c.b16 %v720, %v716
    %v1189 = vpack.c.b16 %v725, %v721
    %v1190 = vpack.c.b16 %v726, %v722
    %v1191 = vpack.c.b16 %v727, %v723
    %v1192 = vpack.c.b16 %v728, %v724
    %v1193 = vpack.c.b16 %v733, %v729
    %v1194 = vpack.c.b16 %v734, %v730
    %v1195 = vpack.c.b16 %v735, %v731
    %v1196 = vpack.c.b16 %v736, %v732
    %v1197 = vpack.c.b16 %v741, %v737
    %v1198 = vpack.c.b16 %v742, %v738
    %v1199 = vpack.c.b16 %v743, %v739
    %v1200 = vpack.c.b16 %v744, %v740
    %v1201 = vpack.c.b16 %v749, %v745
    %v1202 = vpack.c.b16 %v750, %v746
    %v1203 = vpack.c.b16 %v751, %v747
    %v1204 = vpack.c.b16 %v752, %v748
    %v1205 = vpack.c.b16 %v757, %v753
    %v1206 = vpack.c.b16 %v758, %v754
    %v1207 = vpack.c.b16 %v759, %v755
    %v1208 = vpack.c.b16 %v760, %v756
    %v1209 = vpack.c.b16 %v765, %v761
    %v1210 = vpack.c.b16 %v766, %v762
    %v1211 = vpack.c.b16 %v767, %v763
    %v1212 = vpack.c.b16 %v768, %v764
    %v1213 = vpack.c.b16 %v773, %v769
    %v1214 = vpack.c.b16 %v774, %v770
    %v1215 = vpack.c.b16 %v775, %v771
    %v1216 = vpack.c.b16 %v776, %v772
    %v1217 = vpack.c.b16 %v781, %v777
    %v1218 = vpack.c.b16 %v782, %v778
    %v1219 = vpack.c.b16 %v783, %v779
    %v1220 = vpack.c.b16 %v784, %v780
    %v1221 = vpack.c.b16 %v789, %v785
    %v1222 = vpack.c.b16 %v790, %v786
    %v1223 = vpack.c.b16 %v791, %v787
    %v1224 = vpack.c.b16 %v792, %v788
    %v1225 = vpack.c.b16 %v797, %v793
    %v1226 = vpack.c.b16 %v798, %v794
    %v1227 = vpack.c.b16 %v799, %v795
    %v1228 = vpack.c.b16 %v800, %v796
    %v1229 = vpack.c.b16 %v805, %v801
    %v1230 = vpack.c.b16 %v806, %v802
    %v1231 = vpack.c.b16 %v807, %v803
    %v1232 = vpack.c.b16 %v808, %v804
    %v1233 = vpack.c.b16 %v813, %v809
    %v1234 = vpack.c.b16 %v814, %v810
    %v1235 = vpack.c.b16 %v815, %v811
    %v1236 = vpack.c.b16 %v816, %v812
    %v1237 = vpack.c.b16 %v821, %v817
    %v1238 = vpack.c.b16 %v822, %v818
    %v1239 = vpack.c.b16 %v823, %v819
    %v1240 = vpack.c.b16 %v824, %v820
    %v1241 = vpack.c.b16 %v829, %v825
    %v1242 = vpack.c.b16 %v830, %v826
    %v1243 = vpack.c.b16 %v831, %v827
    %v1244 = vpack.c.b16 %v832, %v828
    %v1245 = vpack.c.b16 %v837, %v833
    %v1246 = vpack.c.b16 %v838, %v834
    %v1247 = vpack.c.b16 %v839, %v835
    %v1248 = vpack.c.b16 %v840, %v836
    %v1249 = vpack.c.b16 %v845, %v841
    %v1250 = vpack.c.b16 %v846, %v842
    %v1251 = vpack.c.b16 %v847, %v843
    %v1252 = vpack.c.b16 %v848, %v844
    %v1253 = vpack.c.b16 %v853, %v849
    %v1254 = vpack.c.b16 %v854, %v850
    %v1255 = vpack.c.b16 %v855, %v851
    %v1256 = vpack.c.b16 %v856, %v852
    %v1257 = vpack.c.b16 %v861, %v857
    %v1258 = vpack.c.b16 %v862, %v858
    %v1259 = vpack.c.b16 %v863, %v859
    %v1260 = vpack.c.b16 %v864, %v860
    %v1261 = vpack.c.b16 %v869, %v865
    %v1262 = vpack.c.b16 %v870, %v866
    %v1263 = vpack.c.b16 %v871, %v867
    %v1264 = vpack.c.b16 %v872, %v868
    %v1265 = vpack.c.b16 %v877, %v873
    %v1266 = vpack.c.b16 %v878, %v874
    %v1267 = vpack.c.b16 %v879, %v875
    %v1268 = vpack.c.b16 %v880, %v876
    %v1269 = vpack.c.b16 %v885, %v881
    %v1270 = vpack.c.b16 %v886, %v882
    %v1271 = vpack.c.b16 %v887, %v883
    %v1272 = vpack.c.b16 %v888, %v884
    %v1273 = vpack.c.b16 %v893, %v889
    %v1274 = vpack.c.b16 %v894, %v890
    %v1275 = vpack.c.b16 %v895, %v891
    %v1276 = vpack.c.b16 %v896, %v892
    %v1277 = vpack.c.b16 %v901, %v897
    %v1278 = vpack.c.b16 %v902, %v898
    %v1279 = vpack.c.b16 %v903, %v899
    %v1280 = vpack.c.b16 %v904, %v900
    %v1281 = vpack.c.b16 %v909, %v905
    %v1282 = vpack.c.b16 %v910, %v906
    %v1283 = vpack.c.b16 %v911, %v907
    %v1284 = vpack.c.b16 %v912, %v908
    %v1285 = vpack.c.b16 %v917, %v913
    %v1286 = vpack.c.b16 %v918, %v914
    %v1287 = vpack.c.b16 %v919, %v915
    %v1288 = vpack.c.b16 %v920, %v916
    %v1289 = vpack.c.b16 %v925, %v921
    %v1290 = vpack.c.b16 %v926, %v922
    %v1291 = vpack.c.b16 %v927, %v923
    %v1292 = vpack.c.b16 %v928, %v924
    %v1293 = vpack.c.b16 %v933, %v929
    %v1294 = vpack.c.b16 %v934, %v930
    %v1295 = vpack.c.b16 %v935, %v931
    %v1296 = vpack.c.b16 %v936, %v932
    %v1297 = vpack.c.b16 %v941, %v937
    %v1298 = vpack.c.b16 %v942, %v938
    %v1299 = vpack.c.b16 %v943, %v939
    %v1300 = vpack.c.b16 %v944, %v940
    %v1301 = vpack.c.b16 %v949, %v945
    %v1302 = vpack.c.b16 %v950, %v946
    %v1303 = vpack.c.b16 %v951, %v947
    %v1304 = vpack.c.b16 %v952, %v948
    %v1305 = vpack.c.b16 %v957, %v953
    %v1306 = vpack.c.b16 %v958, %v954
    %v1307 = vpack.c.b16 %v959, %v955
    %v1308 = vpack.c.b16 %v960, %v956
    %v1309 = vpack.c.b16 %v965, %v961
    %v1310 = vpack.c.b16 %v966, %v962
    %v1311 = vpack.c.b16 %v967, %v963
    %v1312 = vpack.c.b16 %v968, %v964
    %v1313 = vpack.c.b16 %v973, %v969
    %v1314 = vpack.c.b16 %v974, %v970
    %v1315 = vpack.c.b16 %v975, %v971
    %v1316 = vpack.c.b16 %v976, %v972
    %v1317 = vpack.c.b16 %v981, %v977
    %v1318 = vpack.c.b16 %v982, %v978
    %v1319 = vpack.c.b16 %v983, %v979
    %v1320 = vpack.c.b16 %v984, %v980
    %v1321 = vpack.c.b16 %v989, %v985
    %v1322 = vpack.c.b16 %v990, %v986
    %v1323 = vpack.c.b16 %v991, %v987
    %v1324 = vpack.c.b16 %v992, %v988
    %v1325 = vpack.c.b16 %v997, %v993
    %v1326 = vpack.c.b16 %v998, %v994
    %v1327 = vpack.c.b16 %v999, %v995
    %v1328 = vpack.c.b16 %v1000, %v996
    %v1329 = vpack.c.b16 %v1005, %v1001
    %v1330 = vpack.c.b16 %v1006, %v1002
    %v1331 = vpack.c.b16 %v1007, %v1003
    %v1332 = vpack.c.b16 %v1008, %v1004
    %v1333 = vpack.c.b16 %v1013, %v1009
    %v1334 = vpack.c.b16 %v1014, %v1010
    %v1335 = vpack.c.b16 %v1015, %v1011
    %v1336 = vpack.c.b16 %v1016, %v1012
    %v1337 = vpack.c.b16 %v1021, %v1017
    %v1338 = vpack.c.b16 %v1022, %v1018
    %v1339 = vpack.c.b16 %v1023, %v1019
    %v1340 = vpack.c.b16 %v1024, %v1020
    %v1341 = vpack.c.b16 %v1029, %v1025
    %v1342 = vpack.c.b16 %v1030, %v1026
    %v1343 = vpack.c.b16 %v1031, %v1027
    %v1344 = vpack.c.b16 %v1032, %v1028
    %v1345 = vpack.c.b16 %v1037, %v1033
    %v1346 = vpack.c.b16 %v1038, %v1034
    %v1347 = vpack.c.b16 %v1039, %v1035
    %v1348 = vpack.c.b16 %v1040, %v1036
    %v1349 = vpack.c.b16 %v1045, %v1041
    %v1350 = vpack.c.b16 %v1046, %v1042
    %v1351 = vpack.c.b16 %v1047, %v1043
    %v1352 = vpack.c.b16 %v1048, %v1044
    %v1353 = vpack.c.b16 %v1053, %v1049
    %v1354 = vpack.c.b16 %v1054, %v1050
    %v1355 = vpack.c.b16 %v1055, %v1051
    %v1356 = vpack.c.b16 %v1056, %v1052
    %v1357 = vpack.c.b16 %v1061, %v1057
    %v1358 = vpack.c.b16 %v1062, %v1058
    %v1359 = vpack.c.b16 %v1063, %v1059
    %v1360 = vpack.c.b16 %v1064, %v1060
    %v1361 = vpack.c.b16 %v1069, %v1065
    %v1362 = vpack.c.b16 %v1070, %v1066
    %v1363 = vpack.c.b16 %v1071, %v1067
    %v1364 = vpack.c.b16 %v1072, %v1068
    %v1365 = vpack.c.b16 %v1077, %v1073
    %v1366 = vpack.c.b16 %v1078, %v1074
    %v1367 = vpack.c.b16 %v1079, %v1075
    %v1368 = vpack.c.b16 %v1080, %v1076
    %v1369 = vpack.c.b16 %v1085, %v1081
    %v1370 = vpack.c.b16 %v1086, %v1082
    %v1371 = vpack.c.b16 %v1087, %v1083
    %v1372 = vpack.c.b16 %v1088, %v1084
    %v1373 = vpack.c.b16 %v1093, %v1089
    %v1374 = vpack.c.b16 %v1094, %v1090
    %v1375 = vpack.c.b16 %v1095, %v1091
    %v1376 = vpack.c.b16 %v1096, %v1092
    %v1377 = vpack.c.b16 %v1101, %v1097
    %v1378 = vpack.c.b16 %v1102, %v1098
    %v1379 = vpack.c.b16 %v1103, %v1099
    %v1380 = vpack.c.b16 %v1104, %v1100
    %v1381 = vpack.c.b16 %v1109, %v1105
    %v1382 = vpack.c.b16 %v1110, %v1106
    %v1383 = vpack.c.b16 %v1111, %v1107
    %v1384 = vpack.c.b16 %v1112, %v1108
    %v1385 = vpack.c.b16 %v1117, %v1113
    %v1386 = vpack.c.b16 %v1118, %v1114
    %v1387 = vpack.c.b16 %v1119, %v1115
    %v1388 = vpack.c.b16 %v1120, %v1116
    %v1389 = vpack.c.b16 %v1125, %v1121
    %v1390 = vpack.c.b16 %v1126, %v1122
    %v1391 = vpack.c.b16 %v1127, %v1123
    %v1392 = vpack.c.b16 %v1128, %v1124
    %v1393 = vpack.c.b16 %v1133, %v1129
    %v1394 = vpack.c.b16 %v1134, %v1130
    %v1395 = vpack.c.b16 %v1135, %v1131
    %v1396 = vpack.c.b16 %v1136, %v1132
    %v1397 = vpack.c.b16 %v1141, %v1137
    %v1398 = vpack.c.b16 %v1142, %v1138
    %v1399 = vpack.c.b16 %v1143, %v1139
    %v1400 = vpack.c.b16 %v1144, %v1140
    %1657 = vmatprep.subr.bf16.mxu0 %v1146
    %1658 = vmatpush1.bf16.msra.mxu0 %v1145
    %1659 = vmatprep.subr.bf16.mxu0 %v1150
    %1660 = vmatpush1.bf16.msra.mxu0 %v1149
    %1661 = vmatprep.subr.bf16.mxu0 %v1154
    %1662 = vmatpush1.bf16.msra.mxu0 %v1153
    %1663 = vmatprep.subr.bf16.mxu0 %v1158
    %1664 = vmatpush1.bf16.msra.mxu0 %v1157
    %1665 = vmatprep.subr.bf16.mxu0 %v1162
    %1666 = vmatpush1.bf16.msra.mxu0 %v1161
    %1667 = vmatprep.subr.bf16.mxu0 %v1166
    %1668 = vmatpush1.bf16.msra.mxu0 %v1165
    %1669 = vmatprep.subr.bf16.mxu0 %v1170
    %1670 = vmatpush1.bf16.msra.mxu0 %v1169
    %1671 = vmatprep.subr.bf16.mxu0 %v1174
    %1672 = vmatpush1.bf16.msra.mxu0 %v1173
    %1673 = vmatprep.subr.bf16.mxu0 %v1178
    %1674 = vmatpush1.bf16.msra.mxu0 %v1177
    %1675 = vmatprep.subr.bf16.mxu0 %v1182
    %1676 = vmatpush1.bf16.msra.mxu0 %v1181
    %1677 = vmatprep.subr.bf16.mxu0 %v1186
    %1678 = vmatpush1.bf16.msra.mxu0 %v1185
    %1679 = vmatprep.subr.bf16.mxu0 %v1190
    %1680 = vmatpush1.bf16.msra.mxu0 %v1189
    %1681 = vmatprep.subr.bf16.mxu0 %v1194
    %1682 = vmatpush1.bf16.msra.mxu0 %v1193
    %1683 = vmatprep.subr.bf16.mxu0 %v1198
    %1684 = vmatpush1.bf16.msra.mxu0 %v1197
    %1685 = vmatprep.subr.bf16.mxu0 %v1202
    %1686 = vmatpush1.bf16.msra.mxu0 %v1201
    %1687 = vmatprep.subr.bf16.mxu0 %v1206
    %1688 = vmatpush1.bf16.msra.mxu0 %v1205
    %1689 = vmatprep.mubr.bf16.mxu0 %v357
    %1690 = vmatmul.mubr.bf16.gmra.mrb[0].mxu0 %v343
    %v1691 = vpop.f32.mrb[0].mxu0
    %v1692 = vadd.f32 %v302, %v1691
    %v1693 = vpop.f32.mrb[0].mxu0
    %v1694 = vadd.f32 %v306, %v1693
    %v1695 = vpop.f32.mrb[0].mxu0
    %v1696 = vpop.f32.mrb[0].mxu0
    %1697 = vdwg.mxu0
    %1698 = vmatprep.subr.bf16.mxu0 %v1210
    %1699 = vmatpush1.bf16.msra.mxu0 %v1209
    %1700 = vmatprep.subr.bf16.mxu0 %v1214
    %1701 = vmatpush1.bf16.msra.mxu0 %v1213
    %1702 = vmatprep.subr.bf16.mxu0 %v1218
    %1703 = vmatpush1.bf16.msra.mxu0 %v1217
    %1704 = vmatprep.subr.bf16.mxu0 %v1222
    %1705 = vmatpush1.bf16.msra.mxu0 %v1221
    %1706 = vmatprep.subr.bf16.mxu0 %v1226
    %1707 = vmatpush1.bf16.msra.mxu0 %v1225
    %1708 = vmatprep.subr.bf16.mxu0 %v1230
    %1709 = vmatpush1.bf16.msra.mxu0 %v1229
    %1710 = vmatprep.subr.bf16.mxu0 %v1234
    %1711 = vmatpush1.bf16.msra.mxu0 %v1233
    %1712 = vmatprep.subr.bf16.mxu0 %v1238
    %1713 = vmatpush1.bf16.msra.mxu0 %v1237
    %1714 = vmatprep.subr.bf16.mxu0 %v1242
    %1715 = vmatpush1.bf16.msra.mxu0 %v1241
    %1716 = vmatprep.subr.bf16.mxu0 %v1246
    %1717 = vmatpush1.bf16.msra.mxu0 %v1245
    %1718 = vmatprep.subr.bf16.mxu0 %v1250
    %1719 = vmatpush1.bf16.msra.mxu0 %v1249
    %1720 = vmatprep.subr.bf16.mxu0 %v1254
    %1721 = vmatpush1.bf16.msra.mxu0 %v1253
    %1722 = vmatprep.subr.bf16.mxu0 %v1258
    %1723 = vmatpush1.bf16.msra.mxu0 %v1257
    %1724 = vmatprep.subr.bf16.mxu0 %v1262
    %1725 = vmatpush1.bf16.msra.mxu0 %v1261
    %1726 = vmatprep.subr.bf16.mxu0 %v1266
    %1727 = vmatpush1.bf16.msra.mxu0 %v1265
    %1728 = vmatprep.subr.bf16.mxu0 %v1270
    %1729 = vmatpush1.bf16.msra.mxu0 %v1269
    %1730 = vmatprep.mubr.bf16.mxu0 %v367
    %1731 = vmatmul.mubr.bf16.gmra.mrb[0].mxu0 %v365
    %v1732 = vpop.f32.mrb[0].mxu0
    %v1733 = vadd.f32 %v1692, %v1732
    %v1734 = vpop.f32.mrb[0].mxu0
    %v1735 = vadd.f32 %v1694, %v1734
    %v1736 = vpop.f32.mrb[0].mxu0
    %v1737 = vpop.f32.mrb[0].mxu0
    %1738 = vdwg.mxu0
    %1739 = vmatprep.subr.bf16.mxu0 %v1274
    %1740 = vmatpush1.bf16.msra.mxu0 %v1273
    %1741 = vmatprep.subr.bf16.mxu0 %v1278
    %1742 = vmatpush1.bf16.msra.mxu0 %v1277
    %1743 = vmatprep.subr.bf16.mxu0 %v1282
    %1744 = vmatpush1.bf16.msra.mxu0 %v1281
    %1745 = vmatprep.subr.bf16.mxu0 %v1286
    %1746 = vmatpush1.bf16.msra.mxu0 %v1285
    %1747 = vmatprep.subr.bf16.mxu0 %v1290
    %1748 = vmatpush1.bf16.msra.mxu0 %v1289
    %1749 = vmatprep.subr.bf16.mxu0 %v1294
    %1750 = vmatpush1.bf16.msra.mxu0 %v1293
    %1751 = vmatprep.subr.bf16.mxu0 %v1298
    %1752 = vmatpush1.bf16.msra.mxu0 %v1297
    %1753 = vmatprep.subr.bf16.mxu0 %v1302
    %1754 = vmatpush1.bf16.msra.mxu0 %v1301
    %1755 = vmatprep.subr.bf16.mxu0 %v1306
    %1756 = vmatpush1.bf16.msra.mxu0 %v1305
    %1757 = vmatprep.subr.bf16.mxu0 %v1310
    %1758 = vmatpush1.bf16.msra.mxu0 %v1309
    %1759 = vmatprep.subr.bf16.mxu0 %v1314
    %1760 = vmatpush1.bf16.msra.mxu0 %v1313
    %1761 = vmatprep.subr.bf16.mxu0 %v1318
    %1762 = vmatpush1.bf16.msra.mxu0 %v1317
    %1763 = vmatprep.subr.bf16.mxu0 %v1322
    %1764 = vmatpush1.bf16.msra.mxu0 %v1321
    %1765 = vmatprep.subr.bf16.mxu0 %v1326
    %1766 = vmatpush1.bf16.msra.mxu0 %v1325
    %1767 = vmatprep.subr.bf16.mxu0 %v1330
    %1768 = vmatpush1.bf16.msra.mxu0 %v1329
    %1769 = vmatprep.subr.bf16.mxu0 %v1334
    %1770 = vmatpush1.bf16.msra.mxu0 %v1333
    %1771 = vmatprep.mubr.bf16.mxu0 %v364
    %1772 = vmatmul.mubr.bf16.gmra.mrb[0].mxu0 %v350
    %v1773 = vpop.f32.mrb[0].mxu0
    %v1774 = vadd.f32 %v1733, %v1773
    %v1775 = vpop.f32.mrb[0].mxu0
    %v1776 = vadd.f32 %v1735, %v1775
    %v1777 = vpop.f32.mrb[0].mxu0
    %v1778 = vpop.f32.mrb[0].mxu0
    %1779 = vdwg.mxu0
    %1780 = vmatprep.subr.bf16.mxu0 %v1338
    %1781 = vmatpush1.bf16.msra.mxu0 %v1337
    %1782 = vmatprep.subr.bf16.mxu0 %v1342
    %1783 = vmatpush1.bf16.msra.mxu0 %v1341
    %1784 = vmatprep.subr.bf16.mxu0 %v1346
    %1785 = vmatpush1.bf16.msra.mxu0 %v1345
    %1786 = vmatprep.subr.bf16.mxu0 %v1350
    %1787 = vmatpush1.bf16.msra.mxu0 %v1349
    %1788 = vmatprep.subr.bf16.mxu0 %v1354
    %1789 = vmatpush1.bf16.msra.mxu0 %v1353
    %1790 = vmatprep.subr.bf16.mxu0 %v1358
    %1791 = vmatpush1.bf16.msra.mxu0 %v1357
    %1792 = vmatprep.subr.bf16.mxu0 %v1362
    %1793 = vmatpush1.bf16.msra.mxu0 %v1361
    %1794 = vmatprep.subr.bf16.mxu0 %v1366
    %1795 = vmatpush1.bf16.msra.mxu0 %v1365
    %1796 = vmatprep.subr.bf16.mxu0 %v1370
    %1797 = vmatpush1.bf16.msra.mxu0 %v1369
    %1798 = vmatprep.subr.bf16.mxu0 %v1374
    %1799 = vmatpush1.bf16.msra.mxu0 %v1373
    %1800 = vmatprep.subr.bf16.mxu0 %v1378
    %1801 = vmatpush1.bf16.msra.mxu0 %v1377
    %1802 = vmatprep.subr.bf16.mxu0 %v1382
    %1803 = vmatpush1.bf16.msra.mxu0 %v1381
    %1804 = vmatprep.subr.bf16.mxu0 %v1386
    %1805 = vmatpush1.bf16.msra.mxu0 %v1385
    %1806 = vmatprep.subr.bf16.mxu0 %v1390
    %1807 = vmatpush1.bf16.msra.mxu0 %v1389
    %1808 = vmatprep.subr.bf16.mxu0 %v1394
    %1809 = vmatpush1.bf16.msra.mxu0 %v1393
    %1810 = vmatprep.subr.bf16.mxu0 %v1398
    %1811 = vmatpush1.bf16.msra.mxu0 %v1397
    %1812 = vmatprep.mubr.bf16.mxu0 %v368
    %1813 = vmatmul.mubr.bf16.gmra.mrb[0].mxu0 %v366
    %v1814 = vpop.f32.mrb[0].mxu0
    %v1815 = vadd.f32 %v1774, %v1814
    %v1816 = vpop.f32.mrb[0].mxu0
    %v1817 = vadd.f32 %v1776, %v1816
    %v1818 = vpop.f32.mrb[0].mxu0
    %v1819 = vpop.f32.mrb[0].mxu0
    %1820 = vdwg.mxu0
    %1821 = vmatprep.subr.bf16.mxu0 %v1148
    %1822 = vmatpush1.bf16.msra.mxu0 %v1147
    %1823 = vmatprep.subr.bf16.mxu0 %v1152
    %1824 = vmatpush1.bf16.msra.mxu0 %v1151
    %1825 = vmatprep.subr.bf16.mxu0 %v1156
    %1826 = vmatpush1.bf16.msra.mxu0 %v1155
    %1827 = vmatprep.subr.bf16.mxu0 %v1160
    %1828 = vmatpush1.bf16.msra.mxu0 %v1159
    %1829 = vmatprep.subr.bf16.mxu0 %v1164
    %1830 = vmatpush1.bf16.msra.mxu0 %v1163
    %1831 = vmatprep.subr.bf16.mxu0 %v1168
    %1832 = vmatpush1.bf16.msra.mxu0 %v1167
    %1833 = vmatprep.subr.bf16.mxu0 %v1172
    %1834 = vmatpush1.bf16.msra.mxu0 %v1171
    %1835 = vmatprep.subr.bf16.mxu0 %v1176
    %1836 = vmatpush1.bf16.msra.mxu0 %v1175
    %1837 = vmatprep.subr.bf16.mxu0 %v1180
    %1838 = vmatpush1.bf16.msra.mxu0 %v1179
    %1839 = vmatprep.subr.bf16.mxu0 %v1184
    %1840 = vmatpush1.bf16.msra.mxu0 %v1183
    %1841 = vmatprep.subr.bf16.mxu0 %v1188
    %1842 = vmatpush1.bf16.msra.mxu0 %v1187
    %1843 = vmatprep.subr.bf16.mxu0 %v1192
    %1844 = vmatpush1.bf16.msra.mxu0 %v1191
    %1845 = vmatprep.subr.bf16.mxu0 %v1196
    %1846 = vmatpush1.bf16.msra.mxu0 %v1195
    %1847 = vmatprep.subr.bf16.mxu0 %v1200
    %1848 = vmatpush1.bf16.msra.mxu0 %v1199
    %1849 = vmatprep.subr.bf16.mxu0 %v1204
    %1850 = vmatpush1.bf16.msra.mxu0 %v1203
    %1851 = vmatprep.subr.bf16.mxu0 %v1208
    %1852 = vmatpush1.bf16.msra.mxu0 %v1207
    %1853 = vmatprep.mubr.bf16.mxu0 %v357
    %1854 = vmatmul.mubr.bf16.gmra.mrb[0].mxu0 %v343
    %v1855 = vpop.f32.mrb[0].mxu0
    %v1856 = vadd.f32 %v310, %v1855
    %v1857 = vpop.f32.mrb[0].mxu0
    %v1858 = vadd.f32 %v314, %v1857
    %v1859 = vpop.f32.mrb[0].mxu0
    %v1860 = vpop.f32.mrb[0].mxu0
    %1861 = vdwg.mxu0
    %1862 = vmatprep.subr.bf16.mxu0 %v1212
    %1863 = vmatpush1.bf16.msra.mxu0 %v1211
    %1864 = vmatprep.subr.bf16.mxu0 %v1216
    %1865 = vmatpush1.bf16.msra.mxu0 %v1215
    %1866 = vmatprep.subr.bf16.mxu0 %v1220
    %1867 = vmatpush1.bf16.msra.mxu0 %v1219
    %1868 = vmatprep.subr.bf16.mxu0 %v1224
    %1869 = vmatpush1.bf16.msra.mxu0 %v1223
    %1870 = vmatprep.subr.bf16.mxu0 %v1228
    %1871 = vmatpush1.bf16.msra.mxu0 %v1227
    %1872 = vmatprep.subr.bf16.mxu0 %v1232
    %1873 = vmatpush1.bf16.msra.mxu0 %v1231
    %1874 = vmatprep.subr.bf16.mxu0 %v1236
    %1875 = vmatpush1.bf16.msra.mxu0 %v1235
    %1876 = vmatprep.subr.bf16.mxu0 %v1240
    %1877 = vmatpush1.bf16.msra.mxu0 %v1239
    %1878 = vmatprep.subr.bf16.mxu0 %v1244
    %1879 = vmatpush1.bf16.msra.mxu0 %v1243
    %1880 = vmatprep.subr.bf16.mxu0 %v1248
    %1881 = vmatpush1.bf16.msra.mxu0 %v1247
    %1882 = vmatprep.subr.bf16.mxu0 %v1252
    %1883 = vmatpush1.bf16.msra.mxu0 %v1251
    %1884 = vmatprep.subr.bf16.mxu0 %v1256
    %1885 = vmatpush1.bf16.msra.mxu0 %v1255
    %1886 = vmatprep.subr.bf16.mxu0 %v1260
    %1887 = vmatpush1.bf16.msra.mxu0 %v1259
    %1888 = vmatprep.subr.bf16.mxu0 %v1264
    %1889 = vmatpush1.bf16.msra.mxu0 %v1263
    %1890 = vmatprep.subr.bf16.mxu0 %v1268
    %1891 = vmatpush1.bf16.msra.mxu0 %v1267
    %1892 = vmatprep.subr.bf16.mxu0 %v1272
    %1893 = vmatpush1.bf16.msra.mxu0 %v1271
    %1894 = vmatprep.mubr.bf16.mxu0 %v367
    %1895 = vmatmul.mubr.bf16.gmra.mrb[0].mxu0 %v365
    %v1896 = vpop.f32.mrb[0].mxu0
    %v1897 = vadd.f32 %v1856, %v1896
    %v1898 = vpop.f32.mrb[0].mxu0
    %v1899 = vadd.f32 %v1858, %v1898
    %v1900 = vpop.f32.mrb[0].mxu0
    %v1901 = vpop.f32.mrb[0].mxu0
    %1902 = vdwg.mxu0
    %1903 = vmatprep.subr.bf16.mxu0 %v1276
    %1904 = vmatpush1.bf16.msra.mxu0 %v1275
    %1905 = vmatprep.subr.bf16.mxu0 %v1280
    %1906 = vmatpush1.bf16.msra.mxu0 %v1279
    %1907 = vmatprep.subr.bf16.mxu0 %v1284
    %1908 = vmatpush1.bf16.msra.mxu0 %v1283
    %1909 = vmatprep.subr.bf16.mxu0 %v1288
    %1910 = vmatpush1.bf16.msra.mxu0 %v1287
    %1911 = vmatprep.subr.bf16.mxu0 %v1292
    %1912 = vmatpush1.bf16.msra.mxu0 %v1291
    %1913 = vmatprep.subr.bf16.mxu0 %v1296
    %1914 = vmatpush1.bf16.msra.mxu0 %v1295
    %1915 = vmatprep.subr.bf16.mxu0 %v1300
    %1916 = vmatpush1.bf16.msra.mxu0 %v1299
    %1917 = vmatprep.subr.bf16.mxu0 %v1304
    %1918 = vmatpush1.bf16.msra.mxu0 %v1303
    %1919 = vmatprep.subr.bf16.mxu0 %v1308
    %1920 = vmatpush1.bf16.msra.mxu0 %v1307
    %1921 = vmatprep.subr.bf16.mxu0 %v1312
    %1922 = vmatpush1.bf16.msra.mxu0 %v1311
    %1923 = vmatprep.subr.bf16.mxu0 %v1316
    %1924 = vmatpush1.bf16.msra.mxu0 %v1315
    %1925 = vmatprep.subr.bf16.mxu0 %v1320
    %1926 = vmatpush1.bf16.msra.mxu0 %v1319
    %1927 = vmatprep.subr.bf16.mxu0 %v1324
    %1928 = vmatpush1.bf16.msra.mxu0 %v1323
    %1929 = vmatprep.subr.bf16.mxu0 %v1328
    %1930 = vmatpush1.bf16.msra.mxu0 %v1327
    %1931 = vmatprep.subr.bf16.mxu0 %v1332
    %1932 = vmatpush1.bf16.msra.mxu0 %v1331
    %1933 = vmatprep.subr.bf16.mxu0 %v1336
    %1934 = vmatpush1.bf16.msra.mxu0 %v1335
    %1935 = vmatprep.mubr.bf16.mxu0 %v364
    %1936 = vmatmul.mubr.bf16.gmra.mrb[0].mxu0 %v350
    %v1937 = vpop.f32.mrb[0].mxu0
    %v1938 = vadd.f32 %v1897, %v1937
    %v1939 = vpop.f32.mrb[0].mxu0
    %v1940 = vadd.f32 %v1899, %v1939
    %v1941 = vpop.f32.mrb[0].mxu0
    %v1942 = vpop.f32.mrb[0].mxu0
    %1943 = vdwg.mxu0
    %1944 = vmatprep.subr.bf16.mxu0 %v1340
    %1945 = vmatpush1.bf16.msra.mxu0 %v1339
    %1946 = vmatprep.subr.bf16.mxu0 %v1344
    %1947 = vmatpush1.bf16.msra.mxu0 %v1343
    %1948 = vmatprep.subr.bf16.mxu0 %v1348
    %1949 = vmatpush1.bf16.msra.mxu0 %v1347
    %1950 = vmatprep.subr.bf16.mxu0 %v1352
    %1951 = vmatpush1.bf16.msra.mxu0 %v1351
    %1952 = vmatprep.subr.bf16.mxu0 %v1356
    %1953 = vmatpush1.bf16.msra.mxu0 %v1355
    %1954 = vmatprep.subr.bf16.mxu0 %v1360
    %1955 = vmatpush1.bf16.msra.mxu0 %v1359
    %1956 = vmatprep.subr.bf16.mxu0 %v1364
    %1957 = vmatpush1.bf16.msra.mxu0 %v1363
    %1958 = vmatprep.subr.bf16.mxu0 %v1368
    %1959 = vmatpush1.bf16.msra.mxu0 %v1367
    %1960 = vmatprep.subr.bf16.mxu0 %v1372
    %1961 = vmatpush1.bf16.msra.mxu0 %v1371
    %1962 = vmatprep.subr.bf16.mxu0 %v1376
    %1963 = vmatpush1.bf16.msra.mxu0 %v1375
    %1964 = vmatprep.subr.bf16.mxu0 %v1380
    %1965 = vmatpush1.bf16.msra.mxu0 %v1379
    %1966 = vmatprep.subr.bf16.mxu0 %v1384
    %1967 = vmatpush1.bf16.msra.mxu0 %v1383
    %1968 = vmatprep.subr.bf16.mxu0 %v1388
    %1969 = vmatpush1.bf16.msra.mxu0 %v1387
    %1970 = vmatprep.subr.bf16.mxu0 %v1392
    %1971 = vmatpush1.bf16.msra.mxu0 %v1391
    %1972 = vmatprep.subr.bf16.mxu0 %v1396
    %1973 = vmatpush1.bf16.msra.mxu0 %v1395
    %1974 = vmatprep.subr.bf16.mxu0 %v1400
    %1975 = vmatpush1.bf16.msra.mxu0 %v1399
    %1976 = vmatprep.mubr.bf16.mxu0 %v368
    %1977 = vmatmul.mubr.bf16.gmra.mrb[0].mxu0 %v366
    %v1978 = vpop.f32.mrb[0].mxu0
    %v1979 = vadd.f32 %v1938, %v1978
    %v1980 = vpop.f32.mrb[0].mxu0
    %v1981 = vadd.f32 %v1940, %v1980
    %v1982 = vpop.f32.mrb[0].mxu0
    %v1983 = vpop.f32.mrb[0].mxu0
    %1984 = vdwg.mxu0
    %v1985 = vmax.f32 %v1815, 0.0
    %v1986 = vmax.f32 %v1817, 0.0
    %v1987 = vmax.f32 %v1979, 0.0
    %v1988 = vmax.f32 %v1981, 0.0
    %v1989 = vpack.c.bf16 %v1985, %v1985
    %v1990 = vpack.c.bf16 %v1986, %v1986
    %v1991 = vpack.c.bf16 %v1987, %v1987
    %v1992 = vpack.c.bf16 %v1988, %v1988
    %v1993 = vld [vmem:[%s3] sm:$0xff]
    %v1994 = vld [vmem:[%s3 + $0x8] sm:$0xff]
    %v1995 = vld [vmem:[%s3 + $0x10] sm:$0xff]
    %v1996 = vld [vmem:[%s3 + $0x18] sm:$0xff]
    %v1997 = vld [vmem:[%s3 + $0x20] sm:$0xff]
    %v1998 = vld [vmem:[%s3 + $0x28] sm:$0xff]
    %v1999 = vld [vmem:[%s3 + $0x30] sm:$0xff]
    %v2000 = vld [vmem:[%s3 + $0x38] sm:$0xff]
    %v2001 = vld [vmem:[%s3 + $0x40] sm:$0xff]
    %v2002 = vld [vmem:[%s3 + $0x48] sm:$0xff]
    %v2003 = vld [vmem:[%s3 + $0x50] sm:$0xff]
    %v2004 = vld [vmem:[%s3 + $0x58] sm:$0xff]
    %v2005 = vld [vmem:[%s3 + $0x60] sm:$0xff]
    %v2006 = vld [vmem:[%s3 + $0x68] sm:$0xff]
    %v2007 = vld [vmem:[%s3 + $0x70] sm:$0xff]
    %v2008 = vld [vmem:[%s3 + $0x78] sm:$0xff]
    %v2009 = vld [vmem:[%s3 + $0x80] sm:$0xff]
    %v2010 = vld [vmem:[%s3 + $0x88] sm:$0xff]
    %v2011 = vld [vmem:[%s3 + $0x90] sm:$0xff]
    %v2012 = vld [vmem:[%s3 + $0x98] sm:$0xff]
    %v2013 = vld [vmem:[%s3 + $0xa0] sm:$0xff]
    %v2014 = vld [vmem:[%s3 + $0xa8] sm:$0xff]
    %v2015 = vld [vmem:[%s3 + $0xb0] sm:$0xff]
    %v2016 = vld [vmem:[%s3 + $0xb8] sm:$0xff]
    %v2017 = vld [vmem:[%s3 + $0xc0] sm:$0xff]
    %v2018 = vld [vmem:[%s3 + $0xc8] sm:$0xff]
    %v2019 = vld [vmem:[%s3 + $0xd0] sm:$0xff]
    %v2020 = vld [vmem:[%s3 + $0xd8] sm:$0xff]
    %v2021 = vld [vmem:[%s3 + $0xe0] sm:$0xff]
    %v2022 = vld [vmem:[%s3 + $0xe8] sm:$0xff]
    %v2023 = vld [vmem:[%s3 + $0xf0] sm:$0xff]
    %v2024 = vld [vmem:[%s3 + $0xf8] sm:$0xff]
    %v2025 = vld [vmem:[%s3 + $0x100] sm:$0xff]
    %v2026 = vld [vmem:[%s3 + $0x108] sm:$0xff]
    %v2027 = vld [vmem:[%s3 + $0x110] sm:$0xff]
    %v2028 = vld [vmem:[%s3 + $0x118] sm:$0xff]
    %v2029 = vld [vmem:[%s3 + $0x120] sm:$0xff]
    %v2030 = vld [vmem:[%s3 + $0x128] sm:$0xff]
    %v2031 = vld [vmem:[%s3 + $0x130] sm:$0xff]
    %v2032 = vld [vmem:[%s3 + $0x138] sm:$0xff]
    %v2033 = vld [vmem:[%s3 + $0x140] sm:$0xff]
    %v2034 = vld [vmem:[%s3 + $0x148] sm:$0xff]
    %v2035 = vld [vmem:[%s3 + $0x150] sm:$0xff]
    %v2036 = vld [vmem:[%s3 + $0x158] sm:$0xff]
    %v2037 = vld [vmem:[%s3 + $0x160] sm:$0xff]
    %v2038 = vld [vmem:[%s3 + $0x168] sm:$0xff]
    %v2039 = vld [vmem:[%s3 + $0x170] sm:$0xff]
    %v2040 = vld [vmem:[%s3 + $0x178] sm:$0xff]
    %v2041 = vld [vmem:[%s3 + $0x180] sm:$0xff]
    %v2042 = vld [vmem:[%s3 + $0x188] sm:$0xff]
    %v2043 = vld [vmem:[%s3 + $0x190] sm:$0xff]
    %v2044 = vld [vmem:[%s3 + $0x198] sm:$0xff]
    %v2045 = vld [vmem:[%s3 + $0x1a0] sm:$0xff]
    %v2046 = vld [vmem:[%s3 + $0x1a8] sm:$0xff]
    %v2047 = vld [vmem:[%s3 + $0x1b0] sm:$0xff]
    %v2048 = vld [vmem:[%s3 + $0x1b8] sm:$0xff]
    %v2049 = vld [vmem:[%s3 + $0x1c0] sm:$0xff]
    %v2050 = vld [vmem:[%s3 + $0x1c8] sm:$0xff]
    %v2051 = vld [vmem:[%s3 + $0x1d0] sm:$0xff]
    %v2052 = vld [vmem:[%s3 + $0x1d8] sm:$0xff]
    %v2053 = vld [vmem:[%s3 + $0x1e0] sm:$0xff]
    %v2054 = vld [vmem:[%s3 + $0x1e8] sm:$0xff]
    %v2055 = vld [vmem:[%s3 + $0x1f0] sm:$0xff]
    %v2056 = vld [vmem:[%s3 + $0x1f8] sm:$0xff]
    %v2057 = vld [vmem:[%s4] sm:$0x3]
    %v2059 = vlaneseq
    %v2060 = vshrl.u32 %v2059, 7
    %v2061 = vsub.s32 0, %v2060
    %v2062 = vrot.slane %v2057, %v2061
    %v2063 = vlaneseq
    %v2064 = vshrl.u32 %v2063, 7
    %v2065 = vsub.s32 1, %v2064
    %v2066 = vrot.slane %v2057, %v2065
    %v2133 = vunpack.c.l.b16 %v1993
    %v2134 = vunpack.c.h.b16 %v1993
    %v2135 = vunpack.c.l.b16 %v1994
    %v2136 = vunpack.c.h.b16 %v1994
    %v2137 = vunpack.c.l.b16 %v1995
    %v2138 = vunpack.c.h.b16 %v1995
    %v2139 = vunpack.c.l.b16 %v1996
    %v2140 = vunpack.c.h.b16 %v1996
    %v2141 = vunpack.c.l.b16 %v1997
    %v2142 = vunpack.c.h.b16 %v1997
    %v2143 = vunpack.c.l.b16 %v1998
    %v2144 = vunpack.c.h.b16 %v1998
    %v2145 = vunpack.c.l.b16 %v1999
    %v2146 = vunpack.c.h.b16 %v1999
    %v2147 = vunpack.c.l.b16 %v2000
    %v2148 = vunpack.c.h.b16 %v2000
    %v2149 = vunpack.c.l.b16 %v2001
    %v2150 = vunpack.c.h.b16 %v2001
    %v2151 = vunpack.c.l.b16 %v2002
    %v2152 = vunpack.c.h.b16 %v2002
    %v2153 = vunpack.c.l.b16 %v2003
    %v2154 = vunpack.c.h.b16 %v2003
    %v2155 = vunpack.c.l.b16 %v2004
    %v2156 = vunpack.c.h.b16 %v2004
    %v2157 = vunpack.c.l.b16 %v2005
    %v2158 = vunpack.c.h.b16 %v2005
    %v2159 = vunpack.c.l.b16 %v2006
    %v2160 = vunpack.c.h.b16 %v2006
    %v2161 = vunpack.c.l.b16 %v2007
    %v2162 = vunpack.c.h.b16 %v2007
    %v2163 = vunpack.c.l.b16 %v2008
    %v2164 = vunpack.c.h.b16 %v2008
    %v2165 = vunpack.c.l.b16 %v2009
    %v2166 = vunpack.c.h.b16 %v2009
    %v2167 = vunpack.c.l.b16 %v2010
    %v2168 = vunpack.c.h.b16 %v2010
    %v2169 = vunpack.c.l.b16 %v2011
    %v2170 = vunpack.c.h.b16 %v2011
    %v2171 = vunpack.c.l.b16 %v2012
    %v2172 = vunpack.c.h.b16 %v2012
    %v2173 = vunpack.c.l.b16 %v2013
    %v2174 = vunpack.c.h.b16 %v2013
    %v2175 = vunpack.c.l.b16 %v2014
    %v2176 = vunpack.c.h.b16 %v2014
    %v2177 = vunpack.c.l.b16 %v2015
    %v2178 = vunpack.c.h.b16 %v2015
    %v2179 = vunpack.c.l.b16 %v2016
    %v2180 = vunpack.c.h.b16 %v2016
    %v2181 = vunpack.c.l.b16 %v2017
    %v2182 = vunpack.c.h.b16 %v2017
    %v2183 = vunpack.c.l.b16 %v2018
    %v2184 = vunpack.c.h.b16 %v2018
    %v2185 = vunpack.c.l.b16 %v2019
    %v2186 = vunpack.c.h.b16 %v2019
    %v2187 = vunpack.c.l.b16 %v2020
    %v2188 = vunpack.c.h.b16 %v2020
    %v2189 = vunpack.c.l.b16 %v2021
    %v2190 = vunpack.c.h.b16 %v2021
    %v2191 = vunpack.c.l.b16 %v2022
    %v2192 = vunpack.c.h.b16 %v2022
    %v2193 = vunpack.c.l.b16 %v2023
    %v2194 = vunpack.c.h.b16 %v2023
    %v2195 = vunpack.c.l.b16 %v2024
    %v2196 = vunpack.c.h.b16 %v2024
    %v2197 = vunpack.c.l.b16 %v2025
    %v2198 = vunpack.c.h.b16 %v2025
    %v2199 = vunpack.c.l.b16 %v2026
    %v2200 = vunpack.c.h.b16 %v2026
    %v2201 = vunpack.c.l.b16 %v2027
    %v2202 = vunpack.c.h.b16 %v2027
    %v2203 = vunpack.c.l.b16 %v2028
    %v2204 = vunpack.c.h.b16 %v2028
    %v2205 = vunpack.c.l.b16 %v2029
    %v2206 = vunpack.c.h.b16 %v2029
    %v2207 = vunpack.c.l.b16 %v2030
    %v2208 = vunpack.c.h.b16 %v2030
    %v2209 = vunpack.c.l.b16 %v2031
    %v2210 = vunpack.c.h.b16 %v2031
    %v2211 = vunpack.c.l.b16 %v2032
    %v2212 = vunpack.c.h.b16 %v2032
    %v2213 = vunpack.c.l.b16 %v2033
    %v2214 = vunpack.c.h.b16 %v2033
    %v2215 = vunpack.c.l.b16 %v2034
    %v2216 = vunpack.c.h.b16 %v2034
    %v2217 = vunpack.c.l.b16 %v2035
    %v2218 = vunpack.c.h.b16 %v2035
    %v2219 = vunpack.c.l.b16 %v2036
    %v2220 = vunpack.c.h.b16 %v2036
    %v2221 = vunpack.c.l.b16 %v2037
    %v2222 = vunpack.c.h.b16 %v2037
    %v2223 = vunpack.c.l.b16 %v2038
    %v2224 = vunpack.c.h.b16 %v2038
    %v2225 = vunpack.c.l.b16 %v2039
    %v2226 = vunpack.c.h.b16 %v2039
    %v2227 = vunpack.c.l.b16 %v2040
    %v2228 = vunpack.c.h.b16 %v2040
    %v2229 = vunpack.c.l.b16 %v2041
    %v2230 = vunpack.c.h.b16 %v2041
    %v2231 = vunpack.c.l.b16 %v2042
    %v2232 = vunpack.c.h.b16 %v2042
    %v2233 = vunpack.c.l.b16 %v2043
    %v2234 = vunpack.c.h.b16 %v2043
    %v2235 = vunpack.c.l.b16 %v2044
    %v2236 = vunpack.c.h.b16 %v2044
    %v2237 = vunpack.c.l.b16 %v2045
    %v2238 = vunpack.c.h.b16 %v2045
    %v2239 = vunpack.c.l.b16 %v2046
    %v2240 = vunpack.c.h.b16 %v2046
    %v2241 = vunpack.c.l.b16 %v2047
    %v2242 = vunpack.c.h.b16 %v2047
    %v2243 = vunpack.c.l.b16 %v2048
    %v2244 = vunpack.c.h.b16 %v2048
    %v2245 = vunpack.c.l.b16 %v2049
    %v2246 = vunpack.c.h.b16 %v2049
    %v2247 = vunpack.c.l.b16 %v2050
    %v2248 = vunpack.c.h.b16 %v2050
    %v2249 = vunpack.c.l.b16 %v2051
    %v2250 = vunpack.c.h.b16 %v2051
    %v2251 = vunpack.c.l.b16 %v2052
    %v2252 = vunpack.c.h.b16 %v2052
    %v2253 = vunpack.c.l.b16 %v2053
    %v2254 = vunpack.c.h.b16 %v2053
    %v2255 = vunpack.c.l.b16 %v2054
    %v2256 = vunpack.c.h.b16 %v2054
    %v2257 = vunpack.c.l.b16 %v2055
    %v2258 = vunpack.c.h.b16 %v2055
    %v2259 = vunpack.c.l.b16 %v2056
    %v2260 = vunpack.c.h.b16 %v2056
    %v2261 = vpack.c.b16 %v2135, %v2133
    %v2262 = vpack.c.b16 %v2136, %v2134
    %v2263 = vpack.c.b16 %v2139, %v2137
    %v2264 = vpack.c.b16 %v2140, %v2138
    %v2265 = vpack.c.b16 %v2143, %v2141
    %v2266 = vpack.c.b16 %v2144, %v2142
    %v2267 = vpack.c.b16 %v2147, %v2145
    %v2268 = vpack.c.b16 %v2148, %v2146
    %v2269 = vpack.c.b16 %v2151, %v2149
    %v2270 = vpack.c.b16 %v2152, %v2150
    %v2271 = vpack.c.b16 %v2155, %v2153
    %v2272 = vpack.c.b16 %v2156, %v2154
    %v2273 = vpack.c.b16 %v2159, %v2157
    %v2274 = vpack.c.b16 %v2160, %v2158
    %v2275 = vpack.c.b16 %v2163, %v2161
    %v2276 = vpack.c.b16 %v2164, %v2162
    %v2277 = vpack.c.b16 %v2167, %v2165
    %v2278 = vpack.c.b16 %v2168, %v2166
    %v2279 = vpack.c.b16 %v2171, %v2169
    %v2280 = vpack.c.b16 %v2172, %v2170
    %v2281 = vpack.c.b16 %v2175, %v2173
    %v2282 = vpack.c.b16 %v2176, %v2174
    %v2283 = vpack.c.b16 %v2179, %v2177
    %v2284 = vpack.c.b16 %v2180, %v2178
    %v2285 = vpack.c.b16 %v2183, %v2181
    %v2286 = vpack.c.b16 %v2184, %v2182
    %v2287 = vpack.c.b16 %v2187, %v2185
    %v2288 = vpack.c.b16 %v2188, %v2186
    %v2289 = vpack.c.b16 %v2191, %v2189
    %v2290 = vpack.c.b16 %v2192, %v2190
    %v2291 = vpack.c.b16 %v2195, %v2193
    %v2292 = vpack.c.b16 %v2196, %v2194
    %v2293 = vpack.c.b16 %v2199, %v2197
    %v2294 = vpack.c.b16 %v2200, %v2198
    %v2295 = vpack.c.b16 %v2203, %v2201
    %v2296 = vpack.c.b16 %v2204, %v2202
    %v2297 = vpack.c.b16 %v2207, %v2205
    %v2298 = vpack.c.b16 %v2208, %v2206
    %v2299 = vpack.c.b16 %v2211, %v2209
    %v2300 = vpack.c.b16 %v2212, %v2210
    %v2301 = vpack.c.b16 %v2215, %v2213
    %v2302 = vpack.c.b16 %v2216, %v2214
    %v2303 = vpack.c.b16 %v2219, %v2217
    %v2304 = vpack.c.b16 %v2220, %v2218
    %v2305 = vpack.c.b16 %v2223, %v2221
    %v2306 = vpack.c.b16 %v2224, %v2222
    %v2307 = vpack.c.b16 %v2227, %v2225
    %v2308 = vpack.c.b16 %v2228, %v2226
    %v2309 = vpack.c.b16 %v2231, %v2229
    %v2310 = vpack.c.b16 %v2232, %v2230
    %v2311 = vpack.c.b16 %v2235, %v2233
    %v2312 = vpack.c.b16 %v2236, %v2234
    %v2313 = vpack.c.b16 %v2239, %v2237
    %v2314 = vpack.c.b16 %v2240, %v2238
    %v2315 = vpack.c.b16 %v2243, %v2241
    %v2316 = vpack.c.b16 %v2244, %v2242
    %v2317 = vpack.c.b16 %v2247, %v2245
    %v2318 = vpack.c.b16 %v2248, %v2246
    %v2319 = vpack.c.b16 %v2251, %v2249
    %v2320 = vpack.c.b16 %v2252, %v2250
    %v2321 = vpack.c.b16 %v2255, %v2253
    %v2322 = vpack.c.b16 %v2256, %v2254
    %v2323 = vpack.c.b16 %v2259, %v2257
    %v2324 = vpack.c.b16 %v2260, %v2258
    %2389 = vmatprep.subr.bf16.mxu0 %v2262
    %2390 = vmatpush1.bf16.msra.mxu0 %v2261
    %2391 = vmatprep.subr.bf16.mxu0 %v2264
    %2392 = vmatpush1.bf16.msra.mxu0 %v2263
    %2393 = vmatprep.subr.bf16.mxu0 %v2266
    %2394 = vmatpush1.bf16.msra.mxu0 %v2265
    %2395 = vmatprep.subr.bf16.mxu0 %v2268
    %2396 = vmatpush1.bf16.msra.mxu0 %v2267
    %2397 = vmatprep.subr.bf16.mxu0 %v2270
    %2398 = vmatpush1.bf16.msra.mxu0 %v2269
    %2399 = vmatprep.subr.bf16.mxu0 %v2272
    %2400 = vmatpush1.bf16.msra.mxu0 %v2271
    %2401 = vmatprep.subr.bf16.mxu0 %v2274
    %2402 = vmatpush1.bf16.msra.mxu0 %v2273
    %2403 = vmatprep.subr.bf16.mxu0 %v2276
    %2404 = vmatpush1.bf16.msra.mxu0 %v2275
    %2405 = vmatprep.subr.bf16.mxu0 %v2278
    %2406 = vmatpush1.bf16.msra.mxu0 %v2277
    %2407 = vmatprep.subr.bf16.mxu0 %v2280
    %2408 = vmatpush1.bf16.msra.mxu0 %v2279
    %2409 = vmatprep.subr.bf16.mxu0 %v2282
    %2410 = vmatpush1.bf16.msra.mxu0 %v2281
    %2411 = vmatprep.subr.bf16.mxu0 %v2284
    %2412 = vmatpush1.bf16.msra.mxu0 %v2283
    %2413 = vmatprep.subr.bf16.mxu0 %v2286
    %2414 = vmatpush1.bf16.msra.mxu0 %v2285
    %2415 = vmatprep.subr.bf16.mxu0 %v2288
    %2416 = vmatpush1.bf16.msra.mxu0 %v2287
    %2417 = vmatprep.subr.bf16.mxu0 %v2290
    %2418 = vmatpush1.bf16.msra.mxu0 %v2289
    %2419 = vmatprep.subr.bf16.mxu0 %v2292
    %2420 = vmatpush1.bf16.msra.mxu0 %v2291
    %2421 = vmatprep.mubr.bf16.mxu0 %v1990
    %2422 = vmatmul.mubr.bf16.gmra.mrb[0].mxu0 %v1989
    %v2423 = vpop.f32.mrb[0].mxu0
    %v2424 = vadd.f32 %v2062, %v2423
    %v2425 = vpop.f32.mrb[0].mxu0
    %v2426 = vadd.f32 %v2066, %v2425
    %v2427 = vpop.f32.mrb[0].mxu0
    %v2428 = vpop.f32.mrb[0].mxu0
    %2429 = vdwg.mxu0
    %2430 = vmatprep.subr.bf16.mxu0 %v2294
    %2431 = vmatpush1.bf16.msra.mxu0 %v2293
    %2432 = vmatprep.subr.bf16.mxu0 %v2296
    %2433 = vmatpush1.bf16.msra.mxu0 %v2295
    %2434 = vmatprep.subr.bf16.mxu0 %v2298
    %2435 = vmatpush1.bf16.msra.mxu0 %v2297
    %2436 = vmatprep.subr.bf16.mxu0 %v2300
    %2437 = vmatpush1.bf16.msra.mxu0 %v2299
    %2438 = vmatprep.subr.bf16.mxu0 %v2302
    %2439 = vmatpush1.bf16.msra.mxu0 %v2301
    %2440 = vmatprep.subr.bf16.mxu0 %v2304
    %2441 = vmatpush1.bf16.msra.mxu0 %v2303
    %2442 = vmatprep.subr.bf16.mxu0 %v2306
    %2443 = vmatpush1.bf16.msra.mxu0 %v2305
    %2444 = vmatprep.subr.bf16.mxu0 %v2308
    %2445 = vmatpush1.bf16.msra.mxu0 %v2307
    %2446 = vmatprep.subr.bf16.mxu0 %v2310
    %2447 = vmatpush1.bf16.msra.mxu0 %v2309
    %2448 = vmatprep.subr.bf16.mxu0 %v2312
    %2449 = vmatpush1.bf16.msra.mxu0 %v2311
    %2450 = vmatprep.subr.bf16.mxu0 %v2314
    %2451 = vmatpush1.bf16.msra.mxu0 %v2313
    %2452 = vmatprep.subr.bf16.mxu0 %v2316
    %2453 = vmatpush1.bf16.msra.mxu0 %v2315
    %2454 = vmatprep.subr.bf16.mxu0 %v2318
    %2455 = vmatpush1.bf16.msra.mxu0 %v2317
    %2456 = vmatprep.subr.bf16.mxu0 %v2320
    %2457 = vmatpush1.bf16.msra.mxu0 %v2319
    %2458 = vmatprep.subr.bf16.mxu0 %v2322
    %2459 = vmatpush1.bf16.msra.mxu0 %v2321
    %2460 = vmatprep.subr.bf16.mxu0 %v2324
    %2461 = vmatpush1.bf16.msra.mxu0 %v2323
    %2462 = vmatprep.mubr.bf16.mxu0 %v1992
    %2463 = vmatmul.mubr.bf16.gmra.mrb[0].mxu0 %v1991
    %v2464 = vpop.f32.mrb[0].mxu0
    %v2465 = vadd.f32 %v2424, %v2464
    %v2466 = vpop.f32.mrb[0].mxu0
    %v2467 = vadd.f32 %v2426, %v2466
    %v2468 = vpop.f32.mrb[0].mxu0
    %v2469 = vpop.f32.mrb[0].mxu0
    %2470 = vdwg.mxu0
    %v2471 = vmax.f32 %v2465, 0.0
    %v2472 = vmax.f32 %v2467, 0.0
    %v2473 = vpack.c.bf16 %v2471, %v2471
    %v2474 = vpack.c.bf16 %v2472, %v2472
    %v2475 = vld [vmem:[%s5] sm:$0xf]
    %v2476 = vld [vmem:[%s5 + $0x4] sm:$0xf]
    %v2477 = vld [vmem:[%s5 + $0x8] sm:$0xf]
    %v2478 = vld [vmem:[%s5 + $0xc] sm:$0xf]
    %v2479 = vld [vmem:[%s5 + $0x10] sm:$0xf]
    %v2480 = vld [vmem:[%s5 + $0x14] sm:$0xf]
    %v2481 = vld [vmem:[%s5 + $0x18] sm:$0xf]
    %v2482 = vld [vmem:[%s5 + $0x1c] sm:$0xf]
    %v2483 = vld [vmem:[%s5 + $0x20] sm:$0xf]
    %v2484 = vld [vmem:[%s5 + $0x24] sm:$0xf]
    %v2485 = vld [vmem:[%s5 + $0x28] sm:$0xf]
    %v2486 = vld [vmem:[%s5 + $0x2c] sm:$0xf]
    %v2487 = vld [vmem:[%s5 + $0x30] sm:$0xf]
    %v2488 = vld [vmem:[%s5 + $0x34] sm:$0xf]
    %v2489 = vld [vmem:[%s5 + $0x38] sm:$0xf]
    %v2490 = vld [vmem:[%s5 + $0x3c] sm:$0xf]
    %v2491 = vld [vmem:[%s5 + $0x40] sm:$0xf]
    %v2492 = vld [vmem:[%s5 + $0x44] sm:$0xf]
    %v2493 = vld [vmem:[%s5 + $0x48] sm:$0xf]
    %v2494 = vld [vmem:[%s5 + $0x4c] sm:$0xf]
    %v2495 = vld [vmem:[%s5 + $0x50] sm:$0xf]
    %v2496 = vld [vmem:[%s5 + $0x54] sm:$0xf]
    %v2497 = vld [vmem:[%s5 + $0x58] sm:$0xf]
    %v2498 = vld [vmem:[%s5 + $0x5c] sm:$0xf]
    %v2499 = vld [vmem:[%s5 + $0x60] sm:$0xf]
    %v2500 = vld [vmem:[%s5 + $0x64] sm:$0xf]
    %v2501 = vld [vmem:[%s5 + $0x68] sm:$0xf]
    %v2502 = vld [vmem:[%s5 + $0x6c] sm:$0xf]
    %v2503 = vld [vmem:[%s5 + $0x70] sm:$0xf]
    %v2504 = vld [vmem:[%s5 + $0x74] sm:$0xf]
    %v2505 = vld [vmem:[%s5 + $0x78] sm:$0xf]
    %v2506 = vld [vmem:[%s5 + $0x7c] sm:$0xf]
    %v2507 = vld [vmem:[%s6] sm:$0x1]
    %v2509 = vlaneseq
    %v2510 = vshrl.u32 %v2509, 7
    %v2511 = vsub.s32 0, %v2510
    %v2512 = vrot.slane %v2507, %v2511
    %v2546 = vunpack.c.l.b16 %v2475
    %v2547 = vunpack.c.l.b16 %v2476
    %v2548 = vunpack.c.l.b16 %v2477
    %v2549 = vunpack.c.l.b16 %v2478
    %v2550 = vunpack.c.l.b16 %v2479
    %v2551 = vunpack.c.l.b16 %v2480
    %v2552 = vunpack.c.l.b16 %v2481
    %v2553 = vunpack.c.l.b16 %v2482
    %v2554 = vunpack.c.l.b16 %v2483
    %v2555 = vunpack.c.l.b16 %v2484
    %v2556 = vunpack.c.l.b16 %v2485
    %v2557 = vunpack.c.l.b16 %v2486
    %v2558 = vunpack.c.l.b16 %v2487
    %v2559 = vunpack.c.l.b16 %v2488
    %v2560 = vunpack.c.l.b16 %v2489
    %v2561 = vunpack.c.l.b16 %v2490
    %v2562 = vunpack.c.l.b16 %v2491
    %v2563 = vunpack.c.l.b16 %v2492
    %v2564 = vunpack.c.l.b16 %v2493
    %v2565 = vunpack.c.l.b16 %v2494
    %v2566 = vunpack.c.l.b16 %v2495
    %v2567 = vunpack.c.l.b16 %v2496
    %v2568 = vunpack.c.l.b16 %v2497
    %v2569 = vunpack.c.l.b16 %v2498
    %v2570 = vunpack.c.l.b16 %v2499
    %v2571 = vunpack.c.l.b16 %v2500
    %v2572 = vunpack.c.l.b16 %v2501
    %v2573 = vunpack.c.l.b16 %v2502
    %v2574 = vunpack.c.l.b16 %v2503
    %v2575 = vunpack.c.l.b16 %v2504
    %v2576 = vunpack.c.l.b16 %v2505
    %v2577 = vunpack.c.l.b16 %v2506
    %v2578 = vpack.c.b16 %v2547, %v2546
    %v2579 = vpack.c.b16 %v2549, %v2548
    %v2580 = vpack.c.b16 %v2551, %v2550
    %v2581 = vpack.c.b16 %v2553, %v2552
    %v2582 = vpack.c.b16 %v2555, %v2554
    %v2583 = vpack.c.b16 %v2557, %v2556
    %v2584 = vpack.c.b16 %v2559, %v2558
    %v2585 = vpack.c.b16 %v2561, %v2560
    %v2586 = vpack.c.b16 %v2563, %v2562
    %v2587 = vpack.c.b16 %v2565, %v2564
    %v2588 = vpack.c.b16 %v2567, %v2566
    %v2589 = vpack.c.b16 %v2569, %v2568
    %v2590 = vpack.c.b16 %v2571, %v2570
    %v2591 = vpack.c.b16 %v2573, %v2572
    %v2592 = vpack.c.b16 %v2575, %v2574
    %v2593 = vpack.c.b16 %v2577, %v2576
    %2610 = vmatprep.subr.bf16.mxu0 0
    %2611 = vmatpush1.bf16.msra.mxu0 %v2578
    %2612 = vmatprep.subr.bf16.mxu0 0
    %2613 = vmatpush1.bf16.msra.mxu0 %v2579
    %2614 = vmatprep.subr.bf16.mxu0 0
    %2615 = vmatpush1.bf16.msra.mxu0 %v2580
    %2616 = vmatprep.subr.bf16.mxu0 0
    %2617 = vmatpush1.bf16.msra.mxu0 %v2581
    %2618 = vmatprep.subr.bf16.mxu0 0
    %2619 = vmatpush1.bf16.msra.mxu0 %v2582
    %2620 = vmatprep.subr.bf16.mxu0 0
    %2621 = vmatpush1.bf16.msra.mxu0 %v2583
    %2622 = vmatprep.subr.bf16.mxu0 0
    %2623 = vmatpush1.bf16.msra.mxu0 %v2584
    %2624 = vmatprep.subr.bf16.mxu0 0
    %2625 = vmatpush1.bf16.msra.mxu0 %v2585
    %2626 = vmatprep.subr.bf16.mxu0 0
    %2627 = vmatpush1.bf16.msra.mxu0 %v2586
    %2628 = vmatprep.subr.bf16.mxu0 0
    %2629 = vmatpush1.bf16.msra.mxu0 %v2587
    %2630 = vmatprep.subr.bf16.mxu0 0
    %2631 = vmatpush1.bf16.msra.mxu0 %v2588
    %2632 = vmatprep.subr.bf16.mxu0 0
    %2633 = vmatpush1.bf16.msra.mxu0 %v2589
    %2634 = vmatprep.subr.bf16.mxu0 0
    %2635 = vmatpush1.bf16.msra.mxu0 %v2590
    %2636 = vmatprep.subr.bf16.mxu0 0
    %2637 = vmatpush1.bf16.msra.mxu0 %v2591
    %2638 = vmatprep.subr.bf16.mxu0 0
    %2639 = vmatpush1.bf16.msra.mxu0 %v2592
    %2640 = vmatprep.subr.bf16.mxu0 0
    %2641 = vmatpush1.bf16.msra.mxu0 %v2593
    %2642 = vmatprep.mubr.bf16.mxu0 %v2474
    %2643 = vmatmul.mubr.bf16.gmra.mrb[0].mxu0 %v2473
    %v2644 = vpop.f32.mrb[0].mxu0
    %v2645 = vadd.f32 %v2512, %v2644
    %v2646 = vpop.f32.mrb[0].mxu0
    %v2647 = vpop.f32.mrb[0].mxu0
    %v2648 = vpop.f32.mrb[0].mxu0
    %2649 = vdwg.mxu0
    %vm2650 = vcmask 189440
    %2651 = vst.msk [vmem:[#allocation5] sm:$0x3] %vm2650, %v2645
    // Predicated region
    $region34: #{cnn_forward.3} parent=1 // pred_check
      _
    $region35: #{cnn_forward.3} parent=1 // pred_check_branch
      %2653 = sbr.rel (0) target = $region37
    $region36: #{cnn_forward.3} parent=1 // pred_region
      %s2655 = ssub.s32 32, 32
      %2656 = vsyncadd [#allocation4], %s2655
      %s2658 = sshll.u32 [#allocation5], 4
      %s2659 = int_to_ptr.vmem [resolvable:$true] %s2658
      %2661 = dma.vmem_to_hbm [thread:$0]  %s2659, 32, %s7, [#allocation4]
    $region37: #{cnn_forward.3} parent=1 // pred_fallthru
      _
    // Predicated region
    $region38: #{cnn_forward.3} parent=1 // pred_check
      _
    $region39: #{cnn_forward.3} parent=1 // pred_check_branch
      %2663 = sbr.rel (0) target = $region41
    $region40: #{cnn_forward.3} parent=1 // pred_region
      %2664 = dma.done [#allocation4], 32
    $region41: #{cnn_forward.3} parent=1 // pred_fallthru
      _
    %2665 = vsyncpa [#allocation3], 1
    %2666 = vsyncpa [#allocation4], 1

</llo_original>
